<compile_context>
chip_gen: v5e
topology: v5e:2x2
jax: 0.10.0
libtpu: 0.0.40
codegen_flags: <defaults>
</compile_context>

<pallas_src>
import functools

import jax
import jax.numpy as jnp
from jax.experimental import pallas as pl
from jax.experimental.pallas import tpu as pltpu

LANE = 128
BN_EPS = 1e-5


def _round_up(x, m):
    return ((x + m - 1) // m) * m


def _resident_spec(shape):
    """Constant-index-map (grid-resident) BlockSpec; single-buffered if supported."""
    idx_map = lambda n: (0,) * len(shape)
    try:
        return pl.BlockSpec(shape, idx_map, pipeline_mode=pl.Buffered(1))
    except Exception:  # older API without pipeline_mode -> fall back to default buffering
        return pl.BlockSpec(shape, idx_map)


def _bottleneck_kernel(*refs, base, tap_offsets, need_downsample):
    if need_downsample:
        (x_ref, m_ref, w1_ref, b1_ref, w2_ref, b2_ref, w3_ref, b3_ref,
         wd_ref, o_ref, pad_ref) = refs
    else:
        (x_ref, m_ref, w1_ref, b1_ref, w2_ref, b2_ref, w3_ref, b3_ref,
         o_ref, pad_ref) = refs
        wd_ref = None

    HWw = x_ref.shape[1]          # Hp * Wp (wide spatial frame)
    Ci = x_ref.shape[2]
    Co = o_ref.shape[2]

    # Hygiene only: the slack regions of the scratch are never written afterwards but
    # only ever feed discarded ring outputs, so skipping this on other megacore cores
    # (which never see program_id 0) is still correct.
    @pl.when(pl.program_id(0) == 0)
    def _():
        pad_ref[...] = jnp.zeros(pad_ref.shape, pad_ref.dtype)

    xw = x_ref[...].reshape(HWw, Ci)                      # bf16, wide frame

    # ---- conv1 (1x1, BN scale folded into w1) + bias + ReLU, then zero the spatial
    #      pad ring (mask) so conv2 sees proper zero padding. ----
    h = jnp.dot(xw, w1_ref[...], preferred_element_type=jnp.float32)
    h = jnp.maximum(h + b1_ref[...], 0.0) * m_ref[...]

    # Single fully-contiguous store at a sublane-aligned offset.
    pad_ref[pl.ds(base, HWw), :] = h

    # ---- conv2 (3x3, dilation d) as 9 MXU matmuls over contiguous shifted slices ----
    acc = jnp.zeros((HWw, Ci), jnp.float32)
    for k, off in enumerate(tap_offsets):
        tap = pad_ref[pl.ds(off, HWw), :].astype(jnp.bfloat16)
        acc = acc + jnp.dot(tap, w2_ref[k * Ci:(k + 1) * Ci, :],
                            preferred_element_type=jnp.float32)
    h2 = jnp.maximum(acc + b2_ref[...], 0.0)

    # ---- conv3 (1x1) + folded-BN bias ----
    y = jnp.dot(h2.astype(jnp.bfloat16), w3_ref[...],
                preferred_element_type=jnp.float32) + b3_ref[...]

    # ---- residual (identity, or 1x1 downsample conv; no BN on the downsample) ----
    if need_downsample:
        res = jnp.dot(xw, wd_ref[...], preferred_element_type=jnp.float32)
    else:
        res = xw.astype(jnp.float32)
    y = jnp.maximum(y + res, 0.0)

    # ---- sigmoid (exp on EUP; exact reciprocal for numerics) ----
    y = pl.reciprocal(1.0 + jnp.exp(-y), approx=False)

    # TODO(synk): consider bf16 output if downstream tolerates it (halves writeback).
    o_ref[...] = y.reshape(1, HWw, Co).astype(o_ref.dtype)


def bottleneck_forward(x_nchw, params, *, stride=1, dilation=1):
    """x_nchw: (N, in_c, H, W) f32.  Returns (N, out_c, H_out, W_out) f32."""
    N, in_c, H, W = x_nchw.shape
    out_c = params["w3"].shape[0]
    need_downsample = (stride > 1) or (in_c != out_c)
    d = int(dilation)

    Ci = _round_up(in_c, LANE)
    Co = _round_up(out_c, LANE)
    Hp, Wp = H + 2 * d, W + 2 * d
    HWw = Hp * Wp                                   # wide spatial frame length
    base = _round_up(d * Wp + d, 8)                 # aligned store offset in scratch
    alloc_len = _round_up(base + d * Wp + d + HWw, 8)
    tap_offsets = tuple(base + (kh - 1) * d * Wp + (kw - 1) * d
                        for kh in range(3) for kw in range(3))

    # ---------- wrapper-side layout plumbing ----------
    # NCHW -> NHWC, zero-pad spatial ring (width d) and channels to lane multiples,
    # flatten spatial, cast to bf16 for the DMA.
    x = jnp.transpose(x_nchw, (0, 2, 3, 1)).astype(jnp.float32)
    x = jnp.pad(x, ((0, 0), (d, d), (d, d), (0, Ci - in_c)))
    x = x.reshape(N, HWw, Ci).astype(jnp.bfloat16)

    # interior mask (1 inside the valid HxW region, 0 on the pad ring)
    mask = (jnp.zeros((Hp, Wp), jnp.float32)
            .at[d:d + H, d:d + W].set(1.0)
            .reshape(HWw, 1))

    def fold_bn(bn):
        gamma, beta, mean, var = bn
        scale = gamma / jnp.sqrt(var + BN_EPS)
        return scale, beta - mean * scale

    s1, b1 = fold_bn(params["bn1"])
    s2, b2 = fold_bn(params["bn2"])
    s3, b3 = fold_bn(params["bn3"])

    def prep_1x1(w, scale, ci_p, co_p):
        # torch (co, ci, 1, 1) -> (ci_p, co_p) bf16, BN scale folded into out-channels
        w = w[:, :, 0, 0]
        if scale is not None:
            w = w * scale[:, None]
        w = jnp.transpose(w, (1, 0))
        w = jnp.pad(w, ((0, ci_p - w.shape[0]), (0, co_p - w.shape[1])))
        return w.astype(jnp.bfloat16)

    def prep_3x3(w, scale, ci_p, co_p):
        # torch (co, ci, 3, 3) -> (9*ci_p, co_p) bf16 (row-blocks k = kh*3+kw), scale folded
        w = w * scale[:, None, None, None]
        w = jnp.transpose(w, (2, 3, 1, 0))           # (3, 3, ci, co)
        w = jnp.pad(w, ((0, 0), (0, 0), (0, ci_p - w.shape[2]), (0, co_p - w.shape[3])))
        return w.reshape(9 * ci_p, co_p).astype(jnp.bfloat16)

    def pad_vec(v, c_p):
        return jnp.pad(v, (0, c_p - v.shape[0])).reshape(1, c_p).astype(jnp.float32)

    w1 = prep_1x1(params["w1"], s1, Ci, Ci)
    w2 = prep_3x3(params["w2"], s2, Ci, Ci)
    w3 = prep_1x1(params["w3"], s3, Ci, Co)
    b1v, b2v, b3v = pad_vec(b1, Ci), pad_vec(b2, Ci), pad_vec(b3, Co)

    inputs = [x, mask, w1, b1v, w2, b2v, w3, b3v]
    in_specs = [
        pl.BlockSpec((1, HWw, Ci), lambda n: (n, 0, 0)),   # x (pipelined per image)
        _resident_spec((HWw, 1)),                          # interior mask
        _resident_spec((Ci, Ci)),                          # w1 (BN1 scale folded)
        _resident_spec((1, Ci)),                           # bn1 bias
        _resident_spec((9 * Ci, Ci)),                      # w2 (BN2 scale folded)
        _resident_spec((1, Ci)),                           # bn2 bias
        _resident_spec((Ci, Co)),                          # w3 (BN3 scale folded)
        _resident_spec((1, Co)),                           # bn3 bias
    ]
    if need_downsample:
        wd = prep_1x1(params["wd"], None, Ci, Co)
        inputs.append(wd)
        in_specs.append(_resident_spec((Ci, Co)))          # downsample weight

    kernel = functools.partial(
        _bottleneck_kernel, base=base, tap_offsets=tap_offsets,
        need_downsample=need_downsample)

    # VMEM working-set estimate -> scoped VMEM limit (with headroom, clamped).
    bytes_est = (2 * HWw * Ci * 2                 # x block, double-buffered, bf16
                 + 2 * HWw * Co * 4               # out block, double-buffered, f32
                 + alloc_len * Ci * 4             # conv1 pad scratch (f32)
                 + (w1.size + w2.size + w3.size) * 2
                 + (Ci * Co * 2 if need_downsample else 0)
                 + HWw * LANE * 4)                # mask (lane-padded in VMEM)
    vmem_limit = int(min(max(2 * bytes_est, 32 * 2 ** 20), 64 * 2 ** 20))

    flops = 2 * N * HWw * Ci * (Ci + 9 * Ci + Co + (Co if need_downsample else 0))
    bytes_accessed = int(x.size * 2
                         + sum(a.size for a in inputs[1:]) * 2
                         + N * HWw * Co * 4)
    cost = pl.CostEstimate(flops=int(flops),
                           transcendentals=int(N * HWw * Co),
                           bytes_accessed=bytes_accessed)

    out_wide = pl.pallas_call(
        kernel,
        out_shape=jax.ShapeDtypeStruct((N, HWw, Co), jnp.float32),
        grid_spec=pltpu.PrefetchScalarGridSpec(
            num_scalar_prefetch=0,
            grid=(N,),
            in_specs=in_specs,
            out_specs=pl.BlockSpec((1, HWw, Co), lambda n: (n, 0, 0)),
            scratch_shapes=[pltpu.VMEM((alloc_len, Ci), jnp.float32)],
        ),
        compiler_params=pltpu.CompilerParams(
            dimension_semantics=("parallel",),
            vmem_limit_bytes=vmem_limit),
        cost_estimate=cost,
    )(*inputs)

    # Slice off the pad ring and padded channels; stride subsample wrapper-side.
    out = out_wide.reshape(N, Hp, Wp, Co)[:, d:d + H, d:d + W, :out_c]
    if stride > 1:
        out = out[:, ::stride, ::stride, :]
    return jnp.transpose(out, (0, 3, 1, 2))


# ------------------------- reference & test harness -------------------------

def init_params(key, in_c, out_c):
    ks = jax.random.split(key, 7)

    def conv_w(k, co, ci, kh, kw):
        bound = 1.0 / float(ci * kh * kw) ** 0.5
        return jax.random.uniform(k, (co, ci, kh, kw), jnp.float32, -bound, bound)

    def bn_p(k, c):
        k1, k2, k3, k4 = jax.random.split(k, 4)
        return (jax.random.uniform(k1, (c,), jnp.float32, 0.5, 1.5),    # gamma
                jax.random.uniform(k2, (c,), jnp.float32, -0.5, 0.5),   # beta
                jax.random.uniform(k3, (c,), jnp.float32, -0.5, 0.5),   # running mean
                jax.random.uniform(k4, (c,), jnp.float32, 0.5, 1.5))    # running var

    return dict(
        w1=conv_w(ks[0], in_c, in_c, 1, 1), bn1=bn_p(ks[1], in_c),
        w2=conv_w(ks[2], in_c, in_c, 3, 3), bn2=bn_p(ks[3], in_c),
        w3=conv_w(ks[4], out_c, in_c, 1, 1), bn3=bn_p(ks[5], out_c),
        wd=conv_w(ks[6], out_c, in_c, 1, 1),
    )


def reference_forward(x, params, *, stride=1, dilation=1):
    conv = functools.partial(jax.lax.conv_general_dilated,
                             dimension_numbers=("NCHW", "OIHW", "NCHW"))

    def bn(h, p):
        gamma, beta, mean, var = p
        inv = (gamma / jnp.sqrt(var + BN_EPS))[None, :, None, None]
        return (h - mean[None, :, None, None]) * inv + beta[None, :, None, None]

    in_c, out_c = x.shape[1], params["w3"].shape[0]
    need_downsample = (stride > 1) or (in_c != out_c)

    h = conv(x, params["w1"], window_strides=(1, 1), padding=((0, 0), (0, 0)))
    h = jax.nn.relu(bn(h, params["bn1"]))
    h = conv(h, params["w2"], window_strides=(stride, stride),
             padding=((dilation, dilation), (dilation, dilation)),
             rhs_dilation=(dilation, dilation))
    h = jax.nn.relu(bn(h, params["bn2"]))
    h = conv(h, params["w3"], window_strides=(1, 1), padding=((0, 0), (0, 0)))
    h = bn(h, params["bn3"])
    if need_downsample:
        res = conv(x, params["wd"], window_strides=(stride, stride),
                   padding=((0, 0), (0, 0)))
    else:
        res = x
    return jax.nn.sigmoid(jax.nn.relu(h + res))


if __name__ == "__main__":
    key = jax.random.PRNGKey(0)
    fwd = jax.jit(bottleneck_forward, static_argnames=("stride", "dilation"))

    configs = [
        # (N, in_c, out_c, H, W, stride, dilation)
        (2, 32, 64, 16, 16, 1, 1),   # channel change -> 1x1-conv downsample residual
        (2, 32, 32, 16, 16, 1, 1),   # identity residual
        (2, 16, 32, 16, 16, 2, 2),   # strided + dilated conv2, strided downsample
    ]
    for (N, in_c, out_c, H, W, s, dil) in configs:
        key, kx, kp = jax.random.split(key, 3)
        x = jax.random.normal(kx, (N, in_c, H, W), jnp.float32)
        params = init_params(kp, in_c, out_c)

        out = jax.block_until_ready(fwd(x, params, stride=s, dilation=dil))
        ref = reference_forward(x, params, stride=s, dilation=dil)

        assert out.shape == ref.shape, (out.shape, ref.shape)
        err = float(jnp.max(jnp.abs(out - ref)))
        assert err < 2e-2, f"max abs err {err} for cfg {(N, in_c, out_c, H, W, s, dil)}"

    print("KERNEL_OK")
</pallas_src>

<mosaic_0001>
module attributes {stable_mosaic.version = 11 : i64} {
  func.func @_bottleneck_kernel(%arg0: i32, %arg1: memref<1x324x128xbf16, #tpu.memory_space<vmem>>, %arg2: memref<324x1xf32, #tpu.memory_space<vmem>>, %arg3: memref<128x128xbf16, #tpu.memory_space<vmem>>, %arg4: memref<1x128xf32, #tpu.memory_space<vmem>>, %arg5: memref<1152x128xbf16, #tpu.memory_space<vmem>>, %arg6: memref<1x128xf32, #tpu.memory_space<vmem>>, %arg7: memref<128x128xbf16, #tpu.memory_space<vmem>>, %arg8: memref<1x128xf32, #tpu.memory_space<vmem>>, %arg9: memref<128x128xbf16, #tpu.memory_space<vmem>>, %arg10: memref<1x324x128xf32, #tpu.memory_space<vmem>>, %arg11: memref<368x128xf32, #tpu.memory_space<vmem>>) attributes {dimension_semantics = [#tpu.dimension_semantics<parallel>], iteration_bounds = array<i64: 2>, scalar_prefetch = 0 : i64, scratch_operands = 1 : i64, tpu.core_type = #tpu.core_type<tc>, window_params = [{transform_indices = @transform_0, window_bounds = array<i64: 1, 324, 128>}, {pipeline_mode = #tpu.pipeline_mode<synchronous>, transform_indices = @transform_1, window_bounds = array<i64: 324, 1>}, {pipeline_mode = #tpu.pipeline_mode<synchronous>, transform_indices = @transform_2, window_bounds = array<i64: 128, 128>}, {pipeline_mode = #tpu.pipeline_mode<synchronous>, transform_indices = @transform_3, window_bounds = array<i64: 1, 128>}, {pipeline_mode = #tpu.pipeline_mode<synchronous>, transform_indices = @transform_4, window_bounds = array<i64: 1152, 128>}, {pipeline_mode = #tpu.pipeline_mode<synchronous>, transform_indices = @transform_5, window_bounds = array<i64: 1, 128>}, {pipeline_mode = #tpu.pipeline_mode<synchronous>, transform_indices = @transform_6, window_bounds = array<i64: 128, 128>}, {pipeline_mode = #tpu.pipeline_mode<synchronous>, transform_indices = @transform_7, window_bounds = array<i64: 1, 128>}, {pipeline_mode = #tpu.pipeline_mode<synchronous>, transform_indices = @transform_8, window_bounds = array<i64: 128, 128>}, {transform_indices = @transform_9, window_bounds = array<i64: 1, 324, 128>}]} {
    %c0_i32 = arith.constant 0 : i32
    %0 = arith.cmpi eq, %arg0, %c0_i32 : i32
    %1 = arith.extui %0 : i1 to i32
    %c0_i32_0 = arith.constant 0 : i32
    %2 = arith.cmpi ne, %1, %c0_i32_0 : i32
    scf.if %2 {
      %cst_58 = arith.constant 0.000000e+00 : f32
      %86 = vector.broadcast %cst_58 : f32 to vector<368x128xf32>
      %c0_59 = arith.constant 0 : index
      %c0_60 = arith.constant 0 : index
      %87 = vector.load %arg11[%c0_59, %c0_60] : memref<368x128xf32, #tpu.memory_space<vmem>>, vector<368x128xf32>
      tpu.vector_store %arg11[%c0_59, %c0_60], %86 {strides = array<i32>} : memref<368x128xf32, #tpu.memory_space<vmem>>, vector<368x128xf32>,
    } else {
    }
    %c0 = arith.constant 0 : index
    %c0_1 = arith.constant 0 : index
    %c0_2 = arith.constant 0 : index
    %3 = vector.load %arg1[%c0, %c0_1, %c0_2] : memref<1x324x128xbf16, #tpu.memory_space<vmem>>, vector<1x324x128xbf16>
    %4 = vector.shape_cast %3 : vector<1x324x128xbf16> to vector<324x128xbf16>
    %c0_3 = arith.constant 0 : index
    %c0_4 = arith.constant 0 : index
    %5 = vector.load %arg3[%c0_3, %c0_4] : memref<128x128xbf16, #tpu.memory_space<vmem>>, vector<128x128xbf16>
    %cst = arith.constant dense<0.000000e+00> : vector<324x128xf32>
    %6 = tpu.matmul %4, %5, %cst {dimension_numbers = #tpu.dot_dimension_numbers<[1], [0], [0], [1], [0, 0, 1, 1], [], []>} : vector<324x128xbf16>, vector<128x128xbf16>, vector<324x128xf32> -> vector<324x128xf32>
    %c0_5 = arith.constant 0 : index
    %c0_6 = arith.constant 0 : index
    %7 = vector.load %arg4[%c0_5, %c0_6] : memref<1x128xf32, #tpu.memory_space<vmem>>, vector<1x128xf32>
    %8 = vector.broadcast %7 : vector<1x128xf32> to vector<324x128xf32>
    %9 = arith.addf %6, %8 : vector<324x128xf32>
    %cst_7 = arith.constant 0.000000e+00 : f32
    %10 = vector.broadcast %cst_7 : f32 to vector<324x128xf32>
    %11 = arith.maximumf %9, %10 : vector<324x128xf32>
    %c0_8 = arith.constant 0 : index
    %c0_9 = arith.constant 0 : index
    %12 = vector.load %arg2[%c0_8, %c0_9] : memref<324x1xf32, #tpu.memory_space<vmem>>, vector<324x1xf32>
    %13 = vector.broadcast %12 : vector<324x1xf32> to vector<324x128xf32>
    %14 = arith.mulf %11, %13 : vector<324x128xf32>
    %c24 = arith.constant 24 : index
    %c0_10 = arith.constant 0 : index
    %15 = vector.load %arg11[%c24, %c0_10] : memref<368x128xf32, #tpu.memory_space<vmem>>, vector<324x128xf32>
    tpu.vector_store %arg11[%c24, %c0_10], %14 {strides = array<i32>} : memref<368x128xf32, #tpu.memory_space<vmem>>, vector<324x128xf32>,
    %cst_11 = arith.constant 0.000000e+00 : f32
    %16 = vector.broadcast %cst_11 : f32 to vector<324x128xf32>
    %c5 = arith.constant 5 : index
    %c0_12 = arith.constant 0 : index
    %17 = vector.load %arg11[%c5, %c0_12] : memref<368x128xf32, #tpu.memory_space<vmem>>, vector<324x128xf32>
    %18 = arith.truncf %17 : vector<324x128xf32> to vector<324x128xbf16>
    %c0_13 = arith.constant 0 : index
    %c0_14 = arith.constant 0 : index
    %19 = vector.load %arg5[%c0_13, %c0_14] : memref<1152x128xbf16, #tpu.memory_space<vmem>>, vector<128x128xbf16>
    %cst_15 = arith.constant dense<0.000000e+00> : vector<324x128xf32>
    %20 = tpu.matmul %18, %19, %cst_15 {dimension_numbers = #tpu.dot_dimension_numbers<[1], [0], [0], [1], [0, 0, 1, 1], [], []>} : vector<324x128xbf16>, vector<128x128xbf16>, vector<324x128xf32> -> vector<324x128xf32>
    %21 = arith.addf %16, %20 : vector<324x128xf32>
    %c6 = arith.constant 6 : index
    %c0_16 = arith.constant 0 : index
    %22 = vector.load %arg11[%c6, %c0_16] : memref<368x128xf32, #tpu.memory_space<vmem>>, vector<324x128xf32>
    %23 = arith.truncf %22 : vector<324x128xf32> to vector<324x128xbf16>
    %c128 = arith.constant 128 : index
    %c0_17 = arith.constant 0 : index
    %24 = vector.load %arg5[%c128, %c0_17] : memref<1152x128xbf16, #tpu.memory_space<vmem>>, vector<128x128xbf16>
    %cst_18 = arith.constant dense<0.000000e+00> : vector<324x128xf32>
    %25 = tpu.matmul %23, %24, %cst_18 {dimension_numbers = #tpu.dot_dimension_numbers<[1], [0], [0], [1], [0, 0, 1, 1], [], []>} : vector<324x128xbf16>, vector<128x128xbf16>, vector<324x128xf32> -> vector<324x128xf32>
    %26 = arith.addf %21, %25 : vector<324x128xf32>
    %c7 = arith.constant 7 : index
    %c0_19 = arith.constant 0 : index
    %27 = vector.load %arg11[%c7, %c0_19] : memref<368x128xf32, #tpu.memory_space<vmem>>, vector<324x128xf32>
    %28 = arith.truncf %27 : vector<324x128xf32> to vector<324x128xbf16>
    %c256 = arith.constant 256 : index
    %c0_20 = arith.constant 0 : index
    %29 = vector.load %arg5[%c256, %c0_20] : memref<1152x128xbf16, #tpu.memory_space<vmem>>, vector<128x128xbf16>
    %cst_21 = arith.constant dense<0.000000e+00> : vector<324x128xf32>
    %30 = tpu.matmul %28, %29, %cst_21 {dimension_numbers = #tpu.dot_dimension_numbers<[1], [0], [0], [1], [0, 0, 1, 1], [], []>} : vector<324x128xbf16>, vector<128x128xbf16>, vector<324x128xf32> -> vector<324x128xf32>
    %31 = arith.addf %26, %30 : vector<324x128xf32>
    %c23 = arith.constant 23 : index
    %c0_22 = arith.constant 0 : index
    %32 = vector.load %arg11[%c23, %c0_22] : memref<368x128xf32, #tpu.memory_space<vmem>>, vector<324x128xf32>
    %33 = arith.truncf %32 : vector<324x128xf32> to vector<324x128xbf16>
    %c384 = arith.constant 384 : index
    %c0_23 = arith.constant 0 : index
    %34 = vector.load %arg5[%c384, %c0_23] : memref<1152x128xbf16, #tpu.memory_space<vmem>>, vector<128x128xbf16>
    %cst_24 = arith.constant dense<0.000000e+00> : vector<324x128xf32>
    %35 = tpu.matmul %33, %34, %cst_24 {dimension_numbers = #tpu.dot_dimension_numbers<[1], [0], [0], [1], [0, 0, 1, 1], [], []>} : vector<324x128xbf16>, vector<128x128xbf16>, vector<324x128xf32> -> vector<324x128xf32>
    %36 = arith.addf %31, %35 : vector<324x128xf32>
    %c24_25 = arith.constant 24 : index
    %c0_26 = arith.constant 0 : index
    %37 = vector.load %arg11[%c24_25, %c0_26] : memref<368x128xf32, #tpu.memory_space<vmem>>, vector<324x128xf32>
    %38 = arith.truncf %37 : vector<324x128xf32> to vector<324x128xbf16>
    %c512 = arith.constant 512 : index
    %c0_27 = arith.constant 0 : index
    %39 = vector.load %arg5[%c512, %c0_27] : memref<1152x128xbf16, #tpu.memory_space<vmem>>, vector<128x128xbf16>
    %cst_28 = arith.constant dense<0.000000e+00> : vector<324x128xf32>
    %40 = tpu.matmul %38, %39, %cst_28 {dimension_numbers = #tpu.dot_dimension_numbers<[1], [0], [0], [1], [0, 0, 1, 1], [], []>} : vector<324x128xbf16>, vector<128x128xbf16>, vector<324x128xf32> -> vector<324x128xf32>
    %41 = arith.addf %36, %40 : vector<324x128xf32>
    %c25 = arith.constant 25 : index
    %c0_29 = arith.constant 0 : index
    %42 = vector.load %arg11[%c25, %c0_29] : memref<368x128xf32, #tpu.memory_space<vmem>>, vector<324x128xf32>
    %43 = arith.truncf %42 : vector<324x128xf32> to vector<324x128xbf16>
    %c640 = arith.constant 640 : index
    %c0_30 = arith.constant 0 : index
    %44 = vector.load %arg5[%c640, %c0_30] : memref<1152x128xbf16, #tpu.memory_space<vmem>>, vector<128x128xbf16>
    %cst_31 = arith.constant dense<0.000000e+00> : vector<324x128xf32>
    %45 = tpu.matmul %43, %44, %cst_31 {dimension_numbers = #tpu.dot_dimension_numbers<[1], [0], [0], [1], [0, 0, 1, 1], [], []>} : vector<324x128xbf16>, vector<128x128xbf16>, vector<324x128xf32> -> vector<324x128xf32>
    %46 = arith.addf %41, %45 : vector<324x128xf32>
    %c41 = arith.constant 41 : index
    %c0_32 = arith.constant 0 : index
    %47 = vector.load %arg11[%c41, %c0_32] : memref<368x128xf32, #tpu.memory_space<vmem>>, vector<324x128xf32>
    %48 = arith.truncf %47 : vector<324x128xf32> to vector<324x128xbf16>
    %c768 = arith.constant 768 : index
    %c0_33 = arith.constant 0 : index
    %49 = vector.load %arg5[%c768, %c0_33] : memref<1152x128xbf16, #tpu.memory_space<vmem>>, vector<128x128xbf16>
    %cst_34 = arith.constant dense<0.000000e+00> : vector<324x128xf32>
    %50 = tpu.matmul %48, %49, %cst_34 {dimension_numbers = #tpu.dot_dimension_numbers<[1], [0], [0], [1], [0, 0, 1, 1], [], []>} : vector<324x128xbf16>, vector<128x128xbf16>, vector<324x128xf32> -> vector<324x128xf32>
    %51 = arith.addf %46, %50 : vector<324x128xf32>
    %c42 = arith.constant 42 : index
    %c0_35 = arith.constant 0 : index
    %52 = vector.load %arg11[%c42, %c0_35] : memref<368x128xf32, #tpu.memory_space<vmem>>, vector<324x128xf32>
    %53 = arith.truncf %52 : vector<324x128xf32> to vector<324x128xbf16>
    %c896 = arith.constant 896 : index
    %c0_36 = arith.constant 0 : index
    %54 = vector.load %arg5[%c896, %c0_36] : memref<1152x128xbf16, #tpu.memory_space<vmem>>, vector<128x128xbf16>
    %cst_37 = arith.constant dense<0.000000e+00> : vector<324x128xf32>
    %55 = tpu.matmul %53, %54, %cst_37 {dimension_numbers = #tpu.dot_dimension_numbers<[1], [0], [0], [1], [0, 0, 1, 1], [], []>} : vector<324x128xbf16>, vector<128x128xbf16>, vector<324x128xf32> -> vector<324x128xf32>
    %56 = arith.addf %51, %55 : vector<324x128xf32>
    %c43 = arith.constant 43 : index
    %c0_38 = arith.constant 0 : index
    %57 = vector.load %arg11[%c43, %c0_38] : memref<368x128xf32, #tpu.memory_space<vmem>>, vector<324x128xf32>
    %58 = arith.truncf %57 : vector<324x128xf32> to vector<324x128xbf16>
    %c1024 = arith.constant 1024 : index
    %c0_39 = arith.constant 0 : index
    %59 = vector.load %arg5[%c1024, %c0_39] : memref<1152x128xbf16, #tpu.memory_space<vmem>>, vector<128x128xbf16>
    %cst_40 = arith.constant dense<0.000000e+00> : vector<324x128xf32>
    %60 = tpu.matmul %58, %59, %cst_40 {dimension_numbers = #tpu.dot_dimension_numbers<[1], [0], [0], [1], [0, 0, 1, 1], [], []>} : vector<324x128xbf16>, vector<128x128xbf16>, vector<324x128xf32> -> vector<324x128xf32>
    %61 = arith.addf %56, %60 : vector<324x128xf32>
    %c0_41 = arith.constant 0 : index
    %c0_42 = arith.constant 0 : index
    %62 = vector.load %arg6[%c0_41, %c0_42] : memref<1x128xf32, #tpu.memory_space<vmem>>, vector<1x128xf32>
    %63 = vector.broadcast %62 : vector<1x128xf32> to vector<324x128xf32>
    %64 = arith.addf %61, %63 : vector<324x128xf32>
    %cst_43 = arith.constant 0.000000e+00 : f32
    %65 = vector.broadcast %cst_43 : f32 to vector<324x128xf32>
    %66 = arith.maximumf %64, %65 : vector<324x128xf32>
    %67 = arith.truncf %66 : vector<324x128xf32> to vector<324x128xbf16>
    %c0_44 = arith.constant 0 : index
    %c0_45 = arith.constant 0 : index
    %68 = vector.load %arg7[%c0_44, %c0_45] : memref<128x128xbf16, #tpu.memory_space<vmem>>, vector<128x128xbf16>
    %cst_46 = arith.constant dense<0.000000e+00> : vector<324x128xf32>
    %69 = tpu.matmul %67, %68, %cst_46 {dimension_numbers = #tpu.dot_dimension_numbers<[1], [0], [0], [1], [0, 0, 1, 1], [], []>} : vector<324x128xbf16>, vector<128x128xbf16>, vector<324x128xf32> -> vector<324x128xf32>
    %c0_47 = arith.constant 0 : index
    %c0_48 = arith.constant 0 : index
    %70 = vector.load %arg8[%c0_47, %c0_48] : memref<1x128xf32, #tpu.memory_space<vmem>>, vector<1x128xf32>
    %71 = vector.broadcast %70 : vector<1x128xf32> to vector<324x128xf32>
    %72 = arith.addf %69, %71 : vector<324x128xf32>
    %c0_49 = arith.constant 0 : index
    %c0_50 = arith.constant 0 : index
    %73 = vector.load %arg9[%c0_49, %c0_50] : memref<128x128xbf16, #tpu.memory_space<vmem>>, vector<128x128xbf16>
    %cst_51 = arith.constant dense<0.000000e+00> : vector<324x128xf32>
    %74 = tpu.matmul %4, %73, %cst_51 {dimension_numbers = #tpu.dot_dimension_numbers<[1], [0], [0], [1], [0, 0, 1, 1], [], []>} : vector<324x128xbf16>, vector<128x128xbf16>, vector<324x128xf32> -> vector<324x128xf32>
    %75 = arith.addf %72, %74 : vector<324x128xf32>
    %cst_52 = arith.constant 0.000000e+00 : f32
    %76 = vector.broadcast %cst_52 : f32 to vector<324x128xf32>
    %77 = arith.maximumf %75, %76 : vector<324x128xf32>
    %cst_53 = arith.constant 0.000000e+00 : f32
    %78 = vector.broadcast %cst_53 : f32 to vector<324x128xf32>
    %79 = arith.subf %78, %77 : vector<324x128xf32>
    %80 = math.exp %79 : vector<324x128xf32>
    %cst_54 = arith.constant 1.000000e+00 : f32
    %81 = vector.broadcast %cst_54 : f32 to vector<324x128xf32>
    %82 = arith.addf %81, %80 : vector<324x128xf32>
    %83 = tpu.reciprocal %82 : vector<324x128xf32> -> vector<324x128xf32>
    %84 = vector.shape_cast %83 : vector<324x128xf32> to vector<1x324x128xf32>
    %c0_55 = arith.constant 0 : index
    %c0_56 = arith.constant 0 : index
    %c0_57 = arith.constant 0 : index
    %85 = vector.load %arg10[%c0_55, %c0_56, %c0_57] : memref<1x324x128xf32, #tpu.memory_space<vmem>>, vector<1x324x128xf32>
    tpu.vector_store %arg10[%c0_55, %c0_56, %c0_57], %84 {strides = array<i32>} : memref<1x324x128xf32, #tpu.memory_space<vmem>>, vector<1x324x128xf32>,
    return
  }
  func.func @transform_0(%arg0: i32) -> (i32, i32, i32) {
    %c0_i32 = arith.constant 0 : i32
    %c0_i32_0 = arith.constant 0 : i32
    %c0_i32_1 = arith.constant 0 : i32
    return %arg0, %c0_i32, %c0_i32_0 : i32, i32, i32
  }
  func.func @transform_1(%arg0: i32) -> (i32, i32) {
    %c0_i32 = arith.constant 0 : i32
    %c0_i32_0 = arith.constant 0 : i32
    %c0_i32_1 = arith.constant 0 : i32
    return %c0_i32, %c0_i32_0 : i32, i32
  }
  func.func @transform_2(%arg0: i32) -> (i32, i32) {
    %c0_i32 = arith.constant 0 : i32
    %c0_i32_0 = arith.constant 0 : i32
    %c0_i32_1 = arith.constant 0 : i32
    return %c0_i32, %c0_i32_0 : i32, i32
  }
  func.func @transform_3(%arg0: i32) -> (i32, i32) {
    %c0_i32 = arith.constant 0 : i32
    %c0_i32_0 = arith.constant 0 : i32
    %c0_i32_1 = arith.constant 0 : i32
    return %c0_i32, %c0_i32_0 : i32, i32
  }
  func.func @transform_4(%arg0: i32) -> (i32, i32) {
    %c0_i32 = arith.constant 0 : i32
    %c0_i32_0 = arith.constant 0 : i32
    %c0_i32_1 = arith.constant 0 : i32
    return %c0_i32, %c0_i32_0 : i32, i32
  }
  func.func @transform_5(%arg0: i32) -> (i32, i32) {
    %c0_i32 = arith.constant 0 : i32
    %c0_i32_0 = arith.constant 0 : i32
    %c0_i32_1 = arith.constant 0 : i32
    return %c0_i32, %c0_i32_0 : i32, i32
  }
  func.func @transform_6(%arg0: i32) -> (i32, i32) {
    %c0_i32 = arith.constant 0 : i32
    %c0_i32_0 = arith.constant 0 : i32
    %c0_i32_1 = arith.constant 0 : i32
    return %c0_i32, %c0_i32_0 : i32, i32
  }
  func.func @transform_7(%arg0: i32) -> (i32, i32) {
    %c0_i32 = arith.constant 0 : i32
    %c0_i32_0 = arith.constant 0 : i32
    %c0_i32_1 = arith.constant 0 : i32
    return %c0_i32, %c0_i32_0 : i32, i32
  }
  func.func @transform_8(%arg0: i32) -> (i32, i32) {
    %c0_i32 = arith.constant 0 : i32
    %c0_i32_0 = arith.constant 0 : i32
    %c0_i32_1 = arith.constant 0 : i32
    return %c0_i32, %c0_i32_0 : i32, i32
  }
  func.func @transform_9(%arg0: i32) -> (i32, i32, i32) {
    %c0_i32 = arith.constant 0 : i32
    %c0_i32_0 = arith.constant 0 : i32
    %c0_i32_1 = arith.constant 0 : i32
    return %arg0, %c0_i32, %c0_i32_0 : i32, i32, i32
  }
}

</mosaic_0001>

<llo_original>
// kernel: bottleneck_forward.1
$region0: #{bottleneck_forward.1}
  #allocation0 [shape = 'u32[]', space=smem, size = 0x4, offset = 0x4, fixed_abs, tag = 'smem constant byte address 0x4 - core index']
  #allocation1 [shape = 'u32[72,128]{1,0:T(1,128)}', space=vmem, size = 0x9000, scoped, tag = 'internal scratch']
  #allocation2 [shape = 'f32[368,128]{1,0:T(8,128)}', space=vmem, size = 0x2e000, scoped, tag = 'scratch operand']
  %s0 = inlined_call_operand.vmem [shape: bf16[2,324,128], index: 0, kind: input, shape index: {}]
  %s1 = inlined_call_operand.vmem [shape: f32[324,1], index: 1, kind: input, shape index: {}]
  %s2 = inlined_call_operand.vmem [shape: bf16[128,128], index: 2, kind: input, shape index: {}]
  %s3 = inlined_call_operand.vmem [shape: f32[1,128], index: 3, kind: input, shape index: {}]
  %s4 = inlined_call_operand.vmem [shape: bf16[1152,128], index: 4, kind: input, shape index: {}]
  %s5 = inlined_call_operand.vmem [shape: f32[1,128], index: 5, kind: input, shape index: {}]
  %s6 = inlined_call_operand.vmem [shape: bf16[128,128], index: 6, kind: input, shape index: {}]
  %s7 = inlined_call_operand.vmem [shape: f32[1,128], index: 7, kind: input, shape index: {}]
  %s8 = inlined_call_operand.vmem [shape: bf16[128,128], index: 8, kind: input, shape index: {}]
  %s9 = inlined_call_operand.vmem [shape: f32[2,324,128], index: 9, kind: output, shape index: {}]
  %s10 = sld [smem:[#allocation0]]
  $region73: #{bottleneck_forward.1} parent=0
    _
  %s12 = ssub.s32 1, %s10
  %s13 = scalar_select 0, %s12, %s10
  loop: start=0, step=1, limit=4
  $region2: #{bottleneck_forward.1} parent=0 // loop_pre_header
    _
  $region3: #{bottleneck_forward.1} parent=0 // loop_header
    %s15 = sphi 0, %s19
    %p16 = scmp.ge.s32.totalorder %s15, 4
    %s25 = sphi 0, %s27
    %s28 = sphi 0, %s25
    %s29 = sphi 0, %s28
    %s45 = sphi 0, %s29
    %s49 = sphi 0, %s49
    %s51 = sphi 0, %s49
    %s52 = sphi 0, %s51
    %s66 = sphi 0, %s52
    %s70 = sphi 0, %s70
    %s72 = sphi 0, %s70
    %s73 = sphi 0, %s72
    %s87 = sphi 0, %s73
    %s91 = sphi 0, %s91
    %s93 = sphi 0, %s91
    %s94 = sphi 0, %s93
    %s108 = sphi 0, %s94
    %s112 = sphi 0, %s112
    %s114 = sphi 0, %s112
    %s115 = sphi 0, %s114
    %s129 = sphi 0, %s115
    %s133 = sphi 0, %s133
    %s135 = sphi 0, %s133
    %s136 = sphi 0, %s135
    %s150 = sphi 0, %s136
    %s154 = sphi 0, %s154
    %s156 = sphi 0, %s154
    %s157 = sphi 0, %s156
    %s171 = sphi 0, %s157
    %s175 = sphi 0, %s175
    %s177 = sphi 0, %s175
    %s178 = sphi 0, %s177
    %s192 = sphi 0, %s178
    %s196 = sphi 0, %s196
    %s198 = sphi 0, %s196
    %s199 = sphi 0, %s198
    %s213 = sphi 0, %s199
    %s219 = sphi 0, %s221
    %s222 = sphi 0, %s219
    %s223 = sphi 0, %s222
    %s239 = sphi 0, %s223
  $region4: #{bottleneck_forward.1} parent=0 // loop_header_branch
    %18 = sbr.rel (%p16) target = $region8
  $region5: #{bottleneck_forward.1} parent=0 // loop_body
    %s20 = ssub.s32 %s15, 1
    %s21 = ssub.s32 %s15, 2
    %s22 = sadd.s32 %s15, 1
    %s23 = ssub.s32 %s15, %s22
    %p24 = scmp.eq.s32.totalorder %s23, 0
    %s26 = sadd.s32 %s25, 1
    %s27 = scalar_select %p24, %s25, %s26
    %p30 = pneg %p24
    %p31 = scmp.eq.s32.totalorder %s15, 1
    %p32 = por %p30, %p31
    %p33 = scmp.ne.s32.totalorder %s25, %s28
    %p34 = scmp.eq.s32.totalorder %s15, 0
    %p35 = por %p33, %p34
    %p36 = scmp.ne.s32.totalorder %s25, %s28
    %p37 = scmp.eq.s32.totalorder %s20, 1
    %p38 = por %p36, %p37
    %p39 = scmp.ne.s32.totalorder %s28, %s29
    %p40 = scmp.eq.s32.totalorder %s20, 0
    %p41 = por %p39, %p40
    %p42 = scmp.ne.s32.totalorder %s28, %s29
    %p43 = scmp.eq.s32.totalorder %s21, 1
    %p44 = por %p42, %p43
    %p46 = scmp.ne.s32.totalorder %s29, %s45
    %p47 = scmp.eq.s32.totalorder %s21, 0
    %p48 = por %p46, %p47
    %s50 = sadd.s32 %s49, 1
    %p53 = scmp.eq.s32.totalorder %s15, 1
    %p54 = scmp.ne.s32.totalorder %s49, %s51
    %p55 = scmp.eq.s32.totalorder %s15, 0
    %p56 = por %p54, %p55
    %p57 = scmp.ne.s32.totalorder %s49, %s51
    %p58 = scmp.eq.s32.totalorder %s20, 1
    %p59 = por %p57, %p58
    %p60 = scmp.ne.s32.totalorder %s51, %s52
    %p61 = scmp.eq.s32.totalorder %s20, 0
    %p62 = por %p60, %p61
    %p63 = scmp.ne.s32.totalorder %s51, %s52
    %p64 = scmp.eq.s32.totalorder %s21, 1
    %p65 = por %p63, %p64
    %p67 = scmp.ne.s32.totalorder %s52, %s66
    %p68 = scmp.eq.s32.totalorder %s21, 0
    %p69 = por %p67, %p68
    %s71 = sadd.s32 %s70, 1
    %p74 = scmp.eq.s32.totalorder %s15, 1
    %p75 = scmp.ne.s32.totalorder %s70, %s72
    %p76 = scmp.eq.s32.totalorder %s15, 0
    %p77 = por %p75, %p76
    %p78 = scmp.ne.s32.totalorder %s70, %s72
    %p79 = scmp.eq.s32.totalorder %s20, 1
    %p80 = por %p78, %p79
    %p81 = scmp.ne.s32.totalorder %s72, %s73
    %p82 = scmp.eq.s32.totalorder %s20, 0
    %p83 = por %p81, %p82
    %p84 = scmp.ne.s32.totalorder %s72, %s73
    %p85 = scmp.eq.s32.totalorder %s21, 1
    %p86 = por %p84, %p85
    %p88 = scmp.ne.s32.totalorder %s73, %s87
    %p89 = scmp.eq.s32.totalorder %s21, 0
    %p90 = por %p88, %p89
    %s92 = sadd.s32 %s91, 1
    %p95 = scmp.eq.s32.totalorder %s15, 1
    %p96 = scmp.ne.s32.totalorder %s91, %s93
    %p97 = scmp.eq.s32.totalorder %s15, 0
    %p98 = por %p96, %p97
    %p99 = scmp.ne.s32.totalorder %s91, %s93
    %p100 = scmp.eq.s32.totalorder %s20, 1
    %p101 = por %p99, %p100
    %p102 = scmp.ne.s32.totalorder %s93, %s94
    %p103 = scmp.eq.s32.totalorder %s20, 0
    %p104 = por %p102, %p103
    %p105 = scmp.ne.s32.totalorder %s93, %s94
    %p106 = scmp.eq.s32.totalorder %s21, 1
    %p107 = por %p105, %p106
    %p109 = scmp.ne.s32.totalorder %s94, %s108
    %p110 = scmp.eq.s32.totalorder %s21, 0
    %p111 = por %p109, %p110
    %s113 = sadd.s32 %s112, 1
    %p116 = scmp.eq.s32.totalorder %s15, 1
    %p117 = scmp.ne.s32.totalorder %s112, %s114
    %p118 = scmp.eq.s32.totalorder %s15, 0
    %p119 = por %p117, %p118
    %p120 = scmp.ne.s32.totalorder %s112, %s114
    %p121 = scmp.eq.s32.totalorder %s20, 1
    %p122 = por %p120, %p121
    %p123 = scmp.ne.s32.totalorder %s114, %s115
    %p124 = scmp.eq.s32.totalorder %s20, 0
    %p125 = por %p123, %p124
    %p126 = scmp.ne.s32.totalorder %s114, %s115
    %p127 = scmp.eq.s32.totalorder %s21, 1
    %p128 = por %p126, %p127
    %p130 = scmp.ne.s32.totalorder %s115, %s129
    %p131 = scmp.eq.s32.totalorder %s21, 0
    %p132 = por %p130, %p131
    %s134 = sadd.s32 %s133, 1
    %p137 = scmp.eq.s32.totalorder %s15, 1
    %p138 = scmp.ne.s32.totalorder %s133, %s135
    %p139 = scmp.eq.s32.totalorder %s15, 0
    %p140 = por %p138, %p139
    %p141 = scmp.ne.s32.totalorder %s133, %s135
    %p142 = scmp.eq.s32.totalorder %s20, 1
    %p143 = por %p141, %p142
    %p144 = scmp.ne.s32.totalorder %s135, %s136
    %p145 = scmp.eq.s32.totalorder %s20, 0
    %p146 = por %p144, %p145
    %p147 = scmp.ne.s32.totalorder %s135, %s136
    %p148 = scmp.eq.s32.totalorder %s21, 1
    %p149 = por %p147, %p148
    %p151 = scmp.ne.s32.totalorder %s136, %s150
    %p152 = scmp.eq.s32.totalorder %s21, 0
    %p153 = por %p151, %p152
    %s155 = sadd.s32 %s154, 1
    %p158 = scmp.eq.s32.totalorder %s15, 1
    %p159 = scmp.ne.s32.totalorder %s154, %s156
    %p160 = scmp.eq.s32.totalorder %s15, 0
    %p161 = por %p159, %p160
    %p162 = scmp.ne.s32.totalorder %s154, %s156
    %p163 = scmp.eq.s32.totalorder %s20, 1
    %p164 = por %p162, %p163
    %p165 = scmp.ne.s32.totalorder %s156, %s157
    %p166 = scmp.eq.s32.totalorder %s20, 0
    %p167 = por %p165, %p166
    %p168 = scmp.ne.s32.totalorder %s156, %s157
    %p169 = scmp.eq.s32.totalorder %s21, 1
    %p170 = por %p168, %p169
    %p172 = scmp.ne.s32.totalorder %s157, %s171
    %p173 = scmp.eq.s32.totalorder %s21, 0
    %p174 = por %p172, %p173
    %s176 = sadd.s32 %s175, 1
    %p179 = scmp.eq.s32.totalorder %s15, 1
    %p180 = scmp.ne.s32.totalorder %s175, %s177
    %p181 = scmp.eq.s32.totalorder %s15, 0
    %p182 = por %p180, %p181
    %p183 = scmp.ne.s32.totalorder %s175, %s177
    %p184 = scmp.eq.s32.totalorder %s20, 1
    %p185 = por %p183, %p184
    %p186 = scmp.ne.s32.totalorder %s177, %s178
    %p187 = scmp.eq.s32.totalorder %s20, 0
    %p188 = por %p186, %p187
    %p189 = scmp.ne.s32.totalorder %s177, %s178
    %p190 = scmp.eq.s32.totalorder %s21, 1
    %p191 = por %p189, %p190
    %p193 = scmp.ne.s32.totalorder %s178, %s192
    %p194 = scmp.eq.s32.totalorder %s21, 0
    %p195 = por %p193, %p194
    %s197 = sadd.s32 %s196, 1
    %p200 = scmp.eq.s32.totalorder %s15, 1
    %p201 = scmp.ne.s32.totalorder %s196, %s198
    %p202 = scmp.eq.s32.totalorder %s15, 0
    %p203 = por %p201, %p202
    %p204 = scmp.ne.s32.totalorder %s196, %s198
    %p205 = scmp.eq.s32.totalorder %s20, 1
    %p206 = por %p204, %p205
    %p207 = scmp.ne.s32.totalorder %s198, %s199
    %p208 = scmp.eq.s32.totalorder %s20, 0
    %p209 = por %p207, %p208
    %p210 = scmp.ne.s32.totalorder %s198, %s199
    %p211 = scmp.eq.s32.totalorder %s21, 1
    %p212 = por %p210, %p211
    %p214 = scmp.ne.s32.totalorder %s199, %s213
    %p215 = scmp.eq.s32.totalorder %s21, 0
    %p216 = por %p214, %p215
    %s217 = ssub.s32 %s15, %s22
    %p218 = scmp.eq.s32.totalorder %s217, 0
    %s220 = sadd.s32 %s219, 1
    %s221 = scalar_select %p218, %s219, %s220
    %p224 = pneg %p218
    %p225 = scmp.eq.s32.totalorder %s15, 1
    %p226 = por %p224, %p225
    %p227 = scmp.ne.s32.totalorder %s219, %s222
    %p228 = scmp.eq.s32.totalorder %s15, 0
    %p229 = por %p227, %p228
    %p230 = scmp.ne.s32.totalorder %s219, %s222
    %p231 = scmp.eq.s32.totalorder %s20, 1
    %p232 = por %p230, %p231
    %p233 = scmp.ne.s32.totalorder %s222, %s223
    %p234 = scmp.eq.s32.totalorder %s20, 0
    %p235 = por %p233, %p234
    %p236 = scmp.ne.s32.totalorder %s222, %s223
    %p237 = scmp.eq.s32.totalorder %s21, 1
    %p238 = por %p236, %p237
    %p240 = scmp.ne.s32.totalorder %s223, %s239
    %p241 = scmp.eq.s32.totalorder %s21, 0
    %p242 = por %p240, %p241
    %p243 = scmp.le.s32.totalorder 1, %s15
    %p244 = scmp.lt.s32.totalorder %s15, 3
    %p245 = pnand %p243, %p244
    %p246 = pneg %p245
    // Predicated region
    $region9: #{bottleneck_forward.1} parent=5 // pred_check
      _
    $region10: #{bottleneck_forward.1} parent=5 // pred_check_branch
      %248 = sbr.rel (%p245) target = $region12
    $region11: #{bottleneck_forward.1} parent=5 // pred_region
      %s249 = ssub.s32 %s15, 1
      // Predicated region
      $region13: #{bottleneck_forward.1} parent=11 // pred_check
        %p250 = pneg %p62
      $region14: #{bottleneck_forward.1} parent=11 // pred_check_branch
        %252 = sbr.rel (%p250) target = $region16
      $region15: #{bottleneck_forward.1} parent=11 // pred_region
        _
      $region16: #{bottleneck_forward.1} parent=11 // pred_fallthru
        _
      // Predicated region
      $region17: #{bottleneck_forward.1} parent=11 // pred_check
        %p253 = pneg %p83
      $region18: #{bottleneck_forward.1} parent=11 // pred_check_branch
        %255 = sbr.rel (%p253) target = $region20
      $region19: #{bottleneck_forward.1} parent=11 // pred_region
        _
      $region20: #{bottleneck_forward.1} parent=11 // pred_fallthru
        _
      // Predicated region
      $region21: #{bottleneck_forward.1} parent=11 // pred_check
        %p256 = pneg %p104
      $region22: #{bottleneck_forward.1} parent=11 // pred_check_branch
        %258 = sbr.rel (%p256) target = $region24
      $region23: #{bottleneck_forward.1} parent=11 // pred_region
        _
      $region24: #{bottleneck_forward.1} parent=11 // pred_fallthru
        _
      // Predicated region
      $region25: #{bottleneck_forward.1} parent=11 // pred_check
        %p259 = pneg %p125
      $region26: #{bottleneck_forward.1} parent=11 // pred_check_branch
        %261 = sbr.rel (%p259) target = $region28
      $region27: #{bottleneck_forward.1} parent=11 // pred_region
        _
      $region28: #{bottleneck_forward.1} parent=11 // pred_fallthru
        _
      // Predicated region
      $region29: #{bottleneck_forward.1} parent=11 // pred_check
        %p262 = pneg %p146
      $region30: #{bottleneck_forward.1} parent=11 // pred_check_branch
        %264 = sbr.rel (%p262) target = $region32
      $region31: #{bottleneck_forward.1} parent=11 // pred_region
        _
      $region32: #{bottleneck_forward.1} parent=11 // pred_fallthru
        _
      // Predicated region
      $region33: #{bottleneck_forward.1} parent=11 // pred_check
        %p265 = pneg %p167
      $region34: #{bottleneck_forward.1} parent=11 // pred_check_branch
        %267 = sbr.rel (%p265) target = $region36
      $region35: #{bottleneck_forward.1} parent=11 // pred_region
        _
      $region36: #{bottleneck_forward.1} parent=11 // pred_fallthru
        _
      // Predicated region
      $region37: #{bottleneck_forward.1} parent=11 // pred_check
        %p268 = pneg %p188
      $region38: #{bottleneck_forward.1} parent=11 // pred_check_branch
        %270 = sbr.rel (%p268) target = $region40
      $region39: #{bottleneck_forward.1} parent=11 // pred_region
        _
      $region40: #{bottleneck_forward.1} parent=11 // pred_fallthru
        _
      // Predicated region
      $region41: #{bottleneck_forward.1} parent=11 // pred_check
        %p271 = pneg %p209
      $region42: #{bottleneck_forward.1} parent=11 // pred_check_branch
        %273 = sbr.rel (%p271) target = $region44
      $region43: #{bottleneck_forward.1} parent=11 // pred_region
        _
      $region44: #{bottleneck_forward.1} parent=11 // pred_fallthru
        _
    $region12: #{bottleneck_forward.1} parent=5 // pred_fallthru
      _
    %p274 = scmp.lt.s32.totalorder %s15, 2
    // Predicated region
    $region45: #{bottleneck_forward.1} parent=5 // pred_check
      %p275 = pneg %p274
    $region46: #{bottleneck_forward.1} parent=5 // pred_check_branch
      %277 = sbr.rel (%p275) target = $region48
    $region47: #{bottleneck_forward.1} parent=5 // pred_region
      // Predicated region
      $region49: #{bottleneck_forward.1} parent=47 // pred_check
        %p278 = pneg %p35
      $region50: #{bottleneck_forward.1} parent=47 // pred_check_branch
        %280 = sbr.rel (%p278) target = $region52
      $region51: #{bottleneck_forward.1} parent=47 // pred_region
        %p281 = scmp.lt.s32.totalorder %s15, 1
        %s282 = scalar_select %p281, %s15, 1
        %s283 = smul.addr %s282, 41
        %s284 = smul.addr %s283, 4
        %s285 = scalar_lea.vmem %s0, %s284
      $region52: #{bottleneck_forward.1} parent=47 // pred_fallthru
        _
    $region48: #{bottleneck_forward.1} parent=5 // pred_fallthru
      _
    %p286 = scmp.le.s32.totalorder 1, %s15
    %p287 = scmp.lt.s32.totalorder %s15, 3
    %p288 = pnand %p286, %p287
    %p289 = pneg %p288
    // Predicated region
    $region53: #{bottleneck_forward.1} parent=5 // pred_check
      _
    $region54: #{bottleneck_forward.1} parent=5 // pred_check_branch
      %291 = sbr.rel (%p288) target = $region56
    $region55: #{bottleneck_forward.1} parent=5 // pred_region
      %s292 = ssub.s32 %s15, 1
      %p293 = scmp.lt.s32.totalorder %s20, 1
      %s294 = scalar_select %p293, %s20, 1
      %s295 = smul.addr %s294, 41
      %s296 = smul.addr %s295, 4
      %s297 = scalar_lea.vmem %s0, %s296
      %p298 = pneg %p41
      %p299 = pneg %p38
      %p300 = pneg %p62
      %p301 = pneg %p59
      %p302 = pneg %p83
      %p303 = pneg %p80
      %p304 = pneg %p104
      %p305 = pneg %p101
      %p306 = pneg %p125
      %p307 = pneg %p122
      %p308 = pneg %p146
      %p309 = pneg %p143
      %p310 = pneg %p167
      %p311 = pneg %p164
      %p312 = pneg %p188
      %p313 = pneg %p185
      %p314 = pneg %p209
      %p315 = pneg %p206
      %p316 = pneg %p235
      %p317 = pneg %p232
      %p318 = scmp.lt.s32.totalorder %s20, 1
      %s319 = scalar_select %p318, %s20, 1
      %s320 = smul.addr %s319, 41
      %s321 = smul.addr %s320, 8
      %s322 = scalar_lea.vmem %s9, %s321
      %p323 = scmp.lt.s32.totalorder %s20, 1
      %s324 = scalar_select %p323, %s20, 1
      %s325 = smul.addr %s324, 41
      %s326 = smul.addr %s325, 4
      %s327 = scalar_lea.vmem %s0, %s326
      %p328 = scmp.lt.s32.totalorder %s20, 1
      %s329 = scalar_select %p328, %s20, 1
      %s330 = smul.addr %s329, 41
      %s331 = smul.addr %s330, 8
      %s332 = scalar_lea.vmem %s9, %s331
      %p333 = scmp.eq.s32.totalorder %s20, 0
      // Predicated region
      $region57: #{bottleneck_forward.1} parent=55 // pred_check
        %p334 = pneg %p333
      $region58: #{bottleneck_forward.1} parent=55 // pred_check_branch
        %336 = sbr.rel (%p334) target = $region60
      $region59: #{bottleneck_forward.1} parent=55 // pred_region
        %337 = vst [vmem:[#allocation2] sm:$0xff] 0.0
        %338 = vst [vmem:[#allocation2 + $0x8] sm:$0xff] 0.0
        %339 = vst [vmem:[#allocation2 + $0x10] sm:$0xff] 0.0
        %340 = vst [vmem:[#allocation2 + $0x18] sm:$0xff] 0.0
        %341 = vst [vmem:[#allocation2 + $0x20] sm:$0xff] 0.0
        %342 = vst [vmem:[#allocation2 + $0x28] sm:$0xff] 0.0
        %343 = vst [vmem:[#allocation2 + $0x30] sm:$0xff] 0.0
        %344 = vst [vmem:[#allocation2 + $0x38] sm:$0xff] 0.0
        %345 = vst [vmem:[#allocation2 + $0x40] sm:$0xff] 0.0
        %346 = vst [vmem:[#allocation2 + $0x48] sm:$0xff] 0.0
        %347 = vst [vmem:[#allocation2 + $0x50] sm:$0xff] 0.0
        %348 = vst [vmem:[#allocation2 + $0x58] sm:$0xff] 0.0
        %349 = vst [vmem:[#allocation2 + $0x60] sm:$0xff] 0.0
        %350 = vst [vmem:[#allocation2 + $0x68] sm:$0xff] 0.0
        %351 = vst [vmem:[#allocation2 + $0x70] sm:$0xff] 0.0
        %352 = vst [vmem:[#allocation2 + $0x78] sm:$0xff] 0.0
        %353 = vst [vmem:[#allocation2 + $0x80] sm:$0xff] 0.0
        %354 = vst [vmem:[#allocation2 + $0x88] sm:$0xff] 0.0
        %355 = vst [vmem:[#allocation2 + $0x90] sm:$0xff] 0.0
        %356 = vst [vmem:[#allocation2 + $0x98] sm:$0xff] 0.0
        %357 = vst [vmem:[#allocation2 + $0xa0] sm:$0xff] 0.0
        %358 = vst [vmem:[#allocation2 + $0xa8] sm:$0xff] 0.0
        %359 = vst [vmem:[#allocation2 + $0xb0] sm:$0xff] 0.0
        %360 = vst [vmem:[#allocation2 + $0xb8] sm:$0xff] 0.0
        %361 = vst [vmem:[#allocation2 + $0xc0] sm:$0xff] 0.0
        %362 = vst [vmem:[#allocation2 + $0xc8] sm:$0xff] 0.0
        %363 = vst [vmem:[#allocation2 + $0xd0] sm:$0xff] 0.0
        %364 = vst [vmem:[#allocation2 + $0xd8] sm:$0xff] 0.0
        %365 = vst [vmem:[#allocation2 + $0xe0] sm:$0xff] 0.0
        %366 = vst [vmem:[#allocation2 + $0xe8] sm:$0xff] 0.0
        %367 = vst [vmem:[#allocation2 + $0xf0] sm:$0xff] 0.0
        %368 = vst [vmem:[#allocation2 + $0xf8] sm:$0xff] 0.0
        %369 = vst [vmem:[#allocation2 + $0x100] sm:$0xff] 0.0
        %370 = vst [vmem:[#allocation2 + $0x108] sm:$0xff] 0.0
        %371 = vst [vmem:[#allocation2 + $0x110] sm:$0xff] 0.0
        %372 = vst [vmem:[#allocation2 + $0x118] sm:$0xff] 0.0
        %373 = vst [vmem:[#allocation2 + $0x120] sm:$0xff] 0.0
        %374 = vst [vmem:[#allocation2 + $0x128] sm:$0xff] 0.0
        %375 = vst [vmem:[#allocation2 + $0x130] sm:$0xff] 0.0
        %376 = vst [vmem:[#allocation2 + $0x138] sm:$0xff] 0.0
        %377 = vst [vmem:[#allocation2 + $0x140] sm:$0xff] 0.0
        %378 = vst [vmem:[#allocation2 + $0x148] sm:$0xff] 0.0
        %379 = vst [vmem:[#allocation2 + $0x150] sm:$0xff] 0.0
        %380 = vst [vmem:[#allocation2 + $0x158] sm:$0xff] 0.0
        %381 = vst [vmem:[#allocation2 + $0x160] sm:$0xff] 0.0
        %382 = vst [vmem:[#allocation2 + $0x168] sm:$0xff] 0.0
      $region60: #{bottleneck_forward.1} parent=55 // pred_fallthru
        _
      %v383 = vld [vmem:[%s327] sm:$0xf]
      %v384 = vld [vmem:[%s327 + $0x4] sm:$0xf]
      %v385 = vld [vmem:[%s327 + $0x8] sm:$0xf]
      %v386 = vld [vmem:[%s327 + $0xc] sm:$0xf]
      %v387 = vld [vmem:[%s327 + $0x10] sm:$0xf]
      %v388 = vld [vmem:[%s327 + $0x14] sm:$0xf]
      %v389 = vld [vmem:[%s327 + $0x18] sm:$0xf]
      %v390 = vld [vmem:[%s327 + $0x1c] sm:$0xf]
      %v391 = vld [vmem:[%s327 + $0x20] sm:$0xf]
      %v392 = vld [vmem:[%s327 + $0x24] sm:$0xf]
      %v393 = vld [vmem:[%s327 + $0x28] sm:$0xf]
      %v394 = vld [vmem:[%s327 + $0x2c] sm:$0xf]
      %v395 = vld [vmem:[%s327 + $0x30] sm:$0xf]
      %v396 = vld [vmem:[%s327 + $0x34] sm:$0xf]
      %v397 = vld [vmem:[%s327 + $0x38] sm:$0xf]
      %v398 = vld [vmem:[%s327 + $0x3c] sm:$0xf]
      %v399 = vld [vmem:[%s327 + $0x40] sm:$0xf]
      %v400 = vld [vmem:[%s327 + $0x44] sm:$0xf]
      %v401 = vld [vmem:[%s327 + $0x48] sm:$0xf]
      %v402 = vld [vmem:[%s327 + $0x4c] sm:$0xf]
      %v403 = vld [vmem:[%s327 + $0x50] sm:$0xf]
      %v404 = vld [vmem:[%s327 + $0x54] sm:$0xf]
      %v405 = vld [vmem:[%s327 + $0x58] sm:$0xf]
      %v406 = vld [vmem:[%s327 + $0x5c] sm:$0xf]
      %v407 = vld [vmem:[%s327 + $0x60] sm:$0xf]
      %v408 = vld [vmem:[%s327 + $0x64] sm:$0xf]
      %v409 = vld [vmem:[%s327 + $0x68] sm:$0xf]
      %v410 = vld [vmem:[%s327 + $0x6c] sm:$0xf]
      %v411 = vld [vmem:[%s327 + $0x70] sm:$0xf]
      %v412 = vld [vmem:[%s327 + $0x74] sm:$0xf]
      %v413 = vld [vmem:[%s327 + $0x78] sm:$0xf]
      %v414 = vld [vmem:[%s327 + $0x7c] sm:$0xf]
      %v415 = vld [vmem:[%s327 + $0x80] sm:$0xf]
      %v416 = vld [vmem:[%s327 + $0x84] sm:$0xf]
      %v417 = vld [vmem:[%s327 + $0x88] sm:$0xf]
      %v418 = vld [vmem:[%s327 + $0x8c] sm:$0xf]
      %v419 = vld [vmem:[%s327 + $0x90] sm:$0xf]
      %v420 = vld [vmem:[%s327 + $0x94] sm:$0xf]
      %v421 = vld [vmem:[%s327 + $0x98] sm:$0xf]
      %v422 = vld [vmem:[%s327 + $0x9c] sm:$0xf]
      %v423 = vld [vmem:[%s327 + $0xa0] sm:$0x3]
      %v424 = vld [vmem:[%s2] sm:$0xf]
      %v425 = vld [vmem:[%s2 + $0x4] sm:$0xf]
      %v426 = vld [vmem:[%s2 + $0x8] sm:$0xf]
      %v427 = vld [vmem:[%s2 + $0xc] sm:$0xf]
      %v428 = vld [vmem:[%s2 + $0x10] sm:$0xf]
      %v429 = vld [vmem:[%s2 + $0x14] sm:$0xf]
      %v430 = vld [vmem:[%s2 + $0x18] sm:$0xf]
      %v431 = vld [vmem:[%s2 + $0x1c] sm:$0xf]
      %v432 = vld [vmem:[%s2 + $0x20] sm:$0xf]
      %v433 = vld [vmem:[%s2 + $0x24] sm:$0xf]
      %v434 = vld [vmem:[%s2 + $0x28] sm:$0xf]
      %v435 = vld [vmem:[%s2 + $0x2c] sm:$0xf]
      %v436 = vld [vmem:[%s2 + $0x30] sm:$0xf]
      %v437 = vld [vmem:[%s2 + $0x34] sm:$0xf]
      %v438 = vld [vmem:[%s2 + $0x38] sm:$0xf]
      %v439 = vld [vmem:[%s2 + $0x3c] sm:$0xf]
      %v440 = vld [vmem:[%s3] sm:$0x1]
      %v442 = vperm.slane %v440, 0
      %v485 = vunpack.c.l.b16 %v383
      %v486 = vunpack.c.l.b16 %v384
      %v487 = vunpack.c.l.b16 %v385
      %v488 = vunpack.c.l.b16 %v386
      %v489 = vunpack.c.l.b16 %v387
      %v490 = vunpack.c.l.b16 %v388
      %v491 = vunpack.c.l.b16 %v389
      %v492 = vunpack.c.l.b16 %v390
      %v493 = vunpack.c.l.b16 %v391
      %v494 = vunpack.c.l.b16 %v392
      %v495 = vunpack.c.l.b16 %v393
      %v496 = vunpack.c.l.b16 %v394
      %v497 = vunpack.c.l.b16 %v395
      %v498 = vunpack.c.l.b16 %v396
      %v499 = vunpack.c.l.b16 %v397
      %v500 = vunpack.c.l.b16 %v398
      %v501 = vunpack.c.l.b16 %v399
      %v502 = vunpack.c.l.b16 %v400
      %v503 = vunpack.c.l.b16 %v401
      %v504 = vunpack.c.l.b16 %v402
      %v505 = vunpack.c.l.b16 %v403
      %v506 = vunpack.c.l.b16 %v404
      %v507 = vunpack.c.l.b16 %v405
      %v508 = vunpack.c.l.b16 %v406
      %v509 = vunpack.c.l.b16 %v407
      %v510 = vunpack.c.l.b16 %v408
      %v511 = vunpack.c.l.b16 %v409
      %v512 = vunpack.c.l.b16 %v410
      %v513 = vunpack.c.l.b16 %v411
      %v514 = vunpack.c.l.b16 %v412
      %v515 = vunpack.c.l.b16 %v413
      %v516 = vunpack.c.l.b16 %v414
      %v517 = vunpack.c.l.b16 %v415
      %v518 = vunpack.c.l.b16 %v416
      %v519 = vunpack.c.l.b16 %v417
      %v520 = vunpack.c.l.b16 %v418
      %v521 = vunpack.c.l.b16 %v419
      %v522 = vunpack.c.l.b16 %v420
      %v523 = vunpack.c.l.b16 %v421
      %v524 = vunpack.c.l.b16 %v422
      %v525 = vunpack.c.l.b16 %v423
      %v526 = vpack.c.b16 %v486, %v485
      %v527 = vpack.c.b16 %v488, %v487
      %v528 = vpack.c.b16 %v490, %v489
      %v529 = vpack.c.b16 %v492, %v491
      %v530 = vpack.c.b16 %v494, %v493
      %v531 = vpack.c.b16 %v496, %v495
      %v532 = vpack.c.b16 %v498, %v497
      %v533 = vpack.c.b16 %v500, %v499
      %v534 = vpack.c.b16 %v502, %v501
      %v535 = vpack.c.b16 %v504, %v503
      %v536 = vpack.c.b16 %v506, %v505
      %v537 = vpack.c.b16 %v508, %v507
      %v538 = vpack.c.b16 %v510, %v509
      %v539 = vpack.c.b16 %v512, %v511
      %v540 = vpack.c.b16 %v514, %v513
      %v541 = vpack.c.b16 %v516, %v515
      %v542 = vpack.c.b16 %v518, %v517
      %v543 = vpack.c.b16 %v520, %v519
      %v544 = vpack.c.b16 %v522, %v521
      %v545 = vpack.c.b16 %v524, %v523
      %v546 = vpack.c.b16 %v525, %v525
      %v584 = vunpack.c.l.b16 %v424
      %v585 = vunpack.c.l.b16 %v425
      %v586 = vunpack.c.l.b16 %v426
      %v587 = vunpack.c.l.b16 %v427
      %v588 = vunpack.c.l.b16 %v428
      %v589 = vunpack.c.l.b16 %v429
      %v590 = vunpack.c.l.b16 %v430
      %v591 = vunpack.c.l.b16 %v431
      %v592 = vunpack.c.l.b16 %v432
      %v593 = vunpack.c.l.b16 %v433
      %v594 = vunpack.c.l.b16 %v434
      %v595 = vunpack.c.l.b16 %v435
      %v596 = vunpack.c.l.b16 %v436
      %v597 = vunpack.c.l.b16 %v437
      %v598 = vunpack.c.l.b16 %v438
      %v599 = vunpack.c.l.b16 %v439
      %v600 = vpack.c.b16 %v585, %v584
      %v601 = vpack.c.b16 %v587, %v586
      %v602 = vpack.c.b16 %v589, %v588
      %v603 = vpack.c.b16 %v591, %v590
      %v604 = vpack.c.b16 %v593, %v592
      %v605 = vpack.c.b16 %v595, %v594
      %v606 = vpack.c.b16 %v597, %v596
      %v607 = vpack.c.b16 %v599, %v598
      %616 = vmatpush.bf16.msra.mxu0 %v607
      %617 = vmatpush.bf16.msra.mxu0 %v606
      %618 = vmatpush.bf16.msra.mxu0 %v605
      %619 = vmatpush.bf16.msra.mxu0 %v604
      %620 = vmatpush.bf16.msra.mxu0 %v603
      %621 = vmatpush.bf16.msra.mxu0 %v602
      %622 = vmatpush.bf16.msra.mxu0 %v601
      %623 = vmatpush.bf16.msra.mxu0 %v600
      %624 = vmatmul.bf16.gmra.mxu0 %v526
      %v625 = vpop.f32.mrf.mxu0
      %v626 = vadd.f32 %v442, %v625
      %v627 = vpop.f32.mrf.mxu0
      %v628 = vadd.f32 %v442, %v627
      %629 = vmatmul.bf16.gmra.mxu0 %v527
      %v630 = vpop.f32.mrf.mxu0
      %v631 = vadd.f32 %v442, %v630
      %v632 = vpop.f32.mrf.mxu0
      %v633 = vadd.f32 %v442, %v632
      %634 = vmatmul.bf16.gmra.mxu0 %v528
      %v635 = vpop.f32.mrf.mxu0
      %v636 = vadd.f32 %v442, %v635
      %v637 = vpop.f32.mrf.mxu0
      %v638 = vadd.f32 %v442, %v637
      %639 = vmatmul.bf16.gmra.mxu0 %v529
      %v640 = vpop.f32.mrf.mxu0
      %v641 = vadd.f32 %v442, %v640
      %v642 = vpop.f32.mrf.mxu0
      %v643 = vadd.f32 %v442, %v642
      %644 = vmatmul.bf16.gmra.mxu0 %v530
      %v645 = vpop.f32.mrf.mxu0
      %v646 = vadd.f32 %v442, %v645
      %v647 = vpop.f32.mrf.mxu0
      %v648 = vadd.f32 %v442, %v647
      %649 = vmatmul.bf16.gmra.mxu0 %v531
      %v650 = vpop.f32.mrf.mxu0
      %v651 = vadd.f32 %v442, %v650
      %v652 = vpop.f32.mrf.mxu0
      %v653 = vadd.f32 %v442, %v652
      %654 = vmatmul.bf16.gmra.mxu0 %v532
      %v655 = vpop.f32.mrf.mxu0
      %v656 = vadd.f32 %v442, %v655
      %v657 = vpop.f32.mrf.mxu0
      %v658 = vadd.f32 %v442, %v657
      %659 = vmatmul.bf16.gmra.mxu0 %v533
      %v660 = vpop.f32.mrf.mxu0
      %v661 = vadd.f32 %v442, %v660
      %v662 = vpop.f32.mrf.mxu0
      %v663 = vadd.f32 %v442, %v662
      %664 = vmatmul.bf16.gmra.mxu0 %v534
      %v665 = vpop.f32.mrf.mxu0
      %v666 = vadd.f32 %v442, %v665
      %v667 = vpop.f32.mrf.mxu0
      %v668 = vadd.f32 %v442, %v667
      %669 = vmatmul.bf16.gmra.mxu0 %v535
      %v670 = vpop.f32.mrf.mxu0
      %v671 = vadd.f32 %v442, %v670
      %v672 = vpop.f32.mrf.mxu0
      %v673 = vadd.f32 %v442, %v672
      %674 = vmatmul.bf16.gmra.mxu0 %v536
      %v675 = vpop.f32.mrf.mxu0
      %v676 = vadd.f32 %v442, %v675
      %v677 = vpop.f32.mrf.mxu0
      %v678 = vadd.f32 %v442, %v677
      %679 = vmatmul.bf16.gmra.mxu0 %v537
      %v680 = vpop.f32.mrf.mxu0
      %v681 = vadd.f32 %v442, %v680
      %v682 = vpop.f32.mrf.mxu0
      %v683 = vadd.f32 %v442, %v682
      %684 = vmatmul.bf16.gmra.mxu0 %v538
      %v685 = vpop.f32.mrf.mxu0
      %v686 = vadd.f32 %v442, %v685
      %v687 = vpop.f32.mrf.mxu0
      %v688 = vadd.f32 %v442, %v687
      %689 = vmatmul.bf16.gmra.mxu0 %v539
      %v690 = vpop.f32.mrf.mxu0
      %v691 = vadd.f32 %v442, %v690
      %v692 = vpop.f32.mrf.mxu0
      %v693 = vadd.f32 %v442, %v692
      %694 = vmatmul.bf16.gmra.mxu0 %v540
      %v695 = vpop.f32.mrf.mxu0
      %v696 = vadd.f32 %v442, %v695
      %v697 = vpop.f32.mrf.mxu0
      %v698 = vadd.f32 %v442, %v697
      %699 = vmatmul.bf16.gmra.mxu0 %v541
      %v700 = vpop.f32.mrf.mxu0
      %v701 = vadd.f32 %v442, %v700
      %v702 = vpop.f32.mrf.mxu0
      %v703 = vadd.f32 %v442, %v702
      %704 = vmatmul.bf16.gmra.mxu0 %v542
      %v705 = vpop.f32.mrf.mxu0
      %v706 = vadd.f32 %v442, %v705
      %v707 = vpop.f32.mrf.mxu0
      %v708 = vadd.f32 %v442, %v707
      %709 = vmatmul.bf16.gmra.mxu0 %v543
      %v710 = vpop.f32.mrf.mxu0
      %v711 = vadd.f32 %v442, %v710
      %v712 = vpop.f32.mrf.mxu0
      %v713 = vadd.f32 %v442, %v712
      %714 = vmatmul.bf16.gmra.mxu0 %v544
      %v715 = vpop.f32.mrf.mxu0
      %v716 = vadd.f32 %v442, %v715
      %v717 = vpop.f32.mrf.mxu0
      %v718 = vadd.f32 %v442, %v717
      %719 = vmatmul.bf16.gmra.mxu0 %v545
      %v720 = vpop.f32.mrf.mxu0
      %v721 = vadd.f32 %v442, %v720
      %v722 = vpop.f32.mrf.mxu0
      %v723 = vadd.f32 %v442, %v722
      %724 = vmatmul.bf16.gmra.mxu0 %v546
      %v725 = vpop.f32.mrf.mxu0
      %v726 = vadd.f32 %v442, %v725
      %v727 = vpop.f32.mrf.mxu0
      %728 = vdwg.mxu0
      %v729 = vmax.f32 %v626, 0.0
      %v730 = vmax.f32 %v628, 0.0
      %v731 = vmax.f32 %v631, 0.0
      %v732 = vmax.f32 %v633, 0.0
      %v733 = vmax.f32 %v636, 0.0
      %v734 = vmax.f32 %v638, 0.0
      %v735 = vmax.f32 %v641, 0.0
      %v736 = vmax.f32 %v643, 0.0
      %v737 = vmax.f32 %v646, 0.0
      %v738 = vmax.f32 %v648, 0.0
      %v739 = vmax.f32 %v651, 0.0
      %v740 = vmax.f32 %v653, 0.0
      %v741 = vmax.f32 %v656, 0.0
      %v742 = vmax.f32 %v658, 0.0
      %v743 = vmax.f32 %v661, 0.0
      %v744 = vmax.f32 %v663, 0.0
      %v745 = vmax.f32 %v666, 0.0
      %v746 = vmax.f32 %v668, 0.0
      %v747 = vmax.f32 %v671, 0.0
      %v748 = vmax.f32 %v673, 0.0
      %v749 = vmax.f32 %v676, 0.0
      %v750 = vmax.f32 %v678, 0.0
      %v751 = vmax.f32 %v681, 0.0
      %v752 = vmax.f32 %v683, 0.0
      %v753 = vmax.f32 %v686, 0.0
      %v754 = vmax.f32 %v688, 0.0
      %v755 = vmax.f32 %v691, 0.0
      %v756 = vmax.f32 %v693, 0.0
      %v757 = vmax.f32 %v696, 0.0
      %v758 = vmax.f32 %v698, 0.0
      %v759 = vmax.f32 %v701, 0.0
      %v760 = vmax.f32 %v703, 0.0
      %v761 = vmax.f32 %v706, 0.0
      %v762 = vmax.f32 %v708, 0.0
      %v763 = vmax.f32 %v711, 0.0
      %v764 = vmax.f32 %v713, 0.0
      %v765 = vmax.f32 %v716, 0.0
      %v766 = vmax.f32 %v718, 0.0
      %v767 = vmax.f32 %v721, 0.0
      %v768 = vmax.f32 %v723, 0.0
      %v769 = vmax.f32 %v726, 0.0
      %v770 = vld [vmem:[%s1] sm:$0xff]
      %v771 = vld [vmem:[%s1 + $0x8] sm:$0xff]
      %v772 = vld [vmem:[%s1 + $0x10] sm:$0xff]
      %v773 = vld [vmem:[%s1 + $0x18] sm:$0xff]
      %v774 = vld [vmem:[%s1 + $0x20] sm:$0xff]
      %v775 = vld [vmem:[%s1 + $0x28] sm:$0xff]
      %v776 = vld [vmem:[%s1 + $0x30] sm:$0xff]
      %v777 = vld [vmem:[%s1 + $0x38] sm:$0xff]
      %v778 = vld [vmem:[%s1 + $0x40] sm:$0xff]
      %v779 = vld [vmem:[%s1 + $0x48] sm:$0xff]
      %v780 = vld [vmem:[%s1 + $0x50] sm:$0xff]
      %v781 = vld [vmem:[%s1 + $0x58] sm:$0xff]
      %v782 = vld [vmem:[%s1 + $0x60] sm:$0xff]
      %v783 = vld [vmem:[%s1 + $0x68] sm:$0xff]
      %v784 = vld [vmem:[%s1 + $0x70] sm:$0xff]
      %v785 = vld [vmem:[%s1 + $0x78] sm:$0xff]
      %v786 = vld [vmem:[%s1 + $0x80] sm:$0xff]
      %v787 = vld [vmem:[%s1 + $0x88] sm:$0xff]
      %v788 = vld [vmem:[%s1 + $0x90] sm:$0xff]
      %v789 = vld [vmem:[%s1 + $0x98] sm:$0xff]
      %v790 = vld [vmem:[%s1 + $0xa0] sm:$0xff]
      %v791 = vld [vmem:[%s1 + $0xa8] sm:$0xff]
      %v792 = vld [vmem:[%s1 + $0xb0] sm:$0xff]
      %v793 = vld [vmem:[%s1 + $0xb8] sm:$0xff]
      %v794 = vld [vmem:[%s1 + $0xc0] sm:$0xff]
      %v795 = vld [vmem:[%s1 + $0xc8] sm:$0xff]
      %v796 = vld [vmem:[%s1 + $0xd0] sm:$0xff]
      %v797 = vld [vmem:[%s1 + $0xd8] sm:$0xff]
      %v798 = vld [vmem:[%s1 + $0xe0] sm:$0xff]
      %v799 = vld [vmem:[%s1 + $0xe8] sm:$0xff]
      %v800 = vld [vmem:[%s1 + $0xf0] sm:$0xff]
      %v801 = vld [vmem:[%s1 + $0xf8] sm:$0xff]
      %v802 = vld [vmem:[%s1 + $0x100] sm:$0xff]
      %v803 = vld [vmem:[%s1 + $0x108] sm:$0xff]
      %v804 = vld [vmem:[%s1 + $0x110] sm:$0xff]
      %v805 = vld [vmem:[%s1 + $0x118] sm:$0xff]
      %v806 = vld [vmem:[%s1 + $0x120] sm:$0xff]
      %v807 = vld [vmem:[%s1 + $0x128] sm:$0xff]
      %v808 = vld [vmem:[%s1 + $0x130] sm:$0xff]
      %v809 = vld [vmem:[%s1 + $0x138] sm:$0xff]
      %v810 = vld [vmem:[%s1 + $0x140] sm:$0xf]
      %812 = vset.pattern.permute.xlu0 0
      %813 = vperm.xlu0 %812, %v770
      %v814 = vpop.permute.xlu0 %813
      %817 = vset.pattern.permute.xlu0 0
      %818 = vperm.xlu0 %817, %v771
      %v819 = vpop.permute.xlu0 %818
      %822 = vset.pattern.permute.xlu0 0
      %823 = vperm.xlu0 %822, %v772
      %v824 = vpop.permute.xlu0 %823
      %827 = vset.pattern.permute.xlu0 0
      %828 = vperm.xlu0 %827, %v773
      %v829 = vpop.permute.xlu0 %828
      %832 = vset.pattern.permute.xlu0 0
      %833 = vperm.xlu0 %832, %v774
      %v834 = vpop.permute.xlu0 %833
      %837 = vset.pattern.permute.xlu0 0
      %838 = vperm.xlu0 %837, %v775
      %v839 = vpop.permute.xlu0 %838
      %842 = vset.pattern.permute.xlu0 0
      %843 = vperm.xlu0 %842, %v776
      %v844 = vpop.permute.xlu0 %843
      %847 = vset.pattern.permute.xlu0 0
      %848 = vperm.xlu0 %847, %v777
      %v849 = vpop.permute.xlu0 %848
      %852 = vset.pattern.permute.xlu0 0
      %853 = vperm.xlu0 %852, %v778
      %v854 = vpop.permute.xlu0 %853
      %857 = vset.pattern.permute.xlu0 0
      %858 = vperm.xlu0 %857, %v779
      %v859 = vpop.permute.xlu0 %858
      %862 = vset.pattern.permute.xlu0 0
      %863 = vperm.xlu0 %862, %v780
      %v864 = vpop.permute.xlu0 %863
      %867 = vset.pattern.permute.xlu0 0
      %868 = vperm.xlu0 %867, %v781
      %v869 = vpop.permute.xlu0 %868
      %872 = vset.pattern.permute.xlu0 0
      %873 = vperm.xlu0 %872, %v782
      %v874 = vpop.permute.xlu0 %873
      %877 = vset.pattern.permute.xlu0 0
      %878 = vperm.xlu0 %877, %v783
      %v879 = vpop.permute.xlu0 %878
      %882 = vset.pattern.permute.xlu0 0
      %883 = vperm.xlu0 %882, %v784
      %v884 = vpop.permute.xlu0 %883
      %887 = vset.pattern.permute.xlu0 0
      %888 = vperm.xlu0 %887, %v785
      %v889 = vpop.permute.xlu0 %888
      %892 = vset.pattern.permute.xlu0 0
      %893 = vperm.xlu0 %892, %v786
      %v894 = vpop.permute.xlu0 %893
      %897 = vset.pattern.permute.xlu0 0
      %898 = vperm.xlu0 %897, %v787
      %v899 = vpop.permute.xlu0 %898
      %902 = vset.pattern.permute.xlu0 0
      %903 = vperm.xlu0 %902, %v788
      %v904 = vpop.permute.xlu0 %903
      %907 = vset.pattern.permute.xlu0 0
      %908 = vperm.xlu0 %907, %v789
      %v909 = vpop.permute.xlu0 %908
      %912 = vset.pattern.permute.xlu0 0
      %913 = vperm.xlu0 %912, %v790
      %v914 = vpop.permute.xlu0 %913
      %917 = vset.pattern.permute.xlu0 0
      %918 = vperm.xlu0 %917, %v791
      %v919 = vpop.permute.xlu0 %918
      %922 = vset.pattern.permute.xlu0 0
      %923 = vperm.xlu0 %922, %v792
      %v924 = vpop.permute.xlu0 %923
      %927 = vset.pattern.permute.xlu0 0
      %928 = vperm.xlu0 %927, %v793
      %v929 = vpop.permute.xlu0 %928
      %932 = vset.pattern.permute.xlu0 0
      %933 = vperm.xlu0 %932, %v794
      %v934 = vpop.permute.xlu0 %933
      %937 = vset.pattern.permute.xlu0 0
      %938 = vperm.xlu0 %937, %v795
      %v939 = vpop.permute.xlu0 %938
      %942 = vset.pattern.permute.xlu0 0
      %943 = vperm.xlu0 %942, %v796
      %v944 = vpop.permute.xlu0 %943
      %947 = vset.pattern.permute.xlu0 0
      %948 = vperm.xlu0 %947, %v797
      %v949 = vpop.permute.xlu0 %948
      %952 = vset.pattern.permute.xlu0 0
      %953 = vperm.xlu0 %952, %v798
      %v954 = vpop.permute.xlu0 %953
      %957 = vset.pattern.permute.xlu0 0
      %958 = vperm.xlu0 %957, %v799
      %v959 = vpop.permute.xlu0 %958
      %962 = vset.pattern.permute.xlu0 0
      %963 = vperm.xlu0 %962, %v800
      %v964 = vpop.permute.xlu0 %963
      %967 = vset.pattern.permute.xlu0 0
      %968 = vperm.xlu0 %967, %v801
      %v969 = vpop.permute.xlu0 %968
      %972 = vset.pattern.permute.xlu0 0
      %973 = vperm.xlu0 %972, %v802
      %v974 = vpop.permute.xlu0 %973
      %977 = vset.pattern.permute.xlu0 0
      %978 = vperm.xlu0 %977, %v803
      %v979 = vpop.permute.xlu0 %978
      %982 = vset.pattern.permute.xlu0 0
      %983 = vperm.xlu0 %982, %v804
      %v984 = vpop.permute.xlu0 %983
      %987 = vset.pattern.permute.xlu0 0
      %988 = vperm.xlu0 %987, %v805
      %v989 = vpop.permute.xlu0 %988
      %992 = vset.pattern.permute.xlu0 0
      %993 = vperm.xlu0 %992, %v806
      %v994 = vpop.permute.xlu0 %993
      %997 = vset.pattern.permute.xlu0 0
      %998 = vperm.xlu0 %997, %v807
      %v999 = vpop.permute.xlu0 %998
      %1002 = vset.pattern.permute.xlu0 0
      %1003 = vperm.xlu0 %1002, %v808
      %v1004 = vpop.permute.xlu0 %1003
      %1007 = vset.pattern.permute.xlu0 0
      %1008 = vperm.xlu0 %1007, %v809
      %v1009 = vpop.permute.xlu0 %1008
      %1012 = vset.pattern.permute.xlu0 0
      %1013 = vperm.xlu0 %1012, %v810
      %v1014 = vpop.permute.xlu0 %1013
      %v1016 = vmul.f32 %v729, %v814
      %v1017 = vmul.f32 %v730, %v819
      %v1018 = vmul.f32 %v731, %v824
      %v1019 = vmul.f32 %v732, %v829
      %v1020 = vmul.f32 %v733, %v834
      %v1021 = vmul.f32 %v734, %v839
      %v1022 = vmul.f32 %v735, %v844
      %v1023 = vmul.f32 %v736, %v849
      %v1024 = vmul.f32 %v737, %v854
      %v1025 = vmul.f32 %v738, %v859
      %v1026 = vmul.f32 %v739, %v864
      %v1027 = vmul.f32 %v740, %v869
      %v1028 = vmul.f32 %v741, %v874
      %v1029 = vmul.f32 %v742, %v879
      %v1030 = vmul.f32 %v743, %v884
      %v1031 = vmul.f32 %v744, %v889
      %v1032 = vmul.f32 %v745, %v894
      %v1033 = vmul.f32 %v746, %v899
      %v1034 = vmul.f32 %v747, %v904
      %v1035 = vmul.f32 %v748, %v909
      %v1036 = vmul.f32 %v749, %v914
      %v1037 = vmul.f32 %v750, %v919
      %v1038 = vmul.f32 %v751, %v924
      %v1039 = vmul.f32 %v752, %v929
      %v1040 = vmul.f32 %v753, %v934
      %v1041 = vmul.f32 %v754, %v939
      %v1042 = vmul.f32 %v755, %v944
      %v1043 = vmul.f32 %v756, %v949
      %v1044 = vmul.f32 %v757, %v954
      %v1045 = vmul.f32 %v758, %v959
      %v1046 = vmul.f32 %v759, %v964
      %v1047 = vmul.f32 %v760, %v969
      %v1048 = vmul.f32 %v761, %v974
      %v1049 = vmul.f32 %v762, %v979
      %v1050 = vmul.f32 %v763, %v984
      %v1051 = vmul.f32 %v764, %v989
      %v1052 = vmul.f32 %v765, %v994
      %v1053 = vmul.f32 %v766, %v999
      %v1054 = vmul.f32 %v767, %v1004
      %v1055 = vmul.f32 %v768, %v1009
      %v1056 = vmul.f32 %v769, %v1014
      %1057 = vst [vmem:[#allocation2 + $0x18] sm:$0xff] %v1016
      %1058 = vst [vmem:[#allocation2 + $0x20] sm:$0xff] %v1017
      %1059 = vst [vmem:[#allocation2 + $0x28] sm:$0xff] %v1018
      %1060 = vst [vmem:[#allocation2 + $0x30] sm:$0xff] %v1019
      %1061 = vst [vmem:[#allocation2 + $0x38] sm:$0xff] %v1020
      %1062 = vst [vmem:[#allocation2 + $0x40] sm:$0xff] %v1021
      %1063 = vst [vmem:[#allocation2 + $0x48] sm:$0xff] %v1022
      %1064 = vst [vmem:[#allocation2 + $0x50] sm:$0xff] %v1023
      %1065 = vst [vmem:[#allocation2 + $0x58] sm:$0xff] %v1024
      %1066 = vst [vmem:[#allocation2 + $0x60] sm:$0xff] %v1025
      %1067 = vst [vmem:[#allocation2 + $0x68] sm:$0xff] %v1026
      %1068 = vst [vmem:[#allocation2 + $0x70] sm:$0xff] %v1027
      %1069 = vst [vmem:[#allocation2 + $0x78] sm:$0xff] %v1028
      %1070 = vst [vmem:[#allocation2 + $0x80] sm:$0xff] %v1029
      %1071 = vst [vmem:[#allocation2 + $0x88] sm:$0xff] %v1030
      %1072 = vst [vmem:[#allocation2 + $0x90] sm:$0xff] %v1031
      %1073 = vst [vmem:[#allocation2 + $0x98] sm:$0xff] %v1032
      %1074 = vst [vmem:[#allocation2 + $0xa0] sm:$0xff] %v1033
      %1075 = vst [vmem:[#allocation2 + $0xa8] sm:$0xff] %v1034
      %1076 = vst [vmem:[#allocation2 + $0xb0] sm:$0xff] %v1035
      %1077 = vst [vmem:[#allocation2 + $0xb8] sm:$0xff] %v1036
      %1078 = vst [vmem:[#allocation2 + $0xc0] sm:$0xff] %v1037
      %1079 = vst [vmem:[#allocation2 + $0xc8] sm:$0xff] %v1038
      %1080 = vst [vmem:[#allocation2 + $0xd0] sm:$0xff] %v1039
      %1081 = vst [vmem:[#allocation2 + $0xd8] sm:$0xff] %v1040
      %1082 = vst [vmem:[#allocation2 + $0xe0] sm:$0xff] %v1041
      %1083 = vst [vmem:[#allocation2 + $0xe8] sm:$0xff] %v1042
      %1084 = vst [vmem:[#allocation2 + $0xf0] sm:$0xff] %v1043
      %1085 = vst [vmem:[#allocation2 + $0xf8] sm:$0xff] %v1044
      %1086 = vst [vmem:[#allocation2 + $0x100] sm:$0xff] %v1045
      %1087 = vst [vmem:[#allocation2 + $0x108] sm:$0xff] %v1046
      %1088 = vst [vmem:[#allocation2 + $0x110] sm:$0xff] %v1047
      %1089 = vst [vmem:[#allocation2 + $0x118] sm:$0xff] %v1048
      %1090 = vst [vmem:[#allocation2 + $0x120] sm:$0xff] %v1049
      %1091 = vst [vmem:[#allocation2 + $0x128] sm:$0xff] %v1050
      %1092 = vst [vmem:[#allocation2 + $0x130] sm:$0xff] %v1051
      %1093 = vst [vmem:[#allocation2 + $0x138] sm:$0xff] %v1052
      %1094 = vst [vmem:[#allocation2 + $0x140] sm:$0xff] %v1053
      %1095 = vst [vmem:[#allocation2 + $0x148] sm:$0xff] %v1054
      %1096 = vst [vmem:[#allocation2 + $0x150] sm:$0xff] %v1055
      %1097 = vst [vmem:[#allocation2 + $0x158] sm:$0xf] %v1056
      %v1098 = vld [vmem:[#allocation2 + $0x5] sm:$0xff]
      %v1099 = vld [vmem:[#allocation2 + $0xd] sm:$0xff]
      %v1100 = vld [vmem:[#allocation2 + $0x15] sm:$0xff]
      %v1101 = vld [vmem:[#allocation2 + $0x1d] sm:$0xff]
      %v1102 = vld [vmem:[#allocation2 + $0x25] sm:$0xff]
      %v1103 = vld [vmem:[#allocation2 + $0x2d] sm:$0xff]
      %v1104 = vld [vmem:[#allocation2 + $0x35] sm:$0xff]
      %v1105 = vld [vmem:[#allocation2 + $0x3d] sm:$0xff]
      %v1106 = vld [vmem:[#allocation2 + $0x45] sm:$0xff]
      %v1107 = vld [vmem:[#allocation2 + $0x4d] sm:$0xff]
      %v1108 = vld [vmem:[#allocation2 + $0x55] sm:$0xff]
      %v1109 = vld [vmem:[#allocation2 + $0x5d] sm:$0xff]
      %v1110 = vld [vmem:[#allocation2 + $0x65] sm:$0xff]
      %v1111 = vld [vmem:[#allocation2 + $0x6d] sm:$0xff]
      %v1112 = vld [vmem:[#allocation2 + $0x75] sm:$0xff]
      %v1113 = vld [vmem:[#allocation2 + $0x7d] sm:$0xff]
      %v1114 = vld [vmem:[#allocation2 + $0x85] sm:$0xff]
      %v1115 = vld [vmem:[#allocation2 + $0x8d] sm:$0xff]
      %v1116 = vld [vmem:[#allocation2 + $0x95] sm:$0xff]
      %v1117 = vld [vmem:[#allocation2 + $0x9d] sm:$0xff]
      %v1118 = vld [vmem:[#allocation2 + $0xa5] sm:$0xff]
      %v1119 = vld [vmem:[#allocation2 + $0xad] sm:$0xff]
      %v1120 = vld [vmem:[#allocation2 + $0xb5] sm:$0xff]
      %v1121 = vld [vmem:[#allocation2 + $0xbd] sm:$0xff]
      %v1122 = vld [vmem:[#allocation2 + $0xc5] sm:$0xff]
      %v1123 = vld [vmem:[#allocation2 + $0xcd] sm:$0xff]
      %v1124 = vld [vmem:[#allocation2 + $0xd5] sm:$0xff]
      %v1125 = vld [vmem:[#allocation2 + $0xdd] sm:$0xff]
      %v1126 = vld [vmem:[#allocation2 + $0xe5] sm:$0xff]
      %v1127 = vld [vmem:[#allocation2 + $0xed] sm:$0xff]
      %v1128 = vld [vmem:[#allocation2 + $0xf5] sm:$0xff]
      %v1129 = vld [vmem:[#allocation2 + $0xfd] sm:$0xff]
      %v1130 = vld [vmem:[#allocation2 + $0x105] sm:$0xff]
      %v1131 = vld [vmem:[#allocation2 + $0x10d] sm:$0xff]
      %v1132 = vld [vmem:[#allocation2 + $0x115] sm:$0xff]
      %v1133 = vld [vmem:[#allocation2 + $0x11d] sm:$0xff]
      %v1134 = vld [vmem:[#allocation2 + $0x125] sm:$0xff]
      %v1135 = vld [vmem:[#allocation2 + $0x12d] sm:$0xff]
      %v1136 = vld [vmem:[#allocation2 + $0x135] sm:$0xff]
      %v1137 = vld [vmem:[#allocation2 + $0x13d] sm:$0xff]
      %v1138 = vld [vmem:[#allocation2 + $0x145] sm:$0xf]
      %v1139 = vpack.c.bf16 %v1099, %v1098
      %v1140 = vpack.c.bf16 %v1101, %v1100
      %v1141 = vpack.c.bf16 %v1103, %v1102
      %v1142 = vpack.c.bf16 %v1105, %v1104
      %v1143 = vpack.c.bf16 %v1107, %v1106
      %v1144 = vpack.c.bf16 %v1109, %v1108
      %v1145 = vpack.c.bf16 %v1111, %v1110
      %v1146 = vpack.c.bf16 %v1113, %v1112
      %v1147 = vpack.c.bf16 %v1115, %v1114
      %v1148 = vpack.c.bf16 %v1117, %v1116
      %v1149 = vpack.c.bf16 %v1119, %v1118
      %v1150 = vpack.c.bf16 %v1121, %v1120
      %v1151 = vpack.c.bf16 %v1123, %v1122
      %v1152 = vpack.c.bf16 %v1125, %v1124
      %v1153 = vpack.c.bf16 %v1127, %v1126
      %v1154 = vpack.c.bf16 %v1129, %v1128
      %v1155 = vpack.c.bf16 %v1131, %v1130
      %v1156 = vpack.c.bf16 %v1133, %v1132
      %v1157 = vpack.c.bf16 %v1135, %v1134
      %v1158 = vpack.c.bf16 %v1137, %v1136
      %v1159 = vpack.c.bf16 %v1138, %v1138
      %v1160 = vld [vmem:[%s4] sm:$0xf]
      %v1161 = vld [vmem:[%s4 + $0x4] sm:$0xf]
      %v1162 = vld [vmem:[%s4 + $0x8] sm:$0xf]
      %v1163 = vld [vmem:[%s4 + $0xc] sm:$0xf]
      %v1164 = vld [vmem:[%s4 + $0x10] sm:$0xf]
      %v1165 = vld [vmem:[%s4 + $0x14] sm:$0xf]
      %v1166 = vld [vmem:[%s4 + $0x18] sm:$0xf]
      %v1167 = vld [vmem:[%s4 + $0x1c] sm:$0xf]
      %v1168 = vld [vmem:[%s4 + $0x20] sm:$0xf]
      %v1169 = vld [vmem:[%s4 + $0x24] sm:$0xf]
      %v1170 = vld [vmem:[%s4 + $0x28] sm:$0xf]
      %v1171 = vld [vmem:[%s4 + $0x2c] sm:$0xf]
      %v1172 = vld [vmem:[%s4 + $0x30] sm:$0xf]
      %v1173 = vld [vmem:[%s4 + $0x34] sm:$0xf]
      %v1174 = vld [vmem:[%s4 + $0x38] sm:$0xf]
      %v1175 = vld [vmem:[%s4 + $0x3c] sm:$0xf]
      %v1176 = vld [vmem:[#allocation2 + $0x6] sm:$0xff]
      %v1177 = vld [vmem:[#allocation2 + $0xe] sm:$0xff]
      %v1178 = vld [vmem:[#allocation2 + $0x16] sm:$0xff]
      %v1179 = vld [vmem:[#allocation2 + $0x1e] sm:$0xff]
      %v1180 = vld [vmem:[#allocation2 + $0x26] sm:$0xff]
      %v1181 = vld [vmem:[#allocation2 + $0x2e] sm:$0xff]
      %v1182 = vld [vmem:[#allocation2 + $0x36] sm:$0xff]
      %v1183 = vld [vmem:[#allocation2 + $0x3e] sm:$0xff]
      %v1184 = vld [vmem:[#allocation2 + $0x46] sm:$0xff]
      %v1185 = vld [vmem:[#allocation2 + $0x4e] sm:$0xff]
      %v1186 = vld [vmem:[#allocation2 + $0x56] sm:$0xff]
      %v1187 = vld [vmem:[#allocation2 + $0x5e] sm:$0xff]
      %v1188 = vld [vmem:[#allocation2 + $0x66] sm:$0xff]
      %v1189 = vld [vmem:[#allocation2 + $0x6e] sm:$0xff]
      %v1190 = vld [vmem:[#allocation2 + $0x76] sm:$0xff]
      %v1191 = vld [vmem:[#allocation2 + $0x7e] sm:$0xff]
      %v1192 = vld [vmem:[#allocation2 + $0x86] sm:$0xff]
      %v1193 = vld [vmem:[#allocation2 + $0x8e] sm:$0xff]
      %v1194 = vld [vmem:[#allocation2 + $0x96] sm:$0xff]
      %v1195 = vld [vmem:[#allocation2 + $0x9e] sm:$0xff]
      %v1196 = vld [vmem:[#allocation2 + $0xa6] sm:$0xff]
      %v1197 = vld [vmem:[#allocation2 + $0xae] sm:$0xff]
      %v1198 = vld [vmem:[#allocation2 + $0xb6] sm:$0xff]
      %v1199 = vld [vmem:[#allocation2 + $0xbe] sm:$0xff]
      %v1200 = vld [vmem:[#allocation2 + $0xc6] sm:$0xff]
      %v1201 = vld [vmem:[#allocation2 + $0xce] sm:$0xff]
      %v1202 = vld [vmem:[#allocation2 + $0xd6] sm:$0xff]
      %v1203 = vld [vmem:[#allocation2 + $0xde] sm:$0xff]
      %v1204 = vld [vmem:[#allocation2 + $0xe6] sm:$0xff]
      %v1205 = vld [vmem:[#allocation2 + $0xee] sm:$0xff]
      %v1206 = vld [vmem:[#allocation2 + $0xf6] sm:$0xff]
      %v1207 = vld [vmem:[#allocation2 + $0xfe] sm:$0xff]
      %v1208 = vld [vmem:[#allocation2 + $0x106] sm:$0xff]
      %v1209 = vld [vmem:[#allocation2 + $0x10e] sm:$0xff]
      %v1210 = vld [vmem:[#allocation2 + $0x116] sm:$0xff]
      %v1211 = vld [vmem:[#allocation2 + $0x11e] sm:$0xff]
      %v1212 = vld [vmem:[#allocation2 + $0x126] sm:$0xff]
      %v1213 = vld [vmem:[#allocation2 + $0x12e] sm:$0xff]
      %v1214 = vld [vmem:[#allocation2 + $0x136] sm:$0xff]
      %v1215 = vld [vmem:[#allocation2 + $0x13e] sm:$0xff]
      %v1216 = vld [vmem:[#allocation2 + $0x146] sm:$0xf]
      %v1217 = vpack.c.bf16 %v1177, %v1176
      %v1218 = vpack.c.bf16 %v1179, %v1178
      %v1219 = vpack.c.bf16 %v1181, %v1180
      %v1220 = vpack.c.bf16 %v1183, %v1182
      %v1221 = vpack.c.bf16 %v1185, %v1184
      %v1222 = vpack.c.bf16 %v1187, %v1186
      %v1223 = vpack.c.bf16 %v1189, %v1188
      %v1224 = vpack.c.bf16 %v1191, %v1190
      %v1225 = vpack.c.bf16 %v1193, %v1192
      %v1226 = vpack.c.bf16 %v1195, %v1194
      %v1227 = vpack.c.bf16 %v1197, %v1196
      %v1228 = vpack.c.bf16 %v1199, %v1198
      %v1229 = vpack.c.bf16 %v1201, %v1200
      %v1230 = vpack.c.bf16 %v1203, %v1202
      %v1231 = vpack.c.bf16 %v1205, %v1204
      %v1232 = vpack.c.bf16 %v1207, %v1206
      %v1233 = vpack.c.bf16 %v1209, %v1208
      %v1234 = vpack.c.bf16 %v1211, %v1210
      %v1235 = vpack.c.bf16 %v1213, %v1212
      %v1236 = vpack.c.bf16 %v1215, %v1214
      %v1237 = vpack.c.bf16 %v1216, %v1216
      %v1238 = vld [vmem:[%s4 + $0x40] sm:$0xf]
      %v1239 = vld [vmem:[%s4 + $0x44] sm:$0xf]
      %v1240 = vld [vmem:[%s4 + $0x48] sm:$0xf]
      %v1241 = vld [vmem:[%s4 + $0x4c] sm:$0xf]
      %v1242 = vld [vmem:[%s4 + $0x50] sm:$0xf]
      %v1243 = vld [vmem:[%s4 + $0x54] sm:$0xf]
      %v1244 = vld [vmem:[%s4 + $0x58] sm:$0xf]
      %v1245 = vld [vmem:[%s4 + $0x5c] sm:$0xf]
      %v1246 = vld [vmem:[%s4 + $0x60] sm:$0xf]
      %v1247 = vld [vmem:[%s4 + $0x64] sm:$0xf]
      %v1248 = vld [vmem:[%s4 + $0x68] sm:$0xf]
      %v1249 = vld [vmem:[%s4 + $0x6c] sm:$0xf]
      %v1250 = vld [vmem:[%s4 + $0x70] sm:$0xf]
      %v1251 = vld [vmem:[%s4 + $0x74] sm:$0xf]
      %v1252 = vld [vmem:[%s4 + $0x78] sm:$0xf]
      %v1253 = vld [vmem:[%s4 + $0x7c] sm:$0xf]
      %v1270 = vunpack.c.l.b16 %v1238
      %v1271 = vunpack.c.l.b16 %v1239
      %v1272 = vunpack.c.l.b16 %v1240
      %v1273 = vunpack.c.l.b16 %v1241
      %v1274 = vunpack.c.l.b16 %v1242
      %v1275 = vunpack.c.l.b16 %v1243
      %v1276 = vunpack.c.l.b16 %v1244
      %v1277 = vunpack.c.l.b16 %v1245
      %v1278 = vunpack.c.l.b16 %v1246
      %v1279 = vunpack.c.l.b16 %v1247
      %v1280 = vunpack.c.l.b16 %v1248
      %v1281 = vunpack.c.l.b16 %v1249
      %v1282 = vunpack.c.l.b16 %v1250
      %v1283 = vunpack.c.l.b16 %v1251
      %v1284 = vunpack.c.l.b16 %v1252
      %v1285 = vunpack.c.l.b16 %v1253
      %v1286 = vpack.c.b16 %v1271, %v1270
      %v1287 = vpack.c.b16 %v1273, %v1272
      %v1288 = vpack.c.b16 %v1275, %v1274
      %v1289 = vpack.c.b16 %v1277, %v1276
      %v1290 = vpack.c.b16 %v1279, %v1278
      %v1291 = vpack.c.b16 %v1281, %v1280
      %v1292 = vpack.c.b16 %v1283, %v1282
      %v1293 = vpack.c.b16 %v1285, %v1284
      %1302 = vmatpush.bf16.msra.mxu0 %v1293
      %1303 = vmatpush.bf16.msra.mxu0 %v1292
      %1304 = vmatpush.bf16.msra.mxu0 %v1291
      %1305 = vmatpush.bf16.msra.mxu0 %v1290
      %1306 = vmatpush.bf16.msra.mxu0 %v1289
      %1307 = vmatpush.bf16.msra.mxu0 %v1288
      %1308 = vmatpush.bf16.msra.mxu0 %v1287
      %1309 = vmatpush.bf16.msra.mxu0 %v1286
      %1310 = vmatmul.bf16.gmra.mxu0 %v1217
      %v1311 = vpop.f32.mrf.mxu0
      %v1312 = vadd.f32 0.0, %v1311
      %v1313 = vpop.f32.mrf.mxu0
      %v1314 = vadd.f32 0.0, %v1313
      %1315 = vmatmul.bf16.gmra.mxu0 %v1218
      %v1316 = vpop.f32.mrf.mxu0
      %v1317 = vadd.f32 0.0, %v1316
      %v1318 = vpop.f32.mrf.mxu0
      %v1319 = vadd.f32 0.0, %v1318
      %1320 = vmatmul.bf16.gmra.mxu0 %v1219
      %v1321 = vpop.f32.mrf.mxu0
      %v1322 = vadd.f32 0.0, %v1321
      %v1323 = vpop.f32.mrf.mxu0
      %v1324 = vadd.f32 0.0, %v1323
      %1325 = vmatmul.bf16.gmra.mxu0 %v1220
      %v1326 = vpop.f32.mrf.mxu0
      %v1327 = vadd.f32 0.0, %v1326
      %v1328 = vpop.f32.mrf.mxu0
      %v1329 = vadd.f32 0.0, %v1328
      %1330 = vmatmul.bf16.gmra.mxu0 %v1221
      %v1331 = vpop.f32.mrf.mxu0
      %v1332 = vadd.f32 0.0, %v1331
      %v1333 = vpop.f32.mrf.mxu0
      %v1334 = vadd.f32 0.0, %v1333
      %1335 = vmatmul.bf16.gmra.mxu0 %v1222
      %v1336 = vpop.f32.mrf.mxu0
      %v1337 = vadd.f32 0.0, %v1336
      %v1338 = vpop.f32.mrf.mxu0
      %v1339 = vadd.f32 0.0, %v1338
      %1340 = vmatmul.bf16.gmra.mxu0 %v1223
      %v1341 = vpop.f32.mrf.mxu0
      %v1342 = vadd.f32 0.0, %v1341
      %v1343 = vpop.f32.mrf.mxu0
      %v1344 = vadd.f32 0.0, %v1343
      %1345 = vmatmul.bf16.gmra.mxu0 %v1224
      %v1346 = vpop.f32.mrf.mxu0
      %v1347 = vadd.f32 0.0, %v1346
      %v1348 = vpop.f32.mrf.mxu0
      %v1349 = vadd.f32 0.0, %v1348
      %1350 = vmatmul.bf16.gmra.mxu0 %v1225
      %v1351 = vpop.f32.mrf.mxu0
      %v1352 = vadd.f32 0.0, %v1351
      %v1353 = vpop.f32.mrf.mxu0
      %v1354 = vadd.f32 0.0, %v1353
      %1355 = vmatmul.bf16.gmra.mxu0 %v1226
      %v1356 = vpop.f32.mrf.mxu0
      %v1357 = vadd.f32 0.0, %v1356
      %v1358 = vpop.f32.mrf.mxu0
      %v1359 = vadd.f32 0.0, %v1358
      %1360 = vmatmul.bf16.gmra.mxu0 %v1227
      %v1361 = vpop.f32.mrf.mxu0
      %v1362 = vadd.f32 0.0, %v1361
      %v1363 = vpop.f32.mrf.mxu0
      %v1364 = vadd.f32 0.0, %v1363
      %1365 = vmatmul.bf16.gmra.mxu0 %v1228
      %v1366 = vpop.f32.mrf.mxu0
      %v1367 = vadd.f32 0.0, %v1366
      %v1368 = vpop.f32.mrf.mxu0
      %v1369 = vadd.f32 0.0, %v1368
      %1370 = vmatmul.bf16.gmra.mxu0 %v1229
      %v1371 = vpop.f32.mrf.mxu0
      %v1372 = vadd.f32 0.0, %v1371
      %v1373 = vpop.f32.mrf.mxu0
      %v1374 = vadd.f32 0.0, %v1373
      %1375 = vmatmul.bf16.gmra.mxu0 %v1230
      %v1376 = vpop.f32.mrf.mxu0
      %v1377 = vadd.f32 0.0, %v1376
      %v1378 = vpop.f32.mrf.mxu0
      %v1379 = vadd.f32 0.0, %v1378
      %1380 = vmatmul.bf16.gmra.mxu0 %v1231
      %v1381 = vpop.f32.mrf.mxu0
      %v1382 = vadd.f32 0.0, %v1381
      %v1383 = vpop.f32.mrf.mxu0
      %v1384 = vadd.f32 0.0, %v1383
      %1385 = vmatmul.bf16.gmra.mxu0 %v1232
      %v1386 = vpop.f32.mrf.mxu0
      %v1387 = vadd.f32 0.0, %v1386
      %v1388 = vpop.f32.mrf.mxu0
      %v1389 = vadd.f32 0.0, %v1388
      %1390 = vmatmul.bf16.gmra.mxu0 %v1233
      %v1391 = vpop.f32.mrf.mxu0
      %v1392 = vadd.f32 0.0, %v1391
      %v1393 = vpop.f32.mrf.mxu0
      %v1394 = vadd.f32 0.0, %v1393
      %1395 = vmatmul.bf16.gmra.mxu0 %v1234
      %v1396 = vpop.f32.mrf.mxu0
      %v1397 = vadd.f32 0.0, %v1396
      %v1398 = vpop.f32.mrf.mxu0
      %v1399 = vadd.f32 0.0, %v1398
      %1400 = vmatmul.bf16.gmra.mxu0 %v1235
      %v1401 = vpop.f32.mrf.mxu0
      %v1402 = vadd.f32 0.0, %v1401
      %v1403 = vpop.f32.mrf.mxu0
      %v1404 = vadd.f32 0.0, %v1403
      %1405 = vmatmul.bf16.gmra.mxu0 %v1236
      %v1406 = vpop.f32.mrf.mxu0
      %v1407 = vadd.f32 0.0, %v1406
      %v1408 = vpop.f32.mrf.mxu0
      %v1409 = vadd.f32 0.0, %v1408
      %1410 = vmatmul.bf16.gmra.mxu0 %v1237
      %v1411 = vpop.f32.mrf.mxu0
      %v1412 = vadd.f32 0.0, %v1411
      %v1413 = vpop.f32.mrf.mxu0
      %1414 = vdwg.mxu0
      %v1431 = vunpack.c.l.b16 %v1160
      %v1432 = vunpack.c.l.b16 %v1161
      %v1433 = vunpack.c.l.b16 %v1162
      %v1434 = vunpack.c.l.b16 %v1163
      %v1435 = vunpack.c.l.b16 %v1164
      %v1436 = vunpack.c.l.b16 %v1165
      %v1437 = vunpack.c.l.b16 %v1166
      %v1438 = vunpack.c.l.b16 %v1167
      %v1439 = vunpack.c.l.b16 %v1168
      %v1440 = vunpack.c.l.b16 %v1169
      %v1441 = vunpack.c.l.b16 %v1170
      %v1442 = vunpack.c.l.b16 %v1171
      %v1443 = vunpack.c.l.b16 %v1172
      %v1444 = vunpack.c.l.b16 %v1173
      %v1445 = vunpack.c.l.b16 %v1174
      %v1446 = vunpack.c.l.b16 %v1175
      %v1447 = vpack.c.b16 %v1432, %v1431
      %v1448 = vpack.c.b16 %v1434, %v1433
      %v1449 = vpack.c.b16 %v1436, %v1435
      %v1450 = vpack.c.b16 %v1438, %v1437
      %v1451 = vpack.c.b16 %v1440, %v1439
      %v1452 = vpack.c.b16 %v1442, %v1441
      %v1453 = vpack.c.b16 %v1444, %v1443
      %v1454 = vpack.c.b16 %v1446, %v1445
      %1463 = vmatpush.bf16.msra.mxu0 %v1454
      %1464 = vmatpush.bf16.msra.mxu0 %v1453
      %1465 = vmatpush.bf16.msra.mxu0 %v1452
      %1466 = vmatpush.bf16.msra.mxu0 %v1451
      %1467 = vmatpush.bf16.msra.mxu0 %v1450
      %1468 = vmatpush.bf16.msra.mxu0 %v1449
      %1469 = vmatpush.bf16.msra.mxu0 %v1448
      %1470 = vmatpush.bf16.msra.mxu0 %v1447
      %1471 = vmatmul.bf16.gmra.mxu0 %v1139
      %v1472 = vpop.f32.mrf.mxu0
      %v1473 = vadd.f32 %v1312, %v1472
      %v1474 = vpop.f32.mrf.mxu0
      %v1475 = vadd.f32 %v1314, %v1474
      %1476 = vmatmul.bf16.gmra.mxu0 %v1140
      %v1477 = vpop.f32.mrf.mxu0
      %v1478 = vadd.f32 %v1317, %v1477
      %v1479 = vpop.f32.mrf.mxu0
      %v1480 = vadd.f32 %v1319, %v1479
      %1481 = vmatmul.bf16.gmra.mxu0 %v1141
      %v1482 = vpop.f32.mrf.mxu0
      %v1483 = vadd.f32 %v1322, %v1482
      %v1484 = vpop.f32.mrf.mxu0
      %v1485 = vadd.f32 %v1324, %v1484
      %1486 = vmatmul.bf16.gmra.mxu0 %v1142
      %v1487 = vpop.f32.mrf.mxu0
      %v1488 = vadd.f32 %v1327, %v1487
      %v1489 = vpop.f32.mrf.mxu0
      %v1490 = vadd.f32 %v1329, %v1489
      %1491 = vmatmul.bf16.gmra.mxu0 %v1143
      %v1492 = vpop.f32.mrf.mxu0
      %v1493 = vadd.f32 %v1332, %v1492
      %v1494 = vpop.f32.mrf.mxu0
      %v1495 = vadd.f32 %v1334, %v1494
      %1496 = vmatmul.bf16.gmra.mxu0 %v1144
      %v1497 = vpop.f32.mrf.mxu0
      %v1498 = vadd.f32 %v1337, %v1497
      %v1499 = vpop.f32.mrf.mxu0
      %v1500 = vadd.f32 %v1339, %v1499
      %1501 = vmatmul.bf16.gmra.mxu0 %v1145
      %v1502 = vpop.f32.mrf.mxu0
      %v1503 = vadd.f32 %v1342, %v1502
      %v1504 = vpop.f32.mrf.mxu0
      %v1505 = vadd.f32 %v1344, %v1504
      %1506 = vmatmul.bf16.gmra.mxu0 %v1146
      %v1507 = vpop.f32.mrf.mxu0
      %v1508 = vadd.f32 %v1347, %v1507
      %v1509 = vpop.f32.mrf.mxu0
      %v1510 = vadd.f32 %v1349, %v1509
      %1511 = vmatmul.bf16.gmra.mxu0 %v1147
      %v1512 = vpop.f32.mrf.mxu0
      %v1513 = vadd.f32 %v1352, %v1512
      %v1514 = vpop.f32.mrf.mxu0
      %v1515 = vadd.f32 %v1354, %v1514
      %1516 = vmatmul.bf16.gmra.mxu0 %v1148
      %v1517 = vpop.f32.mrf.mxu0
      %v1518 = vadd.f32 %v1357, %v1517
      %v1519 = vpop.f32.mrf.mxu0
      %v1520 = vadd.f32 %v1359, %v1519
      %1521 = vmatmul.bf16.gmra.mxu0 %v1149
      %v1522 = vpop.f32.mrf.mxu0
      %v1523 = vadd.f32 %v1362, %v1522
      %v1524 = vpop.f32.mrf.mxu0
      %v1525 = vadd.f32 %v1364, %v1524
      %1526 = vmatmul.bf16.gmra.mxu0 %v1150
      %v1527 = vpop.f32.mrf.mxu0
      %v1528 = vadd.f32 %v1367, %v1527
      %v1529 = vpop.f32.mrf.mxu0
      %v1530 = vadd.f32 %v1369, %v1529
      %1531 = vmatmul.bf16.gmra.mxu0 %v1151
      %v1532 = vpop.f32.mrf.mxu0
      %v1533 = vadd.f32 %v1372, %v1532
      %v1534 = vpop.f32.mrf.mxu0
      %v1535 = vadd.f32 %v1374, %v1534
      %1536 = vmatmul.bf16.gmra.mxu0 %v1152
      %v1537 = vpop.f32.mrf.mxu0
      %v1538 = vadd.f32 %v1377, %v1537
      %v1539 = vpop.f32.mrf.mxu0
      %v1540 = vadd.f32 %v1379, %v1539
      %1541 = vmatmul.bf16.gmra.mxu0 %v1153
      %v1542 = vpop.f32.mrf.mxu0
      %v1543 = vadd.f32 %v1382, %v1542
      %v1544 = vpop.f32.mrf.mxu0
      %v1545 = vadd.f32 %v1384, %v1544
      %1546 = vmatmul.bf16.gmra.mxu0 %v1154
      %v1547 = vpop.f32.mrf.mxu0
      %v1548 = vadd.f32 %v1387, %v1547
      %v1549 = vpop.f32.mrf.mxu0
      %v1550 = vadd.f32 %v1389, %v1549
      %1551 = vmatmul.bf16.gmra.mxu0 %v1155
      %v1552 = vpop.f32.mrf.mxu0
      %v1553 = vadd.f32 %v1392, %v1552
      %v1554 = vpop.f32.mrf.mxu0
      %v1555 = vadd.f32 %v1394, %v1554
      %1556 = vmatmul.bf16.gmra.mxu0 %v1156
      %v1557 = vpop.f32.mrf.mxu0
      %v1558 = vadd.f32 %v1397, %v1557
      %v1559 = vpop.f32.mrf.mxu0
      %v1560 = vadd.f32 %v1399, %v1559
      %1561 = vmatmul.bf16.gmra.mxu0 %v1157
      %v1562 = vpop.f32.mrf.mxu0
      %v1563 = vadd.f32 %v1402, %v1562
      %v1564 = vpop.f32.mrf.mxu0
      %v1565 = vadd.f32 %v1404, %v1564
      %1566 = vmatmul.bf16.gmra.mxu0 %v1158
      %v1567 = vpop.f32.mrf.mxu0
      %v1568 = vadd.f32 %v1407, %v1567
      %v1569 = vpop.f32.mrf.mxu0
      %v1570 = vadd.f32 %v1409, %v1569
      %1571 = vmatmul.bf16.gmra.mxu0 %v1159
      %v1572 = vpop.f32.mrf.mxu0
      %v1573 = vadd.f32 %v1412, %v1572
      %v1574 = vpop.f32.mrf.mxu0
      %1575 = vdwg.mxu0
      %v1576 = vld [vmem:[#allocation2 + $0x7] sm:$0xff]
      %v1577 = vld [vmem:[#allocation2 + $0xf] sm:$0xff]
      %v1578 = vld [vmem:[#allocation2 + $0x17] sm:$0xff]
      %v1579 = vld [vmem:[#allocation2 + $0x1f] sm:$0xff]
      %v1580 = vld [vmem:[#allocation2 + $0x27] sm:$0xff]
      %v1581 = vld [vmem:[#allocation2 + $0x2f] sm:$0xff]
      %v1582 = vld [vmem:[#allocation2 + $0x37] sm:$0xff]
      %v1583 = vld [vmem:[#allocation2 + $0x3f] sm:$0xff]
      %v1584 = vld [vmem:[#allocation2 + $0x47] sm:$0xff]
      %v1585 = vld [vmem:[#allocation2 + $0x4f] sm:$0xff]
      %v1586 = vld [vmem:[#allocation2 + $0x57] sm:$0xff]
      %v1587 = vld [vmem:[#allocation2 + $0x5f] sm:$0xff]
      %v1588 = vld [vmem:[#allocation2 + $0x67] sm:$0xff]
      %v1589 = vld [vmem:[#allocation2 + $0x6f] sm:$0xff]
      %v1590 = vld [vmem:[#allocation2 + $0x77] sm:$0xff]
      %v1591 = vld [vmem:[#allocation2 + $0x7f] sm:$0xff]
      %v1592 = vld [vmem:[#allocation2 + $0x87] sm:$0xff]
      %v1593 = vld [vmem:[#allocation2 + $0x8f] sm:$0xff]
      %v1594 = vld [vmem:[#allocation2 + $0x97] sm:$0xff]
      %v1595 = vld [vmem:[#allocation2 + $0x9f] sm:$0xff]
      %v1596 = vld [vmem:[#allocation2 + $0xa7] sm:$0xff]
      %v1597 = vld [vmem:[#allocation2 + $0xaf] sm:$0xff]
      %v1598 = vld [vmem:[#allocation2 + $0xb7] sm:$0xff]
      %v1599 = vld [vmem:[#allocation2 + $0xbf] sm:$0xff]
      %v1600 = vld [vmem:[#allocation2 + $0xc7] sm:$0xff]
      %v1601 = vld [vmem:[#allocation2 + $0xcf] sm:$0xff]
      %v1602 = vld [vmem:[#allocation2 + $0xd7] sm:$0xff]
      %v1603 = vld [vmem:[#allocation2 + $0xdf] sm:$0xff]
      %v1604 = vld [vmem:[#allocation2 + $0xe7] sm:$0xff]
      %v1605 = vld [vmem:[#allocation2 + $0xef] sm:$0xff]
      %v1606 = vld [vmem:[#allocation2 + $0xf7] sm:$0xff]
      %v1607 = vld [vmem:[#allocation2 + $0xff] sm:$0xff]
      %v1608 = vld [vmem:[#allocation2 + $0x107] sm:$0xff]
      %v1609 = vld [vmem:[#allocation2 + $0x10f] sm:$0xff]
      %v1610 = vld [vmem:[#allocation2 + $0x117] sm:$0xff]
      %v1611 = vld [vmem:[#allocation2 + $0x11f] sm:$0xff]
      %v1612 = vld [vmem:[#allocation2 + $0x127] sm:$0xff]
      %v1613 = vld [vmem:[#allocation2 + $0x12f] sm:$0xff]
      %v1614 = vld [vmem:[#allocation2 + $0x137] sm:$0xff]
      %v1615 = vld [vmem:[#allocation2 + $0x13f] sm:$0xff]
      %v1616 = vld [vmem:[#allocation2 + $0x147] sm:$0xf]
      %v1617 = vpack.c.bf16 %v1577, %v1576
      %v1618 = vpack.c.bf16 %v1579, %v1578
      %v1619 = vpack.c.bf16 %v1581, %v1580
      %v1620 = vpack.c.bf16 %v1583, %v1582
      %v1621 = vpack.c.bf16 %v1585, %v1584
      %v1622 = vpack.c.bf16 %v1587, %v1586
      %v1623 = vpack.c.bf16 %v1589, %v1588
      %v1624 = vpack.c.bf16 %v1591, %v1590
      %v1625 = vpack.c.bf16 %v1593, %v1592
      %v1626 = vpack.c.bf16 %v1595, %v1594
      %v1627 = vpack.c.bf16 %v1597, %v1596
      %v1628 = vpack.c.bf16 %v1599, %v1598
      %v1629 = vpack.c.bf16 %v1601, %v1600
      %v1630 = vpack.c.bf16 %v1603, %v1602
      %v1631 = vpack.c.bf16 %v1605, %v1604
      %v1632 = vpack.c.bf16 %v1607, %v1606
      %v1633 = vpack.c.bf16 %v1609, %v1608
      %v1634 = vpack.c.bf16 %v1611, %v1610
      %v1635 = vpack.c.bf16 %v1613, %v1612
      %v1636 = vpack.c.bf16 %v1615, %v1614
      %v1637 = vpack.c.bf16 %v1616, %v1616
      %v1638 = vld [vmem:[%s4 + $0x80] sm:$0xf]
      %v1639 = vld [vmem:[%s4 + $0x84] sm:$0xf]
      %v1640 = vld [vmem:[%s4 + $0x88] sm:$0xf]
      %v1641 = vld [vmem:[%s4 + $0x8c] sm:$0xf]
      %v1642 = vld [vmem:[%s4 + $0x90] sm:$0xf]
      %v1643 = vld [vmem:[%s4 + $0x94] sm:$0xf]
      %v1644 = vld [vmem:[%s4 + $0x98] sm:$0xf]
      %v1645 = vld [vmem:[%s4 + $0x9c] sm:$0xf]
      %v1646 = vld [vmem:[%s4 + $0xa0] sm:$0xf]
      %v1647 = vld [vmem:[%s4 + $0xa4] sm:$0xf]
      %v1648 = vld [vmem:[%s4 + $0xa8] sm:$0xf]
      %v1649 = vld [vmem:[%s4 + $0xac] sm:$0xf]
      %v1650 = vld [vmem:[%s4 + $0xb0] sm:$0xf]
      %v1651 = vld [vmem:[%s4 + $0xb4] sm:$0xf]
      %v1652 = vld [vmem:[%s4 + $0xb8] sm:$0xf]
      %v1653 = vld [vmem:[%s4 + $0xbc] sm:$0xf]
      %v1670 = vunpack.c.l.b16 %v1638
      %v1671 = vunpack.c.l.b16 %v1639
      %v1672 = vunpack.c.l.b16 %v1640
      %v1673 = vunpack.c.l.b16 %v1641
      %v1674 = vunpack.c.l.b16 %v1642
      %v1675 = vunpack.c.l.b16 %v1643
      %v1676 = vunpack.c.l.b16 %v1644
      %v1677 = vunpack.c.l.b16 %v1645
      %v1678 = vunpack.c.l.b16 %v1646
      %v1679 = vunpack.c.l.b16 %v1647
      %v1680 = vunpack.c.l.b16 %v1648
      %v1681 = vunpack.c.l.b16 %v1649
      %v1682 = vunpack.c.l.b16 %v1650
      %v1683 = vunpack.c.l.b16 %v1651
      %v1684 = vunpack.c.l.b16 %v1652
      %v1685 = vunpack.c.l.b16 %v1653
      %v1686 = vpack.c.b16 %v1671, %v1670
      %v1687 = vpack.c.b16 %v1673, %v1672
      %v1688 = vpack.c.b16 %v1675, %v1674
      %v1689 = vpack.c.b16 %v1677, %v1676
      %v1690 = vpack.c.b16 %v1679, %v1678
      %v1691 = vpack.c.b16 %v1681, %v1680
      %v1692 = vpack.c.b16 %v1683, %v1682
      %v1693 = vpack.c.b16 %v1685, %v1684
      %1702 = vmatpush.bf16.msra.mxu0 %v1693
      %1703 = vmatpush.bf16.msra.mxu0 %v1692
      %1704 = vmatpush.bf16.msra.mxu0 %v1691
      %1705 = vmatpush.bf16.msra.mxu0 %v1690
      %1706 = vmatpush.bf16.msra.mxu0 %v1689
      %1707 = vmatpush.bf16.msra.mxu0 %v1688
      %1708 = vmatpush.bf16.msra.mxu0 %v1687
      %1709 = vmatpush.bf16.msra.mxu0 %v1686
      %1710 = vmatmul.bf16.gmra.mxu0 %v1617
      %v1711 = vpop.f32.mrf.mxu0
      %v1712 = vadd.f32 0.0, %v1711
      %v1713 = vpop.f32.mrf.mxu0
      %v1714 = vadd.f32 0.0, %v1713
      %1715 = vmatmul.bf16.gmra.mxu0 %v1618
      %v1716 = vpop.f32.mrf.mxu0
      %v1717 = vadd.f32 0.0, %v1716
      %v1718 = vpop.f32.mrf.mxu0
      %v1719 = vadd.f32 0.0, %v1718
      %1720 = vmatmul.bf16.gmra.mxu0 %v1619
      %v1721 = vpop.f32.mrf.mxu0
      %v1722 = vadd.f32 0.0, %v1721
      %v1723 = vpop.f32.mrf.mxu0
      %v1724 = vadd.f32 0.0, %v1723
      %1725 = vmatmul.bf16.gmra.mxu0 %v1620
      %v1726 = vpop.f32.mrf.mxu0
      %v1727 = vadd.f32 0.0, %v1726
      %v1728 = vpop.f32.mrf.mxu0
      %v1729 = vadd.f32 0.0, %v1728
      %1730 = vmatmul.bf16.gmra.mxu0 %v1621
      %v1731 = vpop.f32.mrf.mxu0
      %v1732 = vadd.f32 0.0, %v1731
      %v1733 = vpop.f32.mrf.mxu0
      %v1734 = vadd.f32 0.0, %v1733
      %1735 = vmatmul.bf16.gmra.mxu0 %v1622
      %v1736 = vpop.f32.mrf.mxu0
      %v1737 = vadd.f32 0.0, %v1736
      %v1738 = vpop.f32.mrf.mxu0
      %v1739 = vadd.f32 0.0, %v1738
      %1740 = vmatmul.bf16.gmra.mxu0 %v1623
      %v1741 = vpop.f32.mrf.mxu0
      %v1742 = vadd.f32 0.0, %v1741
      %v1743 = vpop.f32.mrf.mxu0
      %v1744 = vadd.f32 0.0, %v1743
      %1745 = vmatmul.bf16.gmra.mxu0 %v1624
      %v1746 = vpop.f32.mrf.mxu0
      %v1747 = vadd.f32 0.0, %v1746
      %v1748 = vpop.f32.mrf.mxu0
      %v1749 = vadd.f32 0.0, %v1748
      %1750 = vmatmul.bf16.gmra.mxu0 %v1625
      %v1751 = vpop.f32.mrf.mxu0
      %v1752 = vadd.f32 0.0, %v1751
      %v1753 = vpop.f32.mrf.mxu0
      %v1754 = vadd.f32 0.0, %v1753
      %1755 = vmatmul.bf16.gmra.mxu0 %v1626
      %v1756 = vpop.f32.mrf.mxu0
      %v1757 = vadd.f32 0.0, %v1756
      %v1758 = vpop.f32.mrf.mxu0
      %v1759 = vadd.f32 0.0, %v1758
      %1760 = vmatmul.bf16.gmra.mxu0 %v1627
      %v1761 = vpop.f32.mrf.mxu0
      %v1762 = vadd.f32 0.0, %v1761
      %v1763 = vpop.f32.mrf.mxu0
      %v1764 = vadd.f32 0.0, %v1763
      %1765 = vmatmul.bf16.gmra.mxu0 %v1628
      %v1766 = vpop.f32.mrf.mxu0
      %v1767 = vadd.f32 0.0, %v1766
      %v1768 = vpop.f32.mrf.mxu0
      %v1769 = vadd.f32 0.0, %v1768
      %1770 = vmatmul.bf16.gmra.mxu0 %v1629
      %v1771 = vpop.f32.mrf.mxu0
      %v1772 = vadd.f32 0.0, %v1771
      %v1773 = vpop.f32.mrf.mxu0
      %v1774 = vadd.f32 0.0, %v1773
      %1775 = vmatmul.bf16.gmra.mxu0 %v1630
      %v1776 = vpop.f32.mrf.mxu0
      %v1777 = vadd.f32 0.0, %v1776
      %v1778 = vpop.f32.mrf.mxu0
      %v1779 = vadd.f32 0.0, %v1778
      %1780 = vmatmul.bf16.gmra.mxu0 %v1631
      %v1781 = vpop.f32.mrf.mxu0
      %v1782 = vadd.f32 0.0, %v1781
      %v1783 = vpop.f32.mrf.mxu0
      %v1784 = vadd.f32 0.0, %v1783
      %1785 = vmatmul.bf16.gmra.mxu0 %v1632
      %v1786 = vpop.f32.mrf.mxu0
      %v1787 = vadd.f32 0.0, %v1786
      %v1788 = vpop.f32.mrf.mxu0
      %v1789 = vadd.f32 0.0, %v1788
      %1790 = vmatmul.bf16.gmra.mxu0 %v1633
      %v1791 = vpop.f32.mrf.mxu0
      %v1792 = vadd.f32 0.0, %v1791
      %v1793 = vpop.f32.mrf.mxu0
      %v1794 = vadd.f32 0.0, %v1793
      %1795 = vmatmul.bf16.gmra.mxu0 %v1634
      %v1796 = vpop.f32.mrf.mxu0
      %v1797 = vadd.f32 0.0, %v1796
      %v1798 = vpop.f32.mrf.mxu0
      %v1799 = vadd.f32 0.0, %v1798
      %1800 = vmatmul.bf16.gmra.mxu0 %v1635
      %v1801 = vpop.f32.mrf.mxu0
      %v1802 = vadd.f32 0.0, %v1801
      %v1803 = vpop.f32.mrf.mxu0
      %v1804 = vadd.f32 0.0, %v1803
      %1805 = vmatmul.bf16.gmra.mxu0 %v1636
      %v1806 = vpop.f32.mrf.mxu0
      %v1807 = vadd.f32 0.0, %v1806
      %v1808 = vpop.f32.mrf.mxu0
      %v1809 = vadd.f32 0.0, %v1808
      %1810 = vmatmul.bf16.gmra.mxu0 %v1637
      %v1811 = vpop.f32.mrf.mxu0
      %v1812 = vadd.f32 0.0, %v1811
      %v1813 = vpop.f32.mrf.mxu0
      %1814 = vdwg.mxu0
      %v1815 = vadd.f32 %v1473, %v1712
      %v1816 = vadd.f32 %v1475, %v1714
      %v1817 = vadd.f32 %v1478, %v1717
      %v1818 = vadd.f32 %v1480, %v1719
      %v1819 = vadd.f32 %v1483, %v1722
      %v1820 = vadd.f32 %v1485, %v1724
      %v1821 = vadd.f32 %v1488, %v1727
      %v1822 = vadd.f32 %v1490, %v1729
      %v1823 = vadd.f32 %v1493, %v1732
      %v1824 = vadd.f32 %v1495, %v1734
      %v1825 = vadd.f32 %v1498, %v1737
      %v1826 = vadd.f32 %v1500, %v1739
      %v1827 = vadd.f32 %v1503, %v1742
      %v1828 = vadd.f32 %v1505, %v1744
      %v1829 = vadd.f32 %v1508, %v1747
      %v1830 = vadd.f32 %v1510, %v1749
      %v1831 = vadd.f32 %v1513, %v1752
      %v1832 = vadd.f32 %v1515, %v1754
      %v1833 = vadd.f32 %v1518, %v1757
      %v1834 = vadd.f32 %v1520, %v1759
      %v1835 = vadd.f32 %v1523, %v1762
      %v1836 = vadd.f32 %v1525, %v1764
      %v1837 = vadd.f32 %v1528, %v1767
      %v1838 = vadd.f32 %v1530, %v1769
      %v1839 = vadd.f32 %v1533, %v1772
      %v1840 = vadd.f32 %v1535, %v1774
      %v1841 = vadd.f32 %v1538, %v1777
      %v1842 = vadd.f32 %v1540, %v1779
      %v1843 = vadd.f32 %v1543, %v1782
      %v1844 = vadd.f32 %v1545, %v1784
      %v1845 = vadd.f32 %v1548, %v1787
      %v1846 = vadd.f32 %v1550, %v1789
      %v1847 = vadd.f32 %v1553, %v1792
      %v1848 = vadd.f32 %v1555, %v1794
      %v1849 = vadd.f32 %v1558, %v1797
      %v1850 = vadd.f32 %v1560, %v1799
      %v1851 = vadd.f32 %v1563, %v1802
      %v1852 = vadd.f32 %v1565, %v1804
      %v1853 = vadd.f32 %v1568, %v1807
      %v1854 = vadd.f32 %v1570, %v1809
      %v1855 = vadd.f32 %v1573, %v1812
      %v1856 = vld [vmem:[#allocation2 + $0x17] sm:$0xff]
      %v1857 = vld [vmem:[#allocation2 + $0x1f] sm:$0xff]
      %v1858 = vld [vmem:[#allocation2 + $0x27] sm:$0xff]
      %v1859 = vld [vmem:[#allocation2 + $0x2f] sm:$0xff]
      %v1860 = vld [vmem:[#allocation2 + $0x37] sm:$0xff]
      %v1861 = vld [vmem:[#allocation2 + $0x3f] sm:$0xff]
      %v1862 = vld [vmem:[#allocation2 + $0x47] sm:$0xff]
      %v1863 = vld [vmem:[#allocation2 + $0x4f] sm:$0xff]
      %v1864 = vld [vmem:[#allocation2 + $0x57] sm:$0xff]
      %v1865 = vld [vmem:[#allocation2 + $0x5f] sm:$0xff]
      %v1866 = vld [vmem:[#allocation2 + $0x67] sm:$0xff]
      %v1867 = vld [vmem:[#allocation2 + $0x6f] sm:$0xff]
      %v1868 = vld [vmem:[#allocation2 + $0x77] sm:$0xff]
      %v1869 = vld [vmem:[#allocation2 + $0x7f] sm:$0xff]
      %v1870 = vld [vmem:[#allocation2 + $0x87] sm:$0xff]
      %v1871 = vld [vmem:[#allocation2 + $0x8f] sm:$0xff]
      %v1872 = vld [vmem:[#allocation2 + $0x97] sm:$0xff]
      %v1873 = vld [vmem:[#allocation2 + $0x9f] sm:$0xff]
      %v1874 = vld [vmem:[#allocation2 + $0xa7] sm:$0xff]
      %v1875 = vld [vmem:[#allocation2 + $0xaf] sm:$0xff]
      %v1876 = vld [vmem:[#allocation2 + $0xb7] sm:$0xff]
      %v1877 = vld [vmem:[#allocation2 + $0xbf] sm:$0xff]
      %v1878 = vld [vmem:[#allocation2 + $0xc7] sm:$0xff]
      %v1879 = vld [vmem:[#allocation2 + $0xcf] sm:$0xff]
      %v1880 = vld [vmem:[#allocation2 + $0xd7] sm:$0xff]
      %v1881 = vld [vmem:[#allocation2 + $0xdf] sm:$0xff]
      %v1882 = vld [vmem:[#allocation2 + $0xe7] sm:$0xff]
      %v1883 = vld [vmem:[#allocation2 + $0xef] sm:$0xff]
      %v1884 = vld [vmem:[#allocation2 + $0xf7] sm:$0xff]
      %v1885 = vld [vmem:[#allocation2 + $0xff] sm:$0xff]
      %v1886 = vld [vmem:[#allocation2 + $0x107] sm:$0xff]
      %v1887 = vld [vmem:[#allocation2 + $0x10f] sm:$0xff]
      %v1888 = vld [vmem:[#allocation2 + $0x117] sm:$0xff]
      %v1889 = vld [vmem:[#allocation2 + $0x11f] sm:$0xff]
      %v1890 = vld [vmem:[#allocation2 + $0x127] sm:$0xff]
      %v1891 = vld [vmem:[#allocation2 + $0x12f] sm:$0xff]
      %v1892 = vld [vmem:[#allocation2 + $0x137] sm:$0xff]
      %v1893 = vld [vmem:[#allocation2 + $0x13f] sm:$0xff]
      %v1894 = vld [vmem:[#allocation2 + $0x147] sm:$0xff]
      %v1895 = vld [vmem:[#allocation2 + $0x14f] sm:$0xff]
      %v1896 = vld [vmem:[#allocation2 + $0x157] sm:$0xf]
      %v1897 = vpack.c.bf16 %v1857, %v1856
      %v1898 = vpack.c.bf16 %v1859, %v1858
      %v1899 = vpack.c.bf16 %v1861, %v1860
      %v1900 = vpack.c.bf16 %v1863, %v1862
      %v1901 = vpack.c.bf16 %v1865, %v1864
      %v1902 = vpack.c.bf16 %v1867, %v1866
      %v1903 = vpack.c.bf16 %v1869, %v1868
      %v1904 = vpack.c.bf16 %v1871, %v1870
      %v1905 = vpack.c.bf16 %v1873, %v1872
      %v1906 = vpack.c.bf16 %v1875, %v1874
      %v1907 = vpack.c.bf16 %v1877, %v1876
      %v1908 = vpack.c.bf16 %v1879, %v1878
      %v1909 = vpack.c.bf16 %v1881, %v1880
      %v1910 = vpack.c.bf16 %v1883, %v1882
      %v1911 = vpack.c.bf16 %v1885, %v1884
      %v1912 = vpack.c.bf16 %v1887, %v1886
      %v1913 = vpack.c.bf16 %v1889, %v1888
      %v1914 = vpack.c.bf16 %v1891, %v1890
      %v1915 = vpack.c.bf16 %v1893, %v1892
      %v1916 = vpack.c.bf16 %v1895, %v1894
      %v1917 = vpack.c.bf16 %v1896, %v1896
      %v1918 = vld [vmem:[%s4 + $0xc0] sm:$0xf]
      %v1919 = vld [vmem:[%s4 + $0xc4] sm:$0xf]
      %v1920 = vld [vmem:[%s4 + $0xc8] sm:$0xf]
      %v1921 = vld [vmem:[%s4 + $0xcc] sm:$0xf]
      %v1922 = vld [vmem:[%s4 + $0xd0] sm:$0xf]
      %v1923 = vld [vmem:[%s4 + $0xd4] sm:$0xf]
      %v1924 = vld [vmem:[%s4 + $0xd8] sm:$0xf]
      %v1925 = vld [vmem:[%s4 + $0xdc] sm:$0xf]
      %v1926 = vld [vmem:[%s4 + $0xe0] sm:$0xf]
      %v1927 = vld [vmem:[%s4 + $0xe4] sm:$0xf]
      %v1928 = vld [vmem:[%s4 + $0xe8] sm:$0xf]
      %v1929 = vld [vmem:[%s4 + $0xec] sm:$0xf]
      %v1930 = vld [vmem:[%s4 + $0xf0] sm:$0xf]
      %v1931 = vld [vmem:[%s4 + $0xf4] sm:$0xf]
      %v1932 = vld [vmem:[%s4 + $0xf8] sm:$0xf]
      %v1933 = vld [vmem:[%s4 + $0xfc] sm:$0xf]
      %v1950 = vunpack.c.l.b16 %v1918
      %v1951 = vunpack.c.l.b16 %v1919
      %v1952 = vunpack.c.l.b16 %v1920
      %v1953 = vunpack.c.l.b16 %v1921
      %v1954 = vunpack.c.l.b16 %v1922
      %v1955 = vunpack.c.l.b16 %v1923
      %v1956 = vunpack.c.l.b16 %v1924
      %v1957 = vunpack.c.l.b16 %v1925
      %v1958 = vunpack.c.l.b16 %v1926
      %v1959 = vunpack.c.l.b16 %v1927
      %v1960 = vunpack.c.l.b16 %v1928
      %v1961 = vunpack.c.l.b16 %v1929
      %v1962 = vunpack.c.l.b16 %v1930
      %v1963 = vunpack.c.l.b16 %v1931
      %v1964 = vunpack.c.l.b16 %v1932
      %v1965 = vunpack.c.l.b16 %v1933
      %v1966 = vpack.c.b16 %v1951, %v1950
      %v1967 = vpack.c.b16 %v1953, %v1952
      %v1968 = vpack.c.b16 %v1955, %v1954
      %v1969 = vpack.c.b16 %v1957, %v1956
      %v1970 = vpack.c.b16 %v1959, %v1958
      %v1971 = vpack.c.b16 %v1961, %v1960
      %v1972 = vpack.c.b16 %v1963, %v1962
      %v1973 = vpack.c.b16 %v1965, %v1964
      %1982 = vmatpush.bf16.msra.mxu0 %v1973
      %1983 = vmatpush.bf16.msra.mxu0 %v1972
      %1984 = vmatpush.bf16.msra.mxu0 %v1971
      %1985 = vmatpush.bf16.msra.mxu0 %v1970
      %1986 = vmatpush.bf16.msra.mxu0 %v1969
      %1987 = vmatpush.bf16.msra.mxu0 %v1968
      %1988 = vmatpush.bf16.msra.mxu0 %v1967
      %1989 = vmatpush.bf16.msra.mxu0 %v1966
      %1990 = vmatmul.bf16.gmra.mxu0 %v1897
      %v1991 = vpop.f32.mrf.mxu0
      %v1992 = vadd.f32 0.0, %v1991
      %v1993 = vpop.f32.mrf.mxu0
      %v1994 = vadd.f32 0.0, %v1993
      %1995 = vmatmul.bf16.gmra.mxu0 %v1898
      %v1996 = vpop.f32.mrf.mxu0
      %v1997 = vadd.f32 0.0, %v1996
      %v1998 = vpop.f32.mrf.mxu0
      %v1999 = vadd.f32 0.0, %v1998
      %2000 = vmatmul.bf16.gmra.mxu0 %v1899
      %v2001 = vpop.f32.mrf.mxu0
      %v2002 = vadd.f32 0.0, %v2001
      %v2003 = vpop.f32.mrf.mxu0
      %v2004 = vadd.f32 0.0, %v2003
      %2005 = vmatmul.bf16.gmra.mxu0 %v1900
      %v2006 = vpop.f32.mrf.mxu0
      %v2007 = vadd.f32 0.0, %v2006
      %v2008 = vpop.f32.mrf.mxu0
      %v2009 = vadd.f32 0.0, %v2008
      %2010 = vmatmul.bf16.gmra.mxu0 %v1901
      %v2011 = vpop.f32.mrf.mxu0
      %v2012 = vadd.f32 0.0, %v2011
      %v2013 = vpop.f32.mrf.mxu0
      %v2014 = vadd.f32 0.0, %v2013
      %2015 = vmatmul.bf16.gmra.mxu0 %v1902
      %v2016 = vpop.f32.mrf.mxu0
      %v2017 = vadd.f32 0.0, %v2016
      %v2018 = vpop.f32.mrf.mxu0
      %v2019 = vadd.f32 0.0, %v2018
      %2020 = vmatmul.bf16.gmra.mxu0 %v1903
      %v2021 = vpop.f32.mrf.mxu0
      %v2022 = vadd.f32 0.0, %v2021
      %v2023 = vpop.f32.mrf.mxu0
      %v2024 = vadd.f32 0.0, %v2023
      %2025 = vmatmul.bf16.gmra.mxu0 %v1904
      %v2026 = vpop.f32.mrf.mxu0
      %v2027 = vadd.f32 0.0, %v2026
      %v2028 = vpop.f32.mrf.mxu0
      %v2029 = vadd.f32 0.0, %v2028
      %2030 = vmatmul.bf16.gmra.mxu0 %v1905
      %v2031 = vpop.f32.mrf.mxu0
      %v2032 = vadd.f32 0.0, %v2031
      %v2033 = vpop.f32.mrf.mxu0
      %v2034 = vadd.f32 0.0, %v2033
      %2035 = vmatmul.bf16.gmra.mxu0 %v1906
      %v2036 = vpop.f32.mrf.mxu0
      %v2037 = vadd.f32 0.0, %v2036
      %v2038 = vpop.f32.mrf.mxu0
      %v2039 = vadd.f32 0.0, %v2038
      %2040 = vmatmul.bf16.gmra.mxu0 %v1907
      %v2041 = vpop.f32.mrf.mxu0
      %v2042 = vadd.f32 0.0, %v2041
      %v2043 = vpop.f32.mrf.mxu0
      %v2044 = vadd.f32 0.0, %v2043
      %2045 = vmatmul.bf16.gmra.mxu0 %v1908
      %v2046 = vpop.f32.mrf.mxu0
      %v2047 = vadd.f32 0.0, %v2046
      %v2048 = vpop.f32.mrf.mxu0
      %v2049 = vadd.f32 0.0, %v2048
      %2050 = vmatmul.bf16.gmra.mxu0 %v1909
      %v2051 = vpop.f32.mrf.mxu0
      %v2052 = vadd.f32 0.0, %v2051
      %v2053 = vpop.f32.mrf.mxu0
      %v2054 = vadd.f32 0.0, %v2053
      %2055 = vmatmul.bf16.gmra.mxu0 %v1910
      %v2056 = vpop.f32.mrf.mxu0
      %v2057 = vadd.f32 0.0, %v2056
      %v2058 = vpop.f32.mrf.mxu0
      %v2059 = vadd.f32 0.0, %v2058
      %2060 = vmatmul.bf16.gmra.mxu0 %v1911
      %v2061 = vpop.f32.mrf.mxu0
      %v2062 = vadd.f32 0.0, %v2061
      %v2063 = vpop.f32.mrf.mxu0
      %v2064 = vadd.f32 0.0, %v2063
      %2065 = vmatmul.bf16.gmra.mxu0 %v1912
      %v2066 = vpop.f32.mrf.mxu0
      %v2067 = vadd.f32 0.0, %v2066
      %v2068 = vpop.f32.mrf.mxu0
      %v2069 = vadd.f32 0.0, %v2068
      %2070 = vmatmul.bf16.gmra.mxu0 %v1913
      %v2071 = vpop.f32.mrf.mxu0
      %v2072 = vadd.f32 0.0, %v2071
      %v2073 = vpop.f32.mrf.mxu0
      %v2074 = vadd.f32 0.0, %v2073
      %2075 = vmatmul.bf16.gmra.mxu0 %v1914
      %v2076 = vpop.f32.mrf.mxu0
      %v2077 = vadd.f32 0.0, %v2076
      %v2078 = vpop.f32.mrf.mxu0
      %v2079 = vadd.f32 0.0, %v2078
      %2080 = vmatmul.bf16.gmra.mxu0 %v1915
      %v2081 = vpop.f32.mrf.mxu0
      %v2082 = vadd.f32 0.0, %v2081
      %v2083 = vpop.f32.mrf.mxu0
      %v2084 = vadd.f32 0.0, %v2083
      %2085 = vmatmul.bf16.gmra.mxu0 %v1916
      %v2086 = vpop.f32.mrf.mxu0
      %v2087 = vadd.f32 0.0, %v2086
      %v2088 = vpop.f32.mrf.mxu0
      %v2089 = vadd.f32 0.0, %v2088
      %2090 = vmatmul.bf16.gmra.mxu0 %v1917
      %v2091 = vpop.f32.mrf.mxu0
      %v2092 = vadd.f32 0.0, %v2091
      %v2093 = vpop.f32.mrf.mxu0
      %2094 = vdwg.mxu0
      %v2095 = vadd.f32 %v1815, %v1992
      %v2096 = vadd.f32 %v1816, %v1994
      %v2097 = vadd.f32 %v1817, %v1997
      %v2098 = vadd.f32 %v1818, %v1999
      %v2099 = vadd.f32 %v1819, %v2002
      %v2100 = vadd.f32 %v1820, %v2004
      %v2101 = vadd.f32 %v1821, %v2007
      %v2102 = vadd.f32 %v1822, %v2009
      %v2103 = vadd.f32 %v1823, %v2012
      %v2104 = vadd.f32 %v1824, %v2014
      %v2105 = vadd.f32 %v1825, %v2017
      %v2106 = vadd.f32 %v1826, %v2019
      %v2107 = vadd.f32 %v1827, %v2022
      %v2108 = vadd.f32 %v1828, %v2024
      %v2109 = vadd.f32 %v1829, %v2027
      %v2110 = vadd.f32 %v1830, %v2029
      %v2111 = vadd.f32 %v1831, %v2032
      %v2112 = vadd.f32 %v1832, %v2034
      %v2113 = vadd.f32 %v1833, %v2037
      %v2114 = vadd.f32 %v1834, %v2039
      %v2115 = vadd.f32 %v1835, %v2042
      %v2116 = vadd.f32 %v1836, %v2044
      %v2117 = vadd.f32 %v1837, %v2047
      %v2118 = vadd.f32 %v1838, %v2049
      %v2119 = vadd.f32 %v1839, %v2052
      %v2120 = vadd.f32 %v1840, %v2054
      %v2121 = vadd.f32 %v1841, %v2057
      %v2122 = vadd.f32 %v1842, %v2059
      %v2123 = vadd.f32 %v1843, %v2062
      %v2124 = vadd.f32 %v1844, %v2064
      %v2125 = vadd.f32 %v1845, %v2067
      %v2126 = vadd.f32 %v1846, %v2069
      %v2127 = vadd.f32 %v1847, %v2072
      %v2128 = vadd.f32 %v1848, %v2074
      %v2129 = vadd.f32 %v1849, %v2077
      %v2130 = vadd.f32 %v1850, %v2079
      %v2131 = vadd.f32 %v1851, %v2082
      %v2132 = vadd.f32 %v1852, %v2084
      %v2133 = vadd.f32 %v1853, %v2087
      %v2134 = vadd.f32 %v1854, %v2089
      %v2135 = vadd.f32 %v1855, %v2092
      %v2136 = vld [vmem:[#allocation2 + $0x18] sm:$0xff]
      %v2137 = vld [vmem:[#allocation2 + $0x20] sm:$0xff]
      %v2138 = vld [vmem:[#allocation2 + $0x28] sm:$0xff]
      %v2139 = vld [vmem:[#allocation2 + $0x30] sm:$0xff]
      %v2140 = vld [vmem:[#allocation2 + $0x38] sm:$0xff]
      %v2141 = vld [vmem:[#allocation2 + $0x40] sm:$0xff]
      %v2142 = vld [vmem:[#allocation2 + $0x48] sm:$0xff]
      %v2143 = vld [vmem:[#allocation2 + $0x50] sm:$0xff]
      %v2144 = vld [vmem:[#allocation2 + $0x58] sm:$0xff]
      %v2145 = vld [vmem:[#allocation2 + $0x60] sm:$0xff]
      %v2146 = vld [vmem:[#allocation2 + $0x68] sm:$0xff]
      %v2147 = vld [vmem:[#allocation2 + $0x70] sm:$0xff]
      %v2148 = vld [vmem:[#allocation2 + $0x78] sm:$0xff]
      %v2149 = vld [vmem:[#allocation2 + $0x80] sm:$0xff]
      %v2150 = vld [vmem:[#allocation2 + $0x88] sm:$0xff]
      %v2151 = vld [vmem:[#allocation2 + $0x90] sm:$0xff]
      %v2152 = vld [vmem:[#allocation2 + $0x98] sm:$0xff]
      %v2153 = vld [vmem:[#allocation2 + $0xa0] sm:$0xff]
      %v2154 = vld [vmem:[#allocation2 + $0xa8] sm:$0xff]
      %v2155 = vld [vmem:[#allocation2 + $0xb0] sm:$0xff]
      %v2156 = vld [vmem:[#allocation2 + $0xb8] sm:$0xff]
      %v2157 = vld [vmem:[#allocation2 + $0xc0] sm:$0xff]
      %v2158 = vld [vmem:[#allocation2 + $0xc8] sm:$0xff]
      %v2159 = vld [vmem:[#allocation2 + $0xd0] sm:$0xff]
      %v2160 = vld [vmem:[#allocation2 + $0xd8] sm:$0xff]
      %v2161 = vld [vmem:[#allocation2 + $0xe0] sm:$0xff]
      %v2162 = vld [vmem:[#allocation2 + $0xe8] sm:$0xff]
      %v2163 = vld [vmem:[#allocation2 + $0xf0] sm:$0xff]
      %v2164 = vld [vmem:[#allocation2 + $0xf8] sm:$0xff]
      %v2165 = vld [vmem:[#allocation2 + $0x100] sm:$0xff]
      %v2166 = vld [vmem:[#allocation2 + $0x108] sm:$0xff]
      %v2167 = vld [vmem:[#allocation2 + $0x110] sm:$0xff]
      %v2168 = vld [vmem:[#allocation2 + $0x118] sm:$0xff]
      %v2169 = vld [vmem:[#allocation2 + $0x120] sm:$0xff]
      %v2170 = vld [vmem:[#allocation2 + $0x128] sm:$0xff]
      %v2171 = vld [vmem:[#allocation2 + $0x130] sm:$0xff]
      %v2172 = vld [vmem:[#allocation2 + $0x138] sm:$0xff]
      %v2173 = vld [vmem:[#allocation2 + $0x140] sm:$0xff]
      %v2174 = vld [vmem:[#allocation2 + $0x148] sm:$0xff]
      %v2175 = vld [vmem:[#allocation2 + $0x150] sm:$0xff]
      %v2176 = vld [vmem:[#allocation2 + $0x158] sm:$0xf]
      %v2177 = vpack.c.bf16 %v2137, %v2136
      %v2178 = vpack.c.bf16 %v2139, %v2138
      %v2179 = vpack.c.bf16 %v2141, %v2140
      %v2180 = vpack.c.bf16 %v2143, %v2142
      %v2181 = vpack.c.bf16 %v2145, %v2144
      %v2182 = vpack.c.bf16 %v2147, %v2146
      %v2183 = vpack.c.bf16 %v2149, %v2148
      %v2184 = vpack.c.bf16 %v2151, %v2150
      %v2185 = vpack.c.bf16 %v2153, %v2152
      %v2186 = vpack.c.bf16 %v2155, %v2154
      %v2187 = vpack.c.bf16 %v2157, %v2156
      %v2188 = vpack.c.bf16 %v2159, %v2158
      %v2189 = vpack.c.bf16 %v2161, %v2160
      %v2190 = vpack.c.bf16 %v2163, %v2162
      %v2191 = vpack.c.bf16 %v2165, %v2164
      %v2192 = vpack.c.bf16 %v2167, %v2166
      %v2193 = vpack.c.bf16 %v2169, %v2168
      %v2194 = vpack.c.bf16 %v2171, %v2170
      %v2195 = vpack.c.bf16 %v2173, %v2172
      %v2196 = vpack.c.bf16 %v2175, %v2174
      %v2197 = vpack.c.bf16 %v2176, %v2176
      %v2198 = vld [vmem:[%s4 + $0x100] sm:$0xf]
      %v2199 = vld [vmem:[%s4 + $0x104] sm:$0xf]
      %v2200 = vld [vmem:[%s4 + $0x108] sm:$0xf]
      %v2201 = vld [vmem:[%s4 + $0x10c] sm:$0xf]
      %v2202 = vld [vmem:[%s4 + $0x110] sm:$0xf]
      %v2203 = vld [vmem:[%s4 + $0x114] sm:$0xf]
      %v2204 = vld [vmem:[%s4 + $0x118] sm:$0xf]
      %v2205 = vld [vmem:[%s4 + $0x11c] sm:$0xf]
      %v2206 = vld [vmem:[%s4 + $0x120] sm:$0xf]
      %v2207 = vld [vmem:[%s4 + $0x124] sm:$0xf]
      %v2208 = vld [vmem:[%s4 + $0x128] sm:$0xf]
      %v2209 = vld [vmem:[%s4 + $0x12c] sm:$0xf]
      %v2210 = vld [vmem:[%s4 + $0x130] sm:$0xf]
      %v2211 = vld [vmem:[%s4 + $0x134] sm:$0xf]
      %v2212 = vld [vmem:[%s4 + $0x138] sm:$0xf]
      %v2213 = vld [vmem:[%s4 + $0x13c] sm:$0xf]
      %v2230 = vunpack.c.l.b16 %v2198
      %v2231 = vunpack.c.l.b16 %v2199
      %v2232 = vunpack.c.l.b16 %v2200
      %v2233 = vunpack.c.l.b16 %v2201
      %v2234 = vunpack.c.l.b16 %v2202
      %v2235 = vunpack.c.l.b16 %v2203
      %v2236 = vunpack.c.l.b16 %v2204
      %v2237 = vunpack.c.l.b16 %v2205
      %v2238 = vunpack.c.l.b16 %v2206
      %v2239 = vunpack.c.l.b16 %v2207
      %v2240 = vunpack.c.l.b16 %v2208
      %v2241 = vunpack.c.l.b16 %v2209
      %v2242 = vunpack.c.l.b16 %v2210
      %v2243 = vunpack.c.l.b16 %v2211
      %v2244 = vunpack.c.l.b16 %v2212
      %v2245 = vunpack.c.l.b16 %v2213
      %v2246 = vpack.c.b16 %v2231, %v2230
      %v2247 = vpack.c.b16 %v2233, %v2232
      %v2248 = vpack.c.b16 %v2235, %v2234
      %v2249 = vpack.c.b16 %v2237, %v2236
      %v2250 = vpack.c.b16 %v2239, %v2238
      %v2251 = vpack.c.b16 %v2241, %v2240
      %v2252 = vpack.c.b16 %v2243, %v2242
      %v2253 = vpack.c.b16 %v2245, %v2244
      %2262 = vmatpush.bf16.msra.mxu0 %v2253
      %2263 = vmatpush.bf16.msra.mxu0 %v2252
      %2264 = vmatpush.bf16.msra.mxu0 %v2251
      %2265 = vmatpush.bf16.msra.mxu0 %v2250
      %2266 = vmatpush.bf16.msra.mxu0 %v2249
      %2267 = vmatpush.bf16.msra.mxu0 %v2248
      %2268 = vmatpush.bf16.msra.mxu0 %v2247
      %2269 = vmatpush.bf16.msra.mxu0 %v2246
      %2270 = vmatmul.bf16.gmra.mxu0 %v2177
      %v2271 = vpop.f32.mrf.mxu0
      %v2272 = vadd.f32 0.0, %v2271
      %v2273 = vpop.f32.mrf.mxu0
      %v2274 = vadd.f32 0.0, %v2273
      %2275 = vmatmul.bf16.gmra.mxu0 %v2178
      %v2276 = vpop.f32.mrf.mxu0
      %v2277 = vadd.f32 0.0, %v2276
      %v2278 = vpop.f32.mrf.mxu0
      %v2279 = vadd.f32 0.0, %v2278
      %2280 = vmatmul.bf16.gmra.mxu0 %v2179
      %v2281 = vpop.f32.mrf.mxu0
      %v2282 = vadd.f32 0.0, %v2281
      %v2283 = vpop.f32.mrf.mxu0
      %v2284 = vadd.f32 0.0, %v2283
      %2285 = vmatmul.bf16.gmra.mxu0 %v2180
      %v2286 = vpop.f32.mrf.mxu0
      %v2287 = vadd.f32 0.0, %v2286
      %v2288 = vpop.f32.mrf.mxu0
      %v2289 = vadd.f32 0.0, %v2288
      %2290 = vmatmul.bf16.gmra.mxu0 %v2181
      %v2291 = vpop.f32.mrf.mxu0
      %v2292 = vadd.f32 0.0, %v2291
      %v2293 = vpop.f32.mrf.mxu0
      %v2294 = vadd.f32 0.0, %v2293
      %2295 = vmatmul.bf16.gmra.mxu0 %v2182
      %v2296 = vpop.f32.mrf.mxu0
      %v2297 = vadd.f32 0.0, %v2296
      %v2298 = vpop.f32.mrf.mxu0
      %v2299 = vadd.f32 0.0, %v2298
      %2300 = vmatmul.bf16.gmra.mxu0 %v2183
      %v2301 = vpop.f32.mrf.mxu0
      %v2302 = vadd.f32 0.0, %v2301
      %v2303 = vpop.f32.mrf.mxu0
      %v2304 = vadd.f32 0.0, %v2303
      %2305 = vmatmul.bf16.gmra.mxu0 %v2184
      %v2306 = vpop.f32.mrf.mxu0
      %v2307 = vadd.f32 0.0, %v2306
      %v2308 = vpop.f32.mrf.mxu0
      %v2309 = vadd.f32 0.0, %v2308
      %2310 = vmatmul.bf16.gmra.mxu0 %v2185
      %v2311 = vpop.f32.mrf.mxu0
      %v2312 = vadd.f32 0.0, %v2311
      %v2313 = vpop.f32.mrf.mxu0
      %v2314 = vadd.f32 0.0, %v2313
      %2315 = vmatmul.bf16.gmra.mxu0 %v2186
      %v2316 = vpop.f32.mrf.mxu0
      %v2317 = vadd.f32 0.0, %v2316
      %v2318 = vpop.f32.mrf.mxu0
      %v2319 = vadd.f32 0.0, %v2318
      %2320 = vmatmul.bf16.gmra.mxu0 %v2187
      %v2321 = vpop.f32.mrf.mxu0
      %v2322 = vadd.f32 0.0, %v2321
      %v2323 = vpop.f32.mrf.mxu0
      %v2324 = vadd.f32 0.0, %v2323
      %2325 = vmatmul.bf16.gmra.mxu0 %v2188
      %v2326 = vpop.f32.mrf.mxu0
      %v2327 = vadd.f32 0.0, %v2326
      %v2328 = vpop.f32.mrf.mxu0
      %v2329 = vadd.f32 0.0, %v2328
      %2330 = vmatmul.bf16.gmra.mxu0 %v2189
      %v2331 = vpop.f32.mrf.mxu0
      %v2332 = vadd.f32 0.0, %v2331
      %v2333 = vpop.f32.mrf.mxu0
      %v2334 = vadd.f32 0.0, %v2333
      %2335 = vmatmul.bf16.gmra.mxu0 %v2190
      %v2336 = vpop.f32.mrf.mxu0
      %v2337 = vadd.f32 0.0, %v2336
      %v2338 = vpop.f32.mrf.mxu0
      %v2339 = vadd.f32 0.0, %v2338
      %2340 = vmatmul.bf16.gmra.mxu0 %v2191
      %v2341 = vpop.f32.mrf.mxu0
      %v2342 = vadd.f32 0.0, %v2341
      %v2343 = vpop.f32.mrf.mxu0
      %v2344 = vadd.f32 0.0, %v2343
      %2345 = vmatmul.bf16.gmra.mxu0 %v2192
      %v2346 = vpop.f32.mrf.mxu0
      %v2347 = vadd.f32 0.0, %v2346
      %v2348 = vpop.f32.mrf.mxu0
      %v2349 = vadd.f32 0.0, %v2348
      %2350 = vmatmul.bf16.gmra.mxu0 %v2193
      %v2351 = vpop.f32.mrf.mxu0
      %v2352 = vadd.f32 0.0, %v2351
      %v2353 = vpop.f32.mrf.mxu0
      %v2354 = vadd.f32 0.0, %v2353
      %2355 = vmatmul.bf16.gmra.mxu0 %v2194
      %v2356 = vpop.f32.mrf.mxu0
      %v2357 = vadd.f32 0.0, %v2356
      %v2358 = vpop.f32.mrf.mxu0
      %v2359 = vadd.f32 0.0, %v2358
      %2360 = vmatmul.bf16.gmra.mxu0 %v2195
      %v2361 = vpop.f32.mrf.mxu0
      %v2362 = vadd.f32 0.0, %v2361
      %v2363 = vpop.f32.mrf.mxu0
      %v2364 = vadd.f32 0.0, %v2363
      %2365 = vmatmul.bf16.gmra.mxu0 %v2196
      %v2366 = vpop.f32.mrf.mxu0
      %v2367 = vadd.f32 0.0, %v2366
      %v2368 = vpop.f32.mrf.mxu0
      %v2369 = vadd.f32 0.0, %v2368
      %2370 = vmatmul.bf16.gmra.mxu0 %v2197
      %v2371 = vpop.f32.mrf.mxu0
      %v2372 = vadd.f32 0.0, %v2371
      %v2373 = vpop.f32.mrf.mxu0
      %2374 = vdwg.mxu0
      %v2375 = vadd.f32 %v2095, %v2272
      %v2376 = vadd.f32 %v2096, %v2274
      %v2377 = vadd.f32 %v2097, %v2277
      %v2378 = vadd.f32 %v2098, %v2279
      %v2379 = vadd.f32 %v2099, %v2282
      %v2380 = vadd.f32 %v2100, %v2284
      %v2381 = vadd.f32 %v2101, %v2287
      %v2382 = vadd.f32 %v2102, %v2289
      %v2383 = vadd.f32 %v2103, %v2292
      %v2384 = vadd.f32 %v2104, %v2294
      %v2385 = vadd.f32 %v2105, %v2297
      %v2386 = vadd.f32 %v2106, %v2299
      %v2387 = vadd.f32 %v2107, %v2302
      %v2388 = vadd.f32 %v2108, %v2304
      %v2389 = vadd.f32 %v2109, %v2307
      %v2390 = vadd.f32 %v2110, %v2309
      %v2391 = vadd.f32 %v2111, %v2312
      %v2392 = vadd.f32 %v2112, %v2314
      %v2393 = vadd.f32 %v2113, %v2317
      %v2394 = vadd.f32 %v2114, %v2319
      %v2395 = vadd.f32 %v2115, %v2322
      %v2396 = vadd.f32 %v2116, %v2324
      %v2397 = vadd.f32 %v2117, %v2327
      %v2398 = vadd.f32 %v2118, %v2329
      %v2399 = vadd.f32 %v2119, %v2332
      %v2400 = vadd.f32 %v2120, %v2334
      %v2401 = vadd.f32 %v2121, %v2337
      %v2402 = vadd.f32 %v2122, %v2339
      %v2403 = vadd.f32 %v2123, %v2342
      %v2404 = vadd.f32 %v2124, %v2344
      %v2405 = vadd.f32 %v2125, %v2347
      %v2406 = vadd.f32 %v2126, %v2349
      %v2407 = vadd.f32 %v2127, %v2352
      %v2408 = vadd.f32 %v2128, %v2354
      %v2409 = vadd.f32 %v2129, %v2357
      %v2410 = vadd.f32 %v2130, %v2359
      %v2411 = vadd.f32 %v2131, %v2362
      %v2412 = vadd.f32 %v2132, %v2364
      %v2413 = vadd.f32 %v2133, %v2367
      %v2414 = vadd.f32 %v2134, %v2369
      %v2415 = vadd.f32 %v2135, %v2372
      %v2416 = vld [vmem:[#allocation2 + $0x19] sm:$0xff]
      %v2417 = vld [vmem:[#allocation2 + $0x21] sm:$0xff]
      %v2418 = vld [vmem:[#allocation2 + $0x29] sm:$0xff]
      %v2419 = vld [vmem:[#allocation2 + $0x31] sm:$0xff]
      %v2420 = vld [vmem:[#allocation2 + $0x39] sm:$0xff]
      %v2421 = vld [vmem:[#allocation2 + $0x41] sm:$0xff]
      %v2422 = vld [vmem:[#allocation2 + $0x49] sm:$0xff]
      %v2423 = vld [vmem:[#allocation2 + $0x51] sm:$0xff]
      %v2424 = vld [vmem:[#allocation2 + $0x59] sm:$0xff]
      %v2425 = vld [vmem:[#allocation2 + $0x61] sm:$0xff]
      %v2426 = vld [vmem:[#allocation2 + $0x69] sm:$0xff]
      %v2427 = vld [vmem:[#allocation2 + $0x71] sm:$0xff]
      %v2428 = vld [vmem:[#allocation2 + $0x79] sm:$0xff]
      %v2429 = vld [vmem:[#allocation2 + $0x81] sm:$0xff]
      %v2430 = vld [vmem:[#allocation2 + $0x89] sm:$0xff]
      %v2431 = vld [vmem:[#allocation2 + $0x91] sm:$0xff]
      %v2432 = vld [vmem:[#allocation2 + $0x99] sm:$0xff]
      %v2433 = vld [vmem:[#allocation2 + $0xa1] sm:$0xff]
      %v2434 = vld [vmem:[#allocation2 + $0xa9] sm:$0xff]
      %v2435 = vld [vmem:[#allocation2 + $0xb1] sm:$0xff]
      %v2436 = vld [vmem:[#allocation2 + $0xb9] sm:$0xff]
      %v2437 = vld [vmem:[#allocation2 + $0xc1] sm:$0xff]
      %v2438 = vld [vmem:[#allocation2 + $0xc9] sm:$0xff]
      %v2439 = vld [vmem:[#allocation2 + $0xd1] sm:$0xff]
      %v2440 = vld [vmem:[#allocation2 + $0xd9] sm:$0xff]
      %v2441 = vld [vmem:[#allocation2 + $0xe1] sm:$0xff]
      %v2442 = vld [vmem:[#allocation2 + $0xe9] sm:$0xff]
      %v2443 = vld [vmem:[#allocation2 + $0xf1] sm:$0xff]
      %v2444 = vld [vmem:[#allocation2 + $0xf9] sm:$0xff]
      %v2445 = vld [vmem:[#allocation2 + $0x101] sm:$0xff]
      %v2446 = vld [vmem:[#allocation2 + $0x109] sm:$0xff]
      %v2447 = vld [vmem:[#allocation2 + $0x111] sm:$0xff]
      %v2448 = vld [vmem:[#allocation2 + $0x119] sm:$0xff]
      %v2449 = vld [vmem:[#allocation2 + $0x121] sm:$0xff]
      %v2450 = vld [vmem:[#allocation2 + $0x129] sm:$0xff]
      %v2451 = vld [vmem:[#allocation2 + $0x131] sm:$0xff]
      %v2452 = vld [vmem:[#allocation2 + $0x139] sm:$0xff]
      %v2453 = vld [vmem:[#allocation2 + $0x141] sm:$0xff]
      %v2454 = vld [vmem:[#allocation2 + $0x149] sm:$0xff]
      %v2455 = vld [vmem:[#allocation2 + $0x151] sm:$0xff]
      %v2456 = vld [vmem:[#allocation2 + $0x159] sm:$0xf]
      %v2457 = vpack.c.bf16 %v2417, %v2416
      %v2458 = vpack.c.bf16 %v2419, %v2418
      %v2459 = vpack.c.bf16 %v2421, %v2420
      %v2460 = vpack.c.bf16 %v2423, %v2422
      %v2461 = vpack.c.bf16 %v2425, %v2424
      %v2462 = vpack.c.bf16 %v2427, %v2426
      %v2463 = vpack.c.bf16 %v2429, %v2428
      %v2464 = vpack.c.bf16 %v2431, %v2430
      %v2465 = vpack.c.bf16 %v2433, %v2432
      %v2466 = vpack.c.bf16 %v2435, %v2434
      %v2467 = vpack.c.bf16 %v2437, %v2436
      %v2468 = vpack.c.bf16 %v2439, %v2438
      %v2469 = vpack.c.bf16 %v2441, %v2440
      %v2470 = vpack.c.bf16 %v2443, %v2442
      %v2471 = vpack.c.bf16 %v2445, %v2444
      %v2472 = vpack.c.bf16 %v2447, %v2446
      %v2473 = vpack.c.bf16 %v2449, %v2448
      %v2474 = vpack.c.bf16 %v2451, %v2450
      %v2475 = vpack.c.bf16 %v2453, %v2452
      %v2476 = vpack.c.bf16 %v2455, %v2454
      %v2477 = vpack.c.bf16 %v2456, %v2456
      %v2478 = vld [vmem:[%s4 + $0x140] sm:$0xf]
      %v2479 = vld [vmem:[%s4 + $0x144] sm:$0xf]
      %v2480 = vld [vmem:[%s4 + $0x148] sm:$0xf]
      %v2481 = vld [vmem:[%s4 + $0x14c] sm:$0xf]
      %v2482 = vld [vmem:[%s4 + $0x150] sm:$0xf]
      %v2483 = vld [vmem:[%s4 + $0x154] sm:$0xf]
      %v2484 = vld [vmem:[%s4 + $0x158] sm:$0xf]
      %v2485 = vld [vmem:[%s4 + $0x15c] sm:$0xf]
      %v2486 = vld [vmem:[%s4 + $0x160] sm:$0xf]
      %v2487 = vld [vmem:[%s4 + $0x164] sm:$0xf]
      %v2488 = vld [vmem:[%s4 + $0x168] sm:$0xf]
      %v2489 = vld [vmem:[%s4 + $0x16c] sm:$0xf]
      %v2490 = vld [vmem:[%s4 + $0x170] sm:$0xf]
      %v2491 = vld [vmem:[%s4 + $0x174] sm:$0xf]
      %v2492 = vld [vmem:[%s4 + $0x178] sm:$0xf]
      %v2493 = vld [vmem:[%s4 + $0x17c] sm:$0xf]
      %v2510 = vunpack.c.l.b16 %v2478
      %v2511 = vunpack.c.l.b16 %v2479
      %v2512 = vunpack.c.l.b16 %v2480
      %v2513 = vunpack.c.l.b16 %v2481
      %v2514 = vunpack.c.l.b16 %v2482
      %v2515 = vunpack.c.l.b16 %v2483
      %v2516 = vunpack.c.l.b16 %v2484
      %v2517 = vunpack.c.l.b16 %v2485
      %v2518 = vunpack.c.l.b16 %v2486
      %v2519 = vunpack.c.l.b16 %v2487
      %v2520 = vunpack.c.l.b16 %v2488
      %v2521 = vunpack.c.l.b16 %v2489
      %v2522 = vunpack.c.l.b16 %v2490
      %v2523 = vunpack.c.l.b16 %v2491
      %v2524 = vunpack.c.l.b16 %v2492
      %v2525 = vunpack.c.l.b16 %v2493
      %v2526 = vpack.c.b16 %v2511, %v2510
      %v2527 = vpack.c.b16 %v2513, %v2512
      %v2528 = vpack.c.b16 %v2515, %v2514
      %v2529 = vpack.c.b16 %v2517, %v2516
      %v2530 = vpack.c.b16 %v2519, %v2518
      %v2531 = vpack.c.b16 %v2521, %v2520
      %v2532 = vpack.c.b16 %v2523, %v2522
      %v2533 = vpack.c.b16 %v2525, %v2524
      %2542 = vmatpush.bf16.msra.mxu0 %v2533
      %2543 = vmatpush.bf16.msra.mxu0 %v2532
      %2544 = vmatpush.bf16.msra.mxu0 %v2531
      %2545 = vmatpush.bf16.msra.mxu0 %v2530
      %2546 = vmatpush.bf16.msra.mxu0 %v2529
      %2547 = vmatpush.bf16.msra.mxu0 %v2528
      %2548 = vmatpush.bf16.msra.mxu0 %v2527
      %2549 = vmatpush.bf16.msra.mxu0 %v2526
      %2550 = vmatmul.bf16.gmra.mxu0 %v2457
      %v2551 = vpop.f32.mrf.mxu0
      %v2552 = vadd.f32 0.0, %v2551
      %v2553 = vpop.f32.mrf.mxu0
      %v2554 = vadd.f32 0.0, %v2553
      %2555 = vmatmul.bf16.gmra.mxu0 %v2458
      %v2556 = vpop.f32.mrf.mxu0
      %v2557 = vadd.f32 0.0, %v2556
      %v2558 = vpop.f32.mrf.mxu0
      %v2559 = vadd.f32 0.0, %v2558
      %2560 = vmatmul.bf16.gmra.mxu0 %v2459
      %v2561 = vpop.f32.mrf.mxu0
      %v2562 = vadd.f32 0.0, %v2561
      %v2563 = vpop.f32.mrf.mxu0
      %v2564 = vadd.f32 0.0, %v2563
      %2565 = vmatmul.bf16.gmra.mxu0 %v2460
      %v2566 = vpop.f32.mrf.mxu0
      %v2567 = vadd.f32 0.0, %v2566
      %v2568 = vpop.f32.mrf.mxu0
      %v2569 = vadd.f32 0.0, %v2568
      %2570 = vmatmul.bf16.gmra.mxu0 %v2461
      %v2571 = vpop.f32.mrf.mxu0
      %v2572 = vadd.f32 0.0, %v2571
      %v2573 = vpop.f32.mrf.mxu0
      %v2574 = vadd.f32 0.0, %v2573
      %2575 = vmatmul.bf16.gmra.mxu0 %v2462
      %v2576 = vpop.f32.mrf.mxu0
      %v2577 = vadd.f32 0.0, %v2576
      %v2578 = vpop.f32.mrf.mxu0
      %v2579 = vadd.f32 0.0, %v2578
      %2580 = vmatmul.bf16.gmra.mxu0 %v2463
      %v2581 = vpop.f32.mrf.mxu0
      %v2582 = vadd.f32 0.0, %v2581
      %v2583 = vpop.f32.mrf.mxu0
      %v2584 = vadd.f32 0.0, %v2583
      %2585 = vmatmul.bf16.gmra.mxu0 %v2464
      %v2586 = vpop.f32.mrf.mxu0
      %v2587 = vadd.f32 0.0, %v2586
      %v2588 = vpop.f32.mrf.mxu0
      %v2589 = vadd.f32 0.0, %v2588
      %2590 = vmatmul.bf16.gmra.mxu0 %v2465
      %v2591 = vpop.f32.mrf.mxu0
      %v2592 = vadd.f32 0.0, %v2591
      %v2593 = vpop.f32.mrf.mxu0
      %v2594 = vadd.f32 0.0, %v2593
      %2595 = vmatmul.bf16.gmra.mxu0 %v2466
      %v2596 = vpop.f32.mrf.mxu0
      %v2597 = vadd.f32 0.0, %v2596
      %v2598 = vpop.f32.mrf.mxu0
      %v2599 = vadd.f32 0.0, %v2598
      %2600 = vmatmul.bf16.gmra.mxu0 %v2467
      %v2601 = vpop.f32.mrf.mxu0
      %v2602 = vadd.f32 0.0, %v2601
      %v2603 = vpop.f32.mrf.mxu0
      %v2604 = vadd.f32 0.0, %v2603
      %2605 = vmatmul.bf16.gmra.mxu0 %v2468
      %v2606 = vpop.f32.mrf.mxu0
      %v2607 = vadd.f32 0.0, %v2606
      %v2608 = vpop.f32.mrf.mxu0
      %v2609 = vadd.f32 0.0, %v2608
      %2610 = vmatmul.bf16.gmra.mxu0 %v2469
      %v2611 = vpop.f32.mrf.mxu0
      %v2612 = vadd.f32 0.0, %v2611
      %v2613 = vpop.f32.mrf.mxu0
      %v2614 = vadd.f32 0.0, %v2613
      %2615 = vmatmul.bf16.gmra.mxu0 %v2470
      %v2616 = vpop.f32.mrf.mxu0
      %v2617 = vadd.f32 0.0, %v2616
      %v2618 = vpop.f32.mrf.mxu0
      %v2619 = vadd.f32 0.0, %v2618
      %2620 = vmatmul.bf16.gmra.mxu0 %v2471
      %v2621 = vpop.f32.mrf.mxu0
      %v2622 = vadd.f32 0.0, %v2621
      %v2623 = vpop.f32.mrf.mxu0
      %v2624 = vadd.f32 0.0, %v2623
      %2625 = vmatmul.bf16.gmra.mxu0 %v2472
      %v2626 = vpop.f32.mrf.mxu0
      %v2627 = vadd.f32 0.0, %v2626
      %v2628 = vpop.f32.mrf.mxu0
      %v2629 = vadd.f32 0.0, %v2628
      %2630 = vmatmul.bf16.gmra.mxu0 %v2473
      %v2631 = vpop.f32.mrf.mxu0
      %v2632 = vadd.f32 0.0, %v2631
      %v2633 = vpop.f32.mrf.mxu0
      %v2634 = vadd.f32 0.0, %v2633
      %2635 = vmatmul.bf16.gmra.mxu0 %v2474
      %v2636 = vpop.f32.mrf.mxu0
      %v2637 = vadd.f32 0.0, %v2636
      %v2638 = vpop.f32.mrf.mxu0
      %v2639 = vadd.f32 0.0, %v2638
      %2640 = vmatmul.bf16.gmra.mxu0 %v2475
      %v2641 = vpop.f32.mrf.mxu0
      %v2642 = vadd.f32 0.0, %v2641
      %v2643 = vpop.f32.mrf.mxu0
      %v2644 = vadd.f32 0.0, %v2643
      %2645 = vmatmul.bf16.gmra.mxu0 %v2476
      %v2646 = vpop.f32.mrf.mxu0
      %v2647 = vadd.f32 0.0, %v2646
      %v2648 = vpop.f32.mrf.mxu0
      %v2649 = vadd.f32 0.0, %v2648
      %2650 = vmatmul.bf16.gmra.mxu0 %v2477
      %v2651 = vpop.f32.mrf.mxu0
      %v2652 = vadd.f32 0.0, %v2651
      %v2653 = vpop.f32.mrf.mxu0
      %2654 = vdwg.mxu0
      %v2655 = vadd.f32 %v2375, %v2552
      %v2656 = vadd.f32 %v2376, %v2554
      %v2657 = vadd.f32 %v2377, %v2557
      %v2658 = vadd.f32 %v2378, %v2559
      %v2659 = vadd.f32 %v2379, %v2562
      %v2660 = vadd.f32 %v2380, %v2564
      %v2661 = vadd.f32 %v2381, %v2567
      %v2662 = vadd.f32 %v2382, %v2569
      %v2663 = vadd.f32 %v2383, %v2572
      %v2664 = vadd.f32 %v2384, %v2574
      %v2665 = vadd.f32 %v2385, %v2577
      %v2666 = vadd.f32 %v2386, %v2579
      %v2667 = vadd.f32 %v2387, %v2582
      %v2668 = vadd.f32 %v2388, %v2584
      %v2669 = vadd.f32 %v2389, %v2587
      %v2670 = vadd.f32 %v2390, %v2589
      %v2671 = vadd.f32 %v2391, %v2592
      %v2672 = vadd.f32 %v2392, %v2594
      %v2673 = vadd.f32 %v2393, %v2597
      %v2674 = vadd.f32 %v2394, %v2599
      %v2675 = vadd.f32 %v2395, %v2602
      %v2676 = vadd.f32 %v2396, %v2604
      %v2677 = vadd.f32 %v2397, %v2607
      %v2678 = vadd.f32 %v2398, %v2609
      %v2679 = vadd.f32 %v2399, %v2612
      %v2680 = vadd.f32 %v2400, %v2614
      %v2681 = vadd.f32 %v2401, %v2617
      %v2682 = vadd.f32 %v2402, %v2619
      %v2683 = vadd.f32 %v2403, %v2622
      %v2684 = vadd.f32 %v2404, %v2624
      %v2685 = vadd.f32 %v2405, %v2627
      %v2686 = vadd.f32 %v2406, %v2629
      %v2687 = vadd.f32 %v2407, %v2632
      %v2688 = vadd.f32 %v2408, %v2634
      %v2689 = vadd.f32 %v2409, %v2637
      %v2690 = vadd.f32 %v2410, %v2639
      %v2691 = vadd.f32 %v2411, %v2642
      %v2692 = vadd.f32 %v2412, %v2644
      %v2693 = vadd.f32 %v2413, %v2647
      %v2694 = vadd.f32 %v2414, %v2649
      %v2695 = vadd.f32 %v2415, %v2652
      %v2696 = vld [vmem:[#allocation2 + $0x29] sm:$0xff]
      %v2697 = vld [vmem:[#allocation2 + $0x31] sm:$0xff]
      %v2698 = vld [vmem:[#allocation2 + $0x39] sm:$0xff]
      %v2699 = vld [vmem:[#allocation2 + $0x41] sm:$0xff]
      %v2700 = vld [vmem:[#allocation2 + $0x49] sm:$0xff]
      %v2701 = vld [vmem:[#allocation2 + $0x51] sm:$0xff]
      %v2702 = vld [vmem:[#allocation2 + $0x59] sm:$0xff]
      %v2703 = vld [vmem:[#allocation2 + $0x61] sm:$0xff]
      %v2704 = vld [vmem:[#allocation2 + $0x69] sm:$0xff]
      %v2705 = vld [vmem:[#allocation2 + $0x71] sm:$0xff]
      %v2706 = vld [vmem:[#allocation2 + $0x79] sm:$0xff]
      %v2707 = vld [vmem:[#allocation2 + $0x81] sm:$0xff]
      %v2708 = vld [vmem:[#allocation2 + $0x89] sm:$0xff]
      %v2709 = vld [vmem:[#allocation2 + $0x91] sm:$0xff]
      %v2710 = vld [vmem:[#allocation2 + $0x99] sm:$0xff]
      %v2711 = vld [vmem:[#allocation2 + $0xa1] sm:$0xff]
      %v2712 = vld [vmem:[#allocation2 + $0xa9] sm:$0xff]
      %v2713 = vld [vmem:[#allocation2 + $0xb1] sm:$0xff]
      %v2714 = vld [vmem:[#allocation2 + $0xb9] sm:$0xff]
      %v2715 = vld [vmem:[#allocation2 + $0xc1] sm:$0xff]
      %v2716 = vld [vmem:[#allocation2 + $0xc9] sm:$0xff]
      %v2717 = vld [vmem:[#allocation2 + $0xd1] sm:$0xff]
      %v2718 = vld [vmem:[#allocation2 + $0xd9] sm:$0xff]
      %v2719 = vld [vmem:[#allocation2 + $0xe1] sm:$0xff]
      %v2720 = vld [vmem:[#allocation2 + $0xe9] sm:$0xff]
      %v2721 = vld [vmem:[#allocation2 + $0xf1] sm:$0xff]
      %v2722 = vld [vmem:[#allocation2 + $0xf9] sm:$0xff]
      %v2723 = vld [vmem:[#allocation2 + $0x101] sm:$0xff]
      %v2724 = vld [vmem:[#allocation2 + $0x109] sm:$0xff]
      %v2725 = vld [vmem:[#allocation2 + $0x111] sm:$0xff]
      %v2726 = vld [vmem:[#allocation2 + $0x119] sm:$0xff]
      %v2727 = vld [vmem:[#allocation2 + $0x121] sm:$0xff]
      %v2728 = vld [vmem:[#allocation2 + $0x129] sm:$0xff]
      %v2729 = vld [vmem:[#allocation2 + $0x131] sm:$0xff]
      %v2730 = vld [vmem:[#allocation2 + $0x139] sm:$0xff]
      %v2731 = vld [vmem:[#allocation2 + $0x141] sm:$0xff]
      %v2732 = vld [vmem:[#allocation2 + $0x149] sm:$0xff]
      %v2733 = vld [vmem:[#allocation2 + $0x151] sm:$0xff]
      %v2734 = vld [vmem:[#allocation2 + $0x159] sm:$0xff]
      %v2735 = vld [vmem:[#allocation2 + $0x161] sm:$0xff]
      %v2736 = vld [vmem:[#allocation2 + $0x169] sm:$0xf]
      %v2737 = vpack.c.bf16 %v2697, %v2696
      %v2738 = vpack.c.bf16 %v2699, %v2698
      %v2739 = vpack.c.bf16 %v2701, %v2700
      %v2740 = vpack.c.bf16 %v2703, %v2702
      %v2741 = vpack.c.bf16 %v2705, %v2704
      %v2742 = vpack.c.bf16 %v2707, %v2706
      %v2743 = vpack.c.bf16 %v2709, %v2708
      %v2744 = vpack.c.bf16 %v2711, %v2710
      %v2745 = vpack.c.bf16 %v2713, %v2712
      %v2746 = vpack.c.bf16 %v2715, %v2714
      %v2747 = vpack.c.bf16 %v2717, %v2716
      %v2748 = vpack.c.bf16 %v2719, %v2718
      %v2749 = vpack.c.bf16 %v2721, %v2720
      %v2750 = vpack.c.bf16 %v2723, %v2722
      %v2751 = vpack.c.bf16 %v2725, %v2724
      %v2752 = vpack.c.bf16 %v2727, %v2726
      %v2753 = vpack.c.bf16 %v2729, %v2728
      %v2754 = vpack.c.bf16 %v2731, %v2730
      %v2755 = vpack.c.bf16 %v2733, %v2732
      %v2756 = vpack.c.bf16 %v2735, %v2734
      %v2757 = vpack.c.bf16 %v2736, %v2736
      %v2758 = vld [vmem:[%s4 + $0x180] sm:$0xf]
      %v2759 = vld [vmem:[%s4 + $0x184] sm:$0xf]
      %v2760 = vld [vmem:[%s4 + $0x188] sm:$0xf]
      %v2761 = vld [vmem:[%s4 + $0x18c] sm:$0xf]
      %v2762 = vld [vmem:[%s4 + $0x190] sm:$0xf]
      %v2763 = vld [vmem:[%s4 + $0x194] sm:$0xf]
      %v2764 = vld [vmem:[%s4 + $0x198] sm:$0xf]
      %v2765 = vld [vmem:[%s4 + $0x19c] sm:$0xf]
      %v2766 = vld [vmem:[%s4 + $0x1a0] sm:$0xf]
      %v2767 = vld [vmem:[%s4 + $0x1a4] sm:$0xf]
      %v2768 = vld [vmem:[%s4 + $0x1a8] sm:$0xf]
      %v2769 = vld [vmem:[%s4 + $0x1ac] sm:$0xf]
      %v2770 = vld [vmem:[%s4 + $0x1b0] sm:$0xf]
      %v2771 = vld [vmem:[%s4 + $0x1b4] sm:$0xf]
      %v2772 = vld [vmem:[%s4 + $0x1b8] sm:$0xf]
      %v2773 = vld [vmem:[%s4 + $0x1bc] sm:$0xf]
      %v2790 = vunpack.c.l.b16 %v2758
      %v2791 = vunpack.c.l.b16 %v2759
      %v2792 = vunpack.c.l.b16 %v2760
      %v2793 = vunpack.c.l.b16 %v2761
      %v2794 = vunpack.c.l.b16 %v2762
      %v2795 = vunpack.c.l.b16 %v2763
      %v2796 = vunpack.c.l.b16 %v2764
      %v2797 = vunpack.c.l.b16 %v2765
      %v2798 = vunpack.c.l.b16 %v2766
      %v2799 = vunpack.c.l.b16 %v2767
      %v2800 = vunpack.c.l.b16 %v2768
      %v2801 = vunpack.c.l.b16 %v2769
      %v2802 = vunpack.c.l.b16 %v2770
      %v2803 = vunpack.c.l.b16 %v2771
      %v2804 = vunpack.c.l.b16 %v2772
      %v2805 = vunpack.c.l.b16 %v2773
      %v2806 = vpack.c.b16 %v2791, %v2790
      %v2807 = vpack.c.b16 %v2793, %v2792
      %v2808 = vpack.c.b16 %v2795, %v2794
      %v2809 = vpack.c.b16 %v2797, %v2796
      %v2810 = vpack.c.b16 %v2799, %v2798
      %v2811 = vpack.c.b16 %v2801, %v2800
      %v2812 = vpack.c.b16 %v2803, %v2802
      %v2813 = vpack.c.b16 %v2805, %v2804
      %2822 = vmatpush.bf16.msra.mxu0 %v2813
      %2823 = vmatpush.bf16.msra.mxu0 %v2812
      %2824 = vmatpush.bf16.msra.mxu0 %v2811
      %2825 = vmatpush.bf16.msra.mxu0 %v2810
      %2826 = vmatpush.bf16.msra.mxu0 %v2809
      %2827 = vmatpush.bf16.msra.mxu0 %v2808
      %2828 = vmatpush.bf16.msra.mxu0 %v2807
      %2829 = vmatpush.bf16.msra.mxu0 %v2806
      %2830 = vmatmul.bf16.gmra.mxu0 %v2737
      %v2831 = vpop.f32.mrf.mxu0
      %v2832 = vadd.f32 0.0, %v2831
      %v2833 = vpop.f32.mrf.mxu0
      %v2834 = vadd.f32 0.0, %v2833
      %2835 = vmatmul.bf16.gmra.mxu0 %v2738
      %v2836 = vpop.f32.mrf.mxu0
      %v2837 = vadd.f32 0.0, %v2836
      %v2838 = vpop.f32.mrf.mxu0
      %v2839 = vadd.f32 0.0, %v2838
      %2840 = vmatmul.bf16.gmra.mxu0 %v2739
      %v2841 = vpop.f32.mrf.mxu0
      %v2842 = vadd.f32 0.0, %v2841
      %v2843 = vpop.f32.mrf.mxu0
      %v2844 = vadd.f32 0.0, %v2843
      %2845 = vmatmul.bf16.gmra.mxu0 %v2740
      %v2846 = vpop.f32.mrf.mxu0
      %v2847 = vadd.f32 0.0, %v2846
      %v2848 = vpop.f32.mrf.mxu0
      %v2849 = vadd.f32 0.0, %v2848
      %2850 = vmatmul.bf16.gmra.mxu0 %v2741
      %v2851 = vpop.f32.mrf.mxu0
      %v2852 = vadd.f32 0.0, %v2851
      %v2853 = vpop.f32.mrf.mxu0
      %v2854 = vadd.f32 0.0, %v2853
      %2855 = vmatmul.bf16.gmra.mxu0 %v2742
      %v2856 = vpop.f32.mrf.mxu0
      %v2857 = vadd.f32 0.0, %v2856
      %v2858 = vpop.f32.mrf.mxu0
      %v2859 = vadd.f32 0.0, %v2858
      %2860 = vmatmul.bf16.gmra.mxu0 %v2743
      %v2861 = vpop.f32.mrf.mxu0
      %v2862 = vadd.f32 0.0, %v2861
      %v2863 = vpop.f32.mrf.mxu0
      %v2864 = vadd.f32 0.0, %v2863
      %2865 = vmatmul.bf16.gmra.mxu0 %v2744
      %v2866 = vpop.f32.mrf.mxu0
      %v2867 = vadd.f32 0.0, %v2866
      %v2868 = vpop.f32.mrf.mxu0
      %v2869 = vadd.f32 0.0, %v2868
      %2870 = vmatmul.bf16.gmra.mxu0 %v2745
      %v2871 = vpop.f32.mrf.mxu0
      %v2872 = vadd.f32 0.0, %v2871
      %v2873 = vpop.f32.mrf.mxu0
      %v2874 = vadd.f32 0.0, %v2873
      %2875 = vmatmul.bf16.gmra.mxu0 %v2746
      %v2876 = vpop.f32.mrf.mxu0
      %v2877 = vadd.f32 0.0, %v2876
      %v2878 = vpop.f32.mrf.mxu0
      %v2879 = vadd.f32 0.0, %v2878
      %2880 = vmatmul.bf16.gmra.mxu0 %v2747
      %v2881 = vpop.f32.mrf.mxu0
      %v2882 = vadd.f32 0.0, %v2881
      %v2883 = vpop.f32.mrf.mxu0
      %v2884 = vadd.f32 0.0, %v2883
      %2885 = vmatmul.bf16.gmra.mxu0 %v2748
      %v2886 = vpop.f32.mrf.mxu0
      %v2887 = vadd.f32 0.0, %v2886
      %v2888 = vpop.f32.mrf.mxu0
      %v2889 = vadd.f32 0.0, %v2888
      %2890 = vmatmul.bf16.gmra.mxu0 %v2749
      %v2891 = vpop.f32.mrf.mxu0
      %v2892 = vadd.f32 0.0, %v2891
      %v2893 = vpop.f32.mrf.mxu0
      %v2894 = vadd.f32 0.0, %v2893
      %2895 = vmatmul.bf16.gmra.mxu0 %v2750
      %v2896 = vpop.f32.mrf.mxu0
      %v2897 = vadd.f32 0.0, %v2896
      %v2898 = vpop.f32.mrf.mxu0
      %v2899 = vadd.f32 0.0, %v2898
      %2900 = vmatmul.bf16.gmra.mxu0 %v2751
      %v2901 = vpop.f32.mrf.mxu0
      %v2902 = vadd.f32 0.0, %v2901
      %v2903 = vpop.f32.mrf.mxu0
      %v2904 = vadd.f32 0.0, %v2903
      %2905 = vmatmul.bf16.gmra.mxu0 %v2752
      %v2906 = vpop.f32.mrf.mxu0
      %v2907 = vadd.f32 0.0, %v2906
      %v2908 = vpop.f32.mrf.mxu0
      %v2909 = vadd.f32 0.0, %v2908
      %2910 = vmatmul.bf16.gmra.mxu0 %v2753
      %v2911 = vpop.f32.mrf.mxu0
      %v2912 = vadd.f32 0.0, %v2911
      %v2913 = vpop.f32.mrf.mxu0
      %v2914 = vadd.f32 0.0, %v2913
      %2915 = vmatmul.bf16.gmra.mxu0 %v2754
      %v2916 = vpop.f32.mrf.mxu0
      %v2917 = vadd.f32 0.0, %v2916
      %v2918 = vpop.f32.mrf.mxu0
      %v2919 = vadd.f32 0.0, %v2918
      %2920 = vmatmul.bf16.gmra.mxu0 %v2755
      %v2921 = vpop.f32.mrf.mxu0
      %v2922 = vadd.f32 0.0, %v2921
      %v2923 = vpop.f32.mrf.mxu0
      %v2924 = vadd.f32 0.0, %v2923
      %2925 = vmatmul.bf16.gmra.mxu0 %v2756
      %v2926 = vpop.f32.mrf.mxu0
      %v2927 = vadd.f32 0.0, %v2926
      %v2928 = vpop.f32.mrf.mxu0
      %v2929 = vadd.f32 0.0, %v2928
      %2930 = vmatmul.bf16.gmra.mxu0 %v2757
      %v2931 = vpop.f32.mrf.mxu0
      %v2932 = vadd.f32 0.0, %v2931
      %v2933 = vpop.f32.mrf.mxu0
      %2934 = vdwg.mxu0
      %v2935 = vadd.f32 %v2655, %v2832
      %v2936 = vadd.f32 %v2656, %v2834
      %v2937 = vadd.f32 %v2657, %v2837
      %v2938 = vadd.f32 %v2658, %v2839
      %v2939 = vadd.f32 %v2659, %v2842
      %v2940 = vadd.f32 %v2660, %v2844
      %v2941 = vadd.f32 %v2661, %v2847
      %v2942 = vadd.f32 %v2662, %v2849
      %v2943 = vadd.f32 %v2663, %v2852
      %v2944 = vadd.f32 %v2664, %v2854
      %v2945 = vadd.f32 %v2665, %v2857
      %v2946 = vadd.f32 %v2666, %v2859
      %v2947 = vadd.f32 %v2667, %v2862
      %v2948 = vadd.f32 %v2668, %v2864
      %v2949 = vadd.f32 %v2669, %v2867
      %v2950 = vadd.f32 %v2670, %v2869
      %v2951 = vadd.f32 %v2671, %v2872
      %v2952 = vadd.f32 %v2672, %v2874
      %v2953 = vadd.f32 %v2673, %v2877
      %v2954 = vadd.f32 %v2674, %v2879
      %v2955 = vadd.f32 %v2675, %v2882
      %v2956 = vadd.f32 %v2676, %v2884
      %v2957 = vadd.f32 %v2677, %v2887
      %v2958 = vadd.f32 %v2678, %v2889
      %v2959 = vadd.f32 %v2679, %v2892
      %v2960 = vadd.f32 %v2680, %v2894
      %v2961 = vadd.f32 %v2681, %v2897
      %v2962 = vadd.f32 %v2682, %v2899
      %v2963 = vadd.f32 %v2683, %v2902
      %v2964 = vadd.f32 %v2684, %v2904
      %v2965 = vadd.f32 %v2685, %v2907
      %v2966 = vadd.f32 %v2686, %v2909
      %v2967 = vadd.f32 %v2687, %v2912
      %v2968 = vadd.f32 %v2688, %v2914
      %v2969 = vadd.f32 %v2689, %v2917
      %v2970 = vadd.f32 %v2690, %v2919
      %v2971 = vadd.f32 %v2691, %v2922
      %v2972 = vadd.f32 %v2692, %v2924
      %v2973 = vadd.f32 %v2693, %v2927
      %v2974 = vadd.f32 %v2694, %v2929
      %v2975 = vadd.f32 %v2695, %v2932
      %v2976 = vld [vmem:[#allocation2 + $0x2a] sm:$0xff]
      %v2977 = vld [vmem:[#allocation2 + $0x32] sm:$0xff]
      %v2978 = vld [vmem:[#allocation2 + $0x3a] sm:$0xff]
      %v2979 = vld [vmem:[#allocation2 + $0x42] sm:$0xff]
      %v2980 = vld [vmem:[#allocation2 + $0x4a] sm:$0xff]
      %v2981 = vld [vmem:[#allocation2 + $0x52] sm:$0xff]
      %v2982 = vld [vmem:[#allocation2 + $0x5a] sm:$0xff]
      %v2983 = vld [vmem:[#allocation2 + $0x62] sm:$0xff]
      %v2984 = vld [vmem:[#allocation2 + $0x6a] sm:$0xff]
      %v2985 = vld [vmem:[#allocation2 + $0x72] sm:$0xff]
      %v2986 = vld [vmem:[#allocation2 + $0x7a] sm:$0xff]
      %v2987 = vld [vmem:[#allocation2 + $0x82] sm:$0xff]
      %v2988 = vld [vmem:[#allocation2 + $0x8a] sm:$0xff]
      %v2989 = vld [vmem:[#allocation2 + $0x92] sm:$0xff]
      %v2990 = vld [vmem:[#allocation2 + $0x9a] sm:$0xff]
      %v2991 = vld [vmem:[#allocation2 + $0xa2] sm:$0xff]
      %v2992 = vld [vmem:[#allocation2 + $0xaa] sm:$0xff]
      %v2993 = vld [vmem:[#allocation2 + $0xb2] sm:$0xff]
      %v2994 = vld [vmem:[#allocation2 + $0xba] sm:$0xff]
      %v2995 = vld [vmem:[#allocation2 + $0xc2] sm:$0xff]
      %v2996 = vld [vmem:[#allocation2 + $0xca] sm:$0xff]
      %v2997 = vld [vmem:[#allocation2 + $0xd2] sm:$0xff]
      %v2998 = vld [vmem:[#allocation2 + $0xda] sm:$0xff]
      %v2999 = vld [vmem:[#allocation2 + $0xe2] sm:$0xff]
      %v3000 = vld [vmem:[#allocation2 + $0xea] sm:$0xff]
      %v3001 = vld [vmem:[#allocation2 + $0xf2] sm:$0xff]
      %v3002 = vld [vmem:[#allocation2 + $0xfa] sm:$0xff]
      %v3003 = vld [vmem:[#allocation2 + $0x102] sm:$0xff]
      %v3004 = vld [vmem:[#allocation2 + $0x10a] sm:$0xff]
      %v3005 = vld [vmem:[#allocation2 + $0x112] sm:$0xff]
      %v3006 = vld [vmem:[#allocation2 + $0x11a] sm:$0xff]
      %v3007 = vld [vmem:[#allocation2 + $0x122] sm:$0xff]
      %v3008 = vld [vmem:[#allocation2 + $0x12a] sm:$0xff]
      %v3009 = vld [vmem:[#allocation2 + $0x132] sm:$0xff]
      %v3010 = vld [vmem:[#allocation2 + $0x13a] sm:$0xff]
      %v3011 = vld [vmem:[#allocation2 + $0x142] sm:$0xff]
      %v3012 = vld [vmem:[#allocation2 + $0x14a] sm:$0xff]
      %v3013 = vld [vmem:[#allocation2 + $0x152] sm:$0xff]
      %v3014 = vld [vmem:[#allocation2 + $0x15a] sm:$0xff]
      %v3015 = vld [vmem:[#allocation2 + $0x162] sm:$0xff]
      %v3016 = vld [vmem:[#allocation2 + $0x16a] sm:$0xf]
      %v3017 = vpack.c.bf16 %v2977, %v2976
      %v3018 = vpack.c.bf16 %v2979, %v2978
      %v3019 = vpack.c.bf16 %v2981, %v2980
      %v3020 = vpack.c.bf16 %v2983, %v2982
      %v3021 = vpack.c.bf16 %v2985, %v2984
      %v3022 = vpack.c.bf16 %v2987, %v2986
      %v3023 = vpack.c.bf16 %v2989, %v2988
      %v3024 = vpack.c.bf16 %v2991, %v2990
      %v3025 = vpack.c.bf16 %v2993, %v2992
      %v3026 = vpack.c.bf16 %v2995, %v2994
      %v3027 = vpack.c.bf16 %v2997, %v2996
      %v3028 = vpack.c.bf16 %v2999, %v2998
      %v3029 = vpack.c.bf16 %v3001, %v3000
      %v3030 = vpack.c.bf16 %v3003, %v3002
      %v3031 = vpack.c.bf16 %v3005, %v3004
      %v3032 = vpack.c.bf16 %v3007, %v3006
      %v3033 = vpack.c.bf16 %v3009, %v3008
      %v3034 = vpack.c.bf16 %v3011, %v3010
      %v3035 = vpack.c.bf16 %v3013, %v3012
      %v3036 = vpack.c.bf16 %v3015, %v3014
      %v3037 = vpack.c.bf16 %v3016, %v3016
      %v3038 = vld [vmem:[%s4 + $0x1c0] sm:$0xf]
      %v3039 = vld [vmem:[%s4 + $0x1c4] sm:$0xf]
      %v3040 = vld [vmem:[%s4 + $0x1c8] sm:$0xf]
      %v3041 = vld [vmem:[%s4 + $0x1cc] sm:$0xf]
      %v3042 = vld [vmem:[%s4 + $0x1d0] sm:$0xf]
      %v3043 = vld [vmem:[%s4 + $0x1d4] sm:$0xf]
      %v3044 = vld [vmem:[%s4 + $0x1d8] sm:$0xf]
      %v3045 = vld [vmem:[%s4 + $0x1dc] sm:$0xf]
      %v3046 = vld [vmem:[%s4 + $0x1e0] sm:$0xf]
      %v3047 = vld [vmem:[%s4 + $0x1e4] sm:$0xf]
      %v3048 = vld [vmem:[%s4 + $0x1e8] sm:$0xf]
      %v3049 = vld [vmem:[%s4 + $0x1ec] sm:$0xf]
      %v3050 = vld [vmem:[%s4 + $0x1f0] sm:$0xf]
      %v3051 = vld [vmem:[%s4 + $0x1f4] sm:$0xf]
      %v3052 = vld [vmem:[%s4 + $0x1f8] sm:$0xf]
      %v3053 = vld [vmem:[%s4 + $0x1fc] sm:$0xf]
      %v3070 = vunpack.c.l.b16 %v3038
      %v3071 = vunpack.c.l.b16 %v3039
      %v3072 = vunpack.c.l.b16 %v3040
      %v3073 = vunpack.c.l.b16 %v3041
      %v3074 = vunpack.c.l.b16 %v3042
      %v3075 = vunpack.c.l.b16 %v3043
      %v3076 = vunpack.c.l.b16 %v3044
      %v3077 = vunpack.c.l.b16 %v3045
      %v3078 = vunpack.c.l.b16 %v3046
      %v3079 = vunpack.c.l.b16 %v3047
      %v3080 = vunpack.c.l.b16 %v3048
      %v3081 = vunpack.c.l.b16 %v3049
      %v3082 = vunpack.c.l.b16 %v3050
      %v3083 = vunpack.c.l.b16 %v3051
      %v3084 = vunpack.c.l.b16 %v3052
      %v3085 = vunpack.c.l.b16 %v3053
      %v3086 = vpack.c.b16 %v3071, %v3070
      %v3087 = vpack.c.b16 %v3073, %v3072
      %v3088 = vpack.c.b16 %v3075, %v3074
      %v3089 = vpack.c.b16 %v3077, %v3076
      %v3090 = vpack.c.b16 %v3079, %v3078
      %v3091 = vpack.c.b16 %v3081, %v3080
      %v3092 = vpack.c.b16 %v3083, %v3082
      %v3093 = vpack.c.b16 %v3085, %v3084
      %3102 = vmatpush.bf16.msra.mxu0 %v3093
      %3103 = vmatpush.bf16.msra.mxu0 %v3092
      %3104 = vmatpush.bf16.msra.mxu0 %v3091
      %3105 = vmatpush.bf16.msra.mxu0 %v3090
      %3106 = vmatpush.bf16.msra.mxu0 %v3089
      %3107 = vmatpush.bf16.msra.mxu0 %v3088
      %3108 = vmatpush.bf16.msra.mxu0 %v3087
      %3109 = vmatpush.bf16.msra.mxu0 %v3086
      %3110 = vmatmul.bf16.gmra.mxu0 %v3017
      %v3111 = vpop.f32.mrf.mxu0
      %v3112 = vadd.f32 0.0, %v3111
      %v3113 = vpop.f32.mrf.mxu0
      %v3114 = vadd.f32 0.0, %v3113
      %3115 = vmatmul.bf16.gmra.mxu0 %v3018
      %v3116 = vpop.f32.mrf.mxu0
      %v3117 = vadd.f32 0.0, %v3116
      %v3118 = vpop.f32.mrf.mxu0
      %v3119 = vadd.f32 0.0, %v3118
      %3120 = vmatmul.bf16.gmra.mxu0 %v3019
      %v3121 = vpop.f32.mrf.mxu0
      %v3122 = vadd.f32 0.0, %v3121
      %v3123 = vpop.f32.mrf.mxu0
      %v3124 = vadd.f32 0.0, %v3123
      %3125 = vmatmul.bf16.gmra.mxu0 %v3020
      %v3126 = vpop.f32.mrf.mxu0
      %v3127 = vadd.f32 0.0, %v3126
      %v3128 = vpop.f32.mrf.mxu0
      %v3129 = vadd.f32 0.0, %v3128
      %3130 = vmatmul.bf16.gmra.mxu0 %v3021
      %v3131 = vpop.f32.mrf.mxu0
      %v3132 = vadd.f32 0.0, %v3131
      %v3133 = vpop.f32.mrf.mxu0
      %v3134 = vadd.f32 0.0, %v3133
      %3135 = vmatmul.bf16.gmra.mxu0 %v3022
      %v3136 = vpop.f32.mrf.mxu0
      %v3137 = vadd.f32 0.0, %v3136
      %v3138 = vpop.f32.mrf.mxu0
      %v3139 = vadd.f32 0.0, %v3138
      %3140 = vmatmul.bf16.gmra.mxu0 %v3023
      %v3141 = vpop.f32.mrf.mxu0
      %v3142 = vadd.f32 0.0, %v3141
      %v3143 = vpop.f32.mrf.mxu0
      %v3144 = vadd.f32 0.0, %v3143
      %3145 = vmatmul.bf16.gmra.mxu0 %v3024
      %v3146 = vpop.f32.mrf.mxu0
      %v3147 = vadd.f32 0.0, %v3146
      %v3148 = vpop.f32.mrf.mxu0
      %v3149 = vadd.f32 0.0, %v3148
      %3150 = vmatmul.bf16.gmra.mxu0 %v3025
      %v3151 = vpop.f32.mrf.mxu0
      %v3152 = vadd.f32 0.0, %v3151
      %v3153 = vpop.f32.mrf.mxu0
      %v3154 = vadd.f32 0.0, %v3153
      %3155 = vmatmul.bf16.gmra.mxu0 %v3026
      %v3156 = vpop.f32.mrf.mxu0
      %v3157 = vadd.f32 0.0, %v3156
      %v3158 = vpop.f32.mrf.mxu0
      %v3159 = vadd.f32 0.0, %v3158
      %3160 = vmatmul.bf16.gmra.mxu0 %v3027
      %v3161 = vpop.f32.mrf.mxu0
      %v3162 = vadd.f32 0.0, %v3161
      %v3163 = vpop.f32.mrf.mxu0
      %v3164 = vadd.f32 0.0, %v3163
      %3165 = vmatmul.bf16.gmra.mxu0 %v3028
      %v3166 = vpop.f32.mrf.mxu0
      %v3167 = vadd.f32 0.0, %v3166
      %v3168 = vpop.f32.mrf.mxu0
      %v3169 = vadd.f32 0.0, %v3168
      %3170 = vmatmul.bf16.gmra.mxu0 %v3029
      %v3171 = vpop.f32.mrf.mxu0
      %v3172 = vadd.f32 0.0, %v3171
      %v3173 = vpop.f32.mrf.mxu0
      %v3174 = vadd.f32 0.0, %v3173
      %3175 = vmatmul.bf16.gmra.mxu0 %v3030
      %v3176 = vpop.f32.mrf.mxu0
      %v3177 = vadd.f32 0.0, %v3176
      %v3178 = vpop.f32.mrf.mxu0
      %v3179 = vadd.f32 0.0, %v3178
      %3180 = vmatmul.bf16.gmra.mxu0 %v3031
      %v3181 = vpop.f32.mrf.mxu0
      %v3182 = vadd.f32 0.0, %v3181
      %v3183 = vpop.f32.mrf.mxu0
      %v3184 = vadd.f32 0.0, %v3183
      %3185 = vmatmul.bf16.gmra.mxu0 %v3032
      %v3186 = vpop.f32.mrf.mxu0
      %v3187 = vadd.f32 0.0, %v3186
      %v3188 = vpop.f32.mrf.mxu0
      %v3189 = vadd.f32 0.0, %v3188
      %3190 = vmatmul.bf16.gmra.mxu0 %v3033
      %v3191 = vpop.f32.mrf.mxu0
      %v3192 = vadd.f32 0.0, %v3191
      %v3193 = vpop.f32.mrf.mxu0
      %v3194 = vadd.f32 0.0, %v3193
      %3195 = vmatmul.bf16.gmra.mxu0 %v3034
      %v3196 = vpop.f32.mrf.mxu0
      %v3197 = vadd.f32 0.0, %v3196
      %v3198 = vpop.f32.mrf.mxu0
      %v3199 = vadd.f32 0.0, %v3198
      %3200 = vmatmul.bf16.gmra.mxu0 %v3035
      %v3201 = vpop.f32.mrf.mxu0
      %v3202 = vadd.f32 0.0, %v3201
      %v3203 = vpop.f32.mrf.mxu0
      %v3204 = vadd.f32 0.0, %v3203
      %3205 = vmatmul.bf16.gmra.mxu0 %v3036
      %v3206 = vpop.f32.mrf.mxu0
      %v3207 = vadd.f32 0.0, %v3206
      %v3208 = vpop.f32.mrf.mxu0
      %v3209 = vadd.f32 0.0, %v3208
      %3210 = vmatmul.bf16.gmra.mxu0 %v3037
      %v3211 = vpop.f32.mrf.mxu0
      %v3212 = vadd.f32 0.0, %v3211
      %v3213 = vpop.f32.mrf.mxu0
      %3214 = vdwg.mxu0
      %v3215 = vadd.f32 %v2935, %v3112
      %v3216 = vadd.f32 %v2936, %v3114
      %v3217 = vadd.f32 %v2937, %v3117
      %v3218 = vadd.f32 %v2938, %v3119
      %v3219 = vadd.f32 %v2939, %v3122
      %v3220 = vadd.f32 %v2940, %v3124
      %v3221 = vadd.f32 %v2941, %v3127
      %v3222 = vadd.f32 %v2942, %v3129
      %v3223 = vadd.f32 %v2943, %v3132
      %v3224 = vadd.f32 %v2944, %v3134
      %v3225 = vadd.f32 %v2945, %v3137
      %v3226 = vadd.f32 %v2946, %v3139
      %v3227 = vadd.f32 %v2947, %v3142
      %v3228 = vadd.f32 %v2948, %v3144
      %v3229 = vadd.f32 %v2949, %v3147
      %v3230 = vadd.f32 %v2950, %v3149
      %v3231 = vadd.f32 %v2951, %v3152
      %v3232 = vadd.f32 %v2952, %v3154
      %v3233 = vadd.f32 %v2953, %v3157
      %v3234 = vadd.f32 %v2954, %v3159
      %v3235 = vadd.f32 %v2955, %v3162
      %v3236 = vadd.f32 %v2956, %v3164
      %v3237 = vadd.f32 %v2957, %v3167
      %v3238 = vadd.f32 %v2958, %v3169
      %v3239 = vadd.f32 %v2959, %v3172
      %v3240 = vadd.f32 %v2960, %v3174
      %v3241 = vadd.f32 %v2961, %v3177
      %v3242 = vadd.f32 %v2962, %v3179
      %v3243 = vadd.f32 %v2963, %v3182
      %v3244 = vadd.f32 %v2964, %v3184
      %v3245 = vadd.f32 %v2965, %v3187
      %v3246 = vadd.f32 %v2966, %v3189
      %v3247 = vadd.f32 %v2967, %v3192
      %v3248 = vadd.f32 %v2968, %v3194
      %v3249 = vadd.f32 %v2969, %v3197
      %v3250 = vadd.f32 %v2970, %v3199
      %v3251 = vadd.f32 %v2971, %v3202
      %v3252 = vadd.f32 %v2972, %v3204
      %v3253 = vadd.f32 %v2973, %v3207
      %v3254 = vadd.f32 %v2974, %v3209
      %v3255 = vadd.f32 %v2975, %v3212
      %v3256 = vld [vmem:[#allocation2 + $0x2b] sm:$0xff]
      %v3257 = vld [vmem:[#allocation2 + $0x33] sm:$0xff]
      %v3258 = vld [vmem:[#allocation2 + $0x3b] sm:$0xff]
      %v3259 = vld [vmem:[#allocation2 + $0x43] sm:$0xff]
      %v3260 = vld [vmem:[#allocation2 + $0x4b] sm:$0xff]
      %v3261 = vld [vmem:[#allocation2 + $0x53] sm:$0xff]
      %v3262 = vld [vmem:[#allocation2 + $0x5b] sm:$0xff]
      %v3263 = vld [vmem:[#allocation2 + $0x63] sm:$0xff]
      %v3264 = vld [vmem:[#allocation2 + $0x6b] sm:$0xff]
      %v3265 = vld [vmem:[#allocation2 + $0x73] sm:$0xff]
      %v3266 = vld [vmem:[#allocation2 + $0x7b] sm:$0xff]
      %v3267 = vld [vmem:[#allocation2 + $0x83] sm:$0xff]
      %v3268 = vld [vmem:[#allocation2 + $0x8b] sm:$0xff]
      %v3269 = vld [vmem:[#allocation2 + $0x93] sm:$0xff]
      %v3270 = vld [vmem:[#allocation2 + $0x9b] sm:$0xff]
      %v3271 = vld [vmem:[#allocation2 + $0xa3] sm:$0xff]
      %v3272 = vld [vmem:[#allocation2 + $0xab] sm:$0xff]
      %v3273 = vld [vmem:[#allocation2 + $0xb3] sm:$0xff]
      %v3274 = vld [vmem:[#allocation2 + $0xbb] sm:$0xff]
      %v3275 = vld [vmem:[#allocation2 + $0xc3] sm:$0xff]
      %v3276 = vld [vmem:[#allocation2 + $0xcb] sm:$0xff]
      %v3277 = vld [vmem:[#allocation2 + $0xd3] sm:$0xff]
      %v3278 = vld [vmem:[#allocation2 + $0xdb] sm:$0xff]
      %v3279 = vld [vmem:[#allocation2 + $0xe3] sm:$0xff]
      %v3280 = vld [vmem:[#allocation2 + $0xeb] sm:$0xff]
      %v3281 = vld [vmem:[#allocation2 + $0xf3] sm:$0xff]
      %v3282 = vld [vmem:[#allocation2 + $0xfb] sm:$0xff]
      %v3283 = vld [vmem:[#allocation2 + $0x103] sm:$0xff]
      %v3284 = vld [vmem:[#allocation2 + $0x10b] sm:$0xff]
      %v3285 = vld [vmem:[#allocation2 + $0x113] sm:$0xff]
      %v3286 = vld [vmem:[#allocation2 + $0x11b] sm:$0xff]
      %v3287 = vld [vmem:[#allocation2 + $0x123] sm:$0xff]
      %v3288 = vld [vmem:[#allocation2 + $0x12b] sm:$0xff]
      %v3289 = vld [vmem:[#allocation2 + $0x133] sm:$0xff]
      %v3290 = vld [vmem:[#allocation2 + $0x13b] sm:$0xff]
      %v3291 = vld [vmem:[#allocation2 + $0x143] sm:$0xff]
      %v3292 = vld [vmem:[#allocation2 + $0x14b] sm:$0xff]
      %v3293 = vld [vmem:[#allocation2 + $0x153] sm:$0xff]
      %v3294 = vld [vmem:[#allocation2 + $0x15b] sm:$0xff]
      %v3295 = vld [vmem:[#allocation2 + $0x163] sm:$0xff]
      %v3296 = vld [vmem:[#allocation2 + $0x16b] sm:$0xf]
      %v3297 = vpack.c.bf16 %v3257, %v3256
      %v3298 = vpack.c.bf16 %v3259, %v3258
      %v3299 = vpack.c.bf16 %v3261, %v3260
      %v3300 = vpack.c.bf16 %v3263, %v3262
      %v3301 = vpack.c.bf16 %v3265, %v3264
      %v3302 = vpack.c.bf16 %v3267, %v3266
      %v3303 = vpack.c.bf16 %v3269, %v3268
      %v3304 = vpack.c.bf16 %v3271, %v3270
      %v3305 = vpack.c.bf16 %v3273, %v3272
      %v3306 = vpack.c.bf16 %v3275, %v3274
      %v3307 = vpack.c.bf16 %v3277, %v3276
      %v3308 = vpack.c.bf16 %v3279, %v3278
      %v3309 = vpack.c.bf16 %v3281, %v3280
      %v3310 = vpack.c.bf16 %v3283, %v3282
      %v3311 = vpack.c.bf16 %v3285, %v3284
      %v3312 = vpack.c.bf16 %v3287, %v3286
      %v3313 = vpack.c.bf16 %v3289, %v3288
      %v3314 = vpack.c.bf16 %v3291, %v3290
      %v3315 = vpack.c.bf16 %v3293, %v3292
      %v3316 = vpack.c.bf16 %v3295, %v3294
      %v3317 = vpack.c.bf16 %v3296, %v3296
      %v3318 = vld [vmem:[%s4 + $0x200] sm:$0xf]
      %v3319 = vld [vmem:[%s4 + $0x204] sm:$0xf]
      %v3320 = vld [vmem:[%s4 + $0x208] sm:$0xf]
      %v3321 = vld [vmem:[%s4 + $0x20c] sm:$0xf]
      %v3322 = vld [vmem:[%s4 + $0x210] sm:$0xf]
      %v3323 = vld [vmem:[%s4 + $0x214] sm:$0xf]
      %v3324 = vld [vmem:[%s4 + $0x218] sm:$0xf]
      %v3325 = vld [vmem:[%s4 + $0x21c] sm:$0xf]
      %v3326 = vld [vmem:[%s4 + $0x220] sm:$0xf]
      %v3327 = vld [vmem:[%s4 + $0x224] sm:$0xf]
      %v3328 = vld [vmem:[%s4 + $0x228] sm:$0xf]
      %v3329 = vld [vmem:[%s4 + $0x22c] sm:$0xf]
      %v3330 = vld [vmem:[%s4 + $0x230] sm:$0xf]
      %v3331 = vld [vmem:[%s4 + $0x234] sm:$0xf]
      %v3332 = vld [vmem:[%s4 + $0x238] sm:$0xf]
      %v3333 = vld [vmem:[%s4 + $0x23c] sm:$0xf]
      %v3350 = vunpack.c.l.b16 %v3318
      %v3351 = vunpack.c.l.b16 %v3319
      %v3352 = vunpack.c.l.b16 %v3320
      %v3353 = vunpack.c.l.b16 %v3321
      %v3354 = vunpack.c.l.b16 %v3322
      %v3355 = vunpack.c.l.b16 %v3323
      %v3356 = vunpack.c.l.b16 %v3324
      %v3357 = vunpack.c.l.b16 %v3325
      %v3358 = vunpack.c.l.b16 %v3326
      %v3359 = vunpack.c.l.b16 %v3327
      %v3360 = vunpack.c.l.b16 %v3328
      %v3361 = vunpack.c.l.b16 %v3329
      %v3362 = vunpack.c.l.b16 %v3330
      %v3363 = vunpack.c.l.b16 %v3331
      %v3364 = vunpack.c.l.b16 %v3332
      %v3365 = vunpack.c.l.b16 %v3333
      %v3366 = vpack.c.b16 %v3351, %v3350
      %v3367 = vpack.c.b16 %v3353, %v3352
      %v3368 = vpack.c.b16 %v3355, %v3354
      %v3369 = vpack.c.b16 %v3357, %v3356
      %v3370 = vpack.c.b16 %v3359, %v3358
      %v3371 = vpack.c.b16 %v3361, %v3360
      %v3372 = vpack.c.b16 %v3363, %v3362
      %v3373 = vpack.c.b16 %v3365, %v3364
      %3382 = vmatpush.bf16.msra.mxu0 %v3373
      %3383 = vmatpush.bf16.msra.mxu0 %v3372
      %3384 = vmatpush.bf16.msra.mxu0 %v3371
      %3385 = vmatpush.bf16.msra.mxu0 %v3370
      %3386 = vmatpush.bf16.msra.mxu0 %v3369
      %3387 = vmatpush.bf16.msra.mxu0 %v3368
      %3388 = vmatpush.bf16.msra.mxu0 %v3367
      %3389 = vmatpush.bf16.msra.mxu0 %v3366
      %3390 = vmatmul.bf16.gmra.mxu0 %v3297
      %v3391 = vpop.f32.mrf.mxu0
      %v3392 = vadd.f32 0.0, %v3391
      %v3393 = vpop.f32.mrf.mxu0
      %v3394 = vadd.f32 0.0, %v3393
      %3395 = vmatmul.bf16.gmra.mxu0 %v3298
      %v3396 = vpop.f32.mrf.mxu0
      %v3397 = vadd.f32 0.0, %v3396
      %v3398 = vpop.f32.mrf.mxu0
      %v3399 = vadd.f32 0.0, %v3398
      %3400 = vmatmul.bf16.gmra.mxu0 %v3299
      %v3401 = vpop.f32.mrf.mxu0
      %v3402 = vadd.f32 0.0, %v3401
      %v3403 = vpop.f32.mrf.mxu0
      %v3404 = vadd.f32 0.0, %v3403
      %3405 = vmatmul.bf16.gmra.mxu0 %v3300
      %v3406 = vpop.f32.mrf.mxu0
      %v3407 = vadd.f32 0.0, %v3406
      %v3408 = vpop.f32.mrf.mxu0
      %v3409 = vadd.f32 0.0, %v3408
      %3410 = vmatmul.bf16.gmra.mxu0 %v3301
      %v3411 = vpop.f32.mrf.mxu0
      %v3412 = vadd.f32 0.0, %v3411
      %v3413 = vpop.f32.mrf.mxu0
      %v3414 = vadd.f32 0.0, %v3413
      %3415 = vmatmul.bf16.gmra.mxu0 %v3302
      %v3416 = vpop.f32.mrf.mxu0
      %v3417 = vadd.f32 0.0, %v3416
      %v3418 = vpop.f32.mrf.mxu0
      %v3419 = vadd.f32 0.0, %v3418
      %3420 = vmatmul.bf16.gmra.mxu0 %v3303
      %v3421 = vpop.f32.mrf.mxu0
      %v3422 = vadd.f32 0.0, %v3421
      %v3423 = vpop.f32.mrf.mxu0
      %v3424 = vadd.f32 0.0, %v3423
      %3425 = vmatmul.bf16.gmra.mxu0 %v3304
      %v3426 = vpop.f32.mrf.mxu0
      %v3427 = vadd.f32 0.0, %v3426
      %v3428 = vpop.f32.mrf.mxu0
      %v3429 = vadd.f32 0.0, %v3428
      %3430 = vmatmul.bf16.gmra.mxu0 %v3305
      %v3431 = vpop.f32.mrf.mxu0
      %v3432 = vadd.f32 0.0, %v3431
      %v3433 = vpop.f32.mrf.mxu0
      %v3434 = vadd.f32 0.0, %v3433
      %3435 = vmatmul.bf16.gmra.mxu0 %v3306
      %v3436 = vpop.f32.mrf.mxu0
      %v3437 = vadd.f32 0.0, %v3436
      %v3438 = vpop.f32.mrf.mxu0
      %v3439 = vadd.f32 0.0, %v3438
      %3440 = vmatmul.bf16.gmra.mxu0 %v3307
      %v3441 = vpop.f32.mrf.mxu0
      %v3442 = vadd.f32 0.0, %v3441
      %v3443 = vpop.f32.mrf.mxu0
      %v3444 = vadd.f32 0.0, %v3443
      %3445 = vmatmul.bf16.gmra.mxu0 %v3308
      %v3446 = vpop.f32.mrf.mxu0
      %v3447 = vadd.f32 0.0, %v3446
      %v3448 = vpop.f32.mrf.mxu0
      %v3449 = vadd.f32 0.0, %v3448
      %3450 = vmatmul.bf16.gmra.mxu0 %v3309
      %v3451 = vpop.f32.mrf.mxu0
      %v3452 = vadd.f32 0.0, %v3451
      %v3453 = vpop.f32.mrf.mxu0
      %v3454 = vadd.f32 0.0, %v3453
      %3455 = vmatmul.bf16.gmra.mxu0 %v3310
      %v3456 = vpop.f32.mrf.mxu0
      %v3457 = vadd.f32 0.0, %v3456
      %v3458 = vpop.f32.mrf.mxu0
      %v3459 = vadd.f32 0.0, %v3458
      %3460 = vmatmul.bf16.gmra.mxu0 %v3311
      %v3461 = vpop.f32.mrf.mxu0
      %v3462 = vadd.f32 0.0, %v3461
      %v3463 = vpop.f32.mrf.mxu0
      %v3464 = vadd.f32 0.0, %v3463
      %3465 = vmatmul.bf16.gmra.mxu0 %v3312
      %v3466 = vpop.f32.mrf.mxu0
      %v3467 = vadd.f32 0.0, %v3466
      %v3468 = vpop.f32.mrf.mxu0
      %v3469 = vadd.f32 0.0, %v3468
      %3470 = vmatmul.bf16.gmra.mxu0 %v3313
      %v3471 = vpop.f32.mrf.mxu0
      %v3472 = vadd.f32 0.0, %v3471
      %v3473 = vpop.f32.mrf.mxu0
      %v3474 = vadd.f32 0.0, %v3473
      %3475 = vmatmul.bf16.gmra.mxu0 %v3314
      %v3476 = vpop.f32.mrf.mxu0
      %v3477 = vadd.f32 0.0, %v3476
      %v3478 = vpop.f32.mrf.mxu0
      %v3479 = vadd.f32 0.0, %v3478
      %3480 = vmatmul.bf16.gmra.mxu0 %v3315
      %v3481 = vpop.f32.mrf.mxu0
      %v3482 = vadd.f32 0.0, %v3481
      %v3483 = vpop.f32.mrf.mxu0
      %v3484 = vadd.f32 0.0, %v3483
      %3485 = vmatmul.bf16.gmra.mxu0 %v3316
      %v3486 = vpop.f32.mrf.mxu0
      %v3487 = vadd.f32 0.0, %v3486
      %v3488 = vpop.f32.mrf.mxu0
      %v3489 = vadd.f32 0.0, %v3488
      %3490 = vmatmul.bf16.gmra.mxu0 %v3317
      %v3491 = vpop.f32.mrf.mxu0
      %v3492 = vadd.f32 0.0, %v3491
      %v3493 = vpop.f32.mrf.mxu0
      %3494 = vdwg.mxu0
      %v3495 = vadd.f32 %v3215, %v3392
      %v3496 = vadd.f32 %v3216, %v3394
      %v3497 = vadd.f32 %v3217, %v3397
      %v3498 = vadd.f32 %v3218, %v3399
      %v3499 = vadd.f32 %v3219, %v3402
      %v3500 = vadd.f32 %v3220, %v3404
      %v3501 = vadd.f32 %v3221, %v3407
      %v3502 = vadd.f32 %v3222, %v3409
      %v3503 = vadd.f32 %v3223, %v3412
      %v3504 = vadd.f32 %v3224, %v3414
      %v3505 = vadd.f32 %v3225, %v3417
      %v3506 = vadd.f32 %v3226, %v3419
      %v3507 = vadd.f32 %v3227, %v3422
      %v3508 = vadd.f32 %v3228, %v3424
      %v3509 = vadd.f32 %v3229, %v3427
      %v3510 = vadd.f32 %v3230, %v3429
      %v3511 = vadd.f32 %v3231, %v3432
      %v3512 = vadd.f32 %v3232, %v3434
      %v3513 = vadd.f32 %v3233, %v3437
      %v3514 = vadd.f32 %v3234, %v3439
      %v3515 = vadd.f32 %v3235, %v3442
      %v3516 = vadd.f32 %v3236, %v3444
      %v3517 = vadd.f32 %v3237, %v3447
      %v3518 = vadd.f32 %v3238, %v3449
      %v3519 = vadd.f32 %v3239, %v3452
      %v3520 = vadd.f32 %v3240, %v3454
      %v3521 = vadd.f32 %v3241, %v3457
      %v3522 = vadd.f32 %v3242, %v3459
      %v3523 = vadd.f32 %v3243, %v3462
      %v3524 = vadd.f32 %v3244, %v3464
      %v3525 = vadd.f32 %v3245, %v3467
      %v3526 = vadd.f32 %v3246, %v3469
      %v3527 = vadd.f32 %v3247, %v3472
      %v3528 = vadd.f32 %v3248, %v3474
      %v3529 = vadd.f32 %v3249, %v3477
      %v3530 = vadd.f32 %v3250, %v3479
      %v3531 = vadd.f32 %v3251, %v3482
      %v3532 = vadd.f32 %v3252, %v3484
      %v3533 = vadd.f32 %v3253, %v3487
      %v3534 = vadd.f32 %v3254, %v3489
      %v3535 = vadd.f32 %v3255, %v3492
      %v3536 = vld [vmem:[%s5] sm:$0x1]
      %v3538 = vperm.slane %v3536, 0
      %v3540 = vadd.f32 %v3495, %v3538
      %v3541 = vadd.f32 %v3496, %v3538
      %v3542 = vadd.f32 %v3497, %v3538
      %v3543 = vadd.f32 %v3498, %v3538
      %v3544 = vadd.f32 %v3499, %v3538
      %v3545 = vadd.f32 %v3500, %v3538
      %v3546 = vadd.f32 %v3501, %v3538
      %v3547 = vadd.f32 %v3502, %v3538
      %v3548 = vadd.f32 %v3503, %v3538
      %v3549 = vadd.f32 %v3504, %v3538
      %v3550 = vadd.f32 %v3505, %v3538
      %v3551 = vadd.f32 %v3506, %v3538
      %v3552 = vadd.f32 %v3507, %v3538
      %v3553 = vadd.f32 %v3508, %v3538
      %v3554 = vadd.f32 %v3509, %v3538
      %v3555 = vadd.f32 %v3510, %v3538
      %v3556 = vadd.f32 %v3511, %v3538
      %v3557 = vadd.f32 %v3512, %v3538
      %v3558 = vadd.f32 %v3513, %v3538
      %v3559 = vadd.f32 %v3514, %v3538
      %v3560 = vadd.f32 %v3515, %v3538
      %v3561 = vadd.f32 %v3516, %v3538
      %v3562 = vadd.f32 %v3517, %v3538
      %v3563 = vadd.f32 %v3518, %v3538
      %v3564 = vadd.f32 %v3519, %v3538
      %v3565 = vadd.f32 %v3520, %v3538
      %v3566 = vadd.f32 %v3521, %v3538
      %v3567 = vadd.f32 %v3522, %v3538
      %v3568 = vadd.f32 %v3523, %v3538
      %v3569 = vadd.f32 %v3524, %v3538
      %v3570 = vadd.f32 %v3525, %v3538
      %v3571 = vadd.f32 %v3526, %v3538
      %v3572 = vadd.f32 %v3527, %v3538
      %v3573 = vadd.f32 %v3528, %v3538
      %v3574 = vadd.f32 %v3529, %v3538
      %v3575 = vadd.f32 %v3530, %v3538
      %v3576 = vadd.f32 %v3531, %v3538
      %v3577 = vadd.f32 %v3532, %v3538
      %v3578 = vadd.f32 %v3533, %v3538
      %v3579 = vadd.f32 %v3534, %v3538
      %v3580 = vadd.f32 %v3535, %v3538
      %v3581 = vmax.f32 %v3540, 0.0
      %v3582 = vmax.f32 %v3541, 0.0
      %v3583 = vmax.f32 %v3542, 0.0
      %v3584 = vmax.f32 %v3543, 0.0
      %v3585 = vmax.f32 %v3544, 0.0
      %v3586 = vmax.f32 %v3545, 0.0
      %v3587 = vmax.f32 %v3546, 0.0
      %v3588 = vmax.f32 %v3547, 0.0
      %v3589 = vmax.f32 %v3548, 0.0
      %v3590 = vmax.f32 %v3549, 0.0
      %v3591 = vmax.f32 %v3550, 0.0
      %v3592 = vmax.f32 %v3551, 0.0
      %v3593 = vmax.f32 %v3552, 0.0
      %v3594 = vmax.f32 %v3553, 0.0
      %v3595 = vmax.f32 %v3554, 0.0
      %v3596 = vmax.f32 %v3555, 0.0
      %v3597 = vmax.f32 %v3556, 0.0
      %v3598 = vmax.f32 %v3557, 0.0
      %v3599 = vmax.f32 %v3558, 0.0
      %v3600 = vmax.f32 %v3559, 0.0
      %v3601 = vmax.f32 %v3560, 0.0
      %v3602 = vmax.f32 %v3561, 0.0
      %v3603 = vmax.f32 %v3562, 0.0
      %v3604 = vmax.f32 %v3563, 0.0
      %v3605 = vmax.f32 %v3564, 0.0
      %v3606 = vmax.f32 %v3565, 0.0
      %v3607 = vmax.f32 %v3566, 0.0
      %v3608 = vmax.f32 %v3567, 0.0
      %v3609 = vmax.f32 %v3568, 0.0
      %v3610 = vmax.f32 %v3569, 0.0
      %v3611 = vmax.f32 %v3570, 0.0
      %v3612 = vmax.f32 %v3571, 0.0
      %v3613 = vmax.f32 %v3572, 0.0
      %v3614 = vmax.f32 %v3573, 0.0
      %v3615 = vmax.f32 %v3574, 0.0
      %v3616 = vmax.f32 %v3575, 0.0
      %v3617 = vmax.f32 %v3576, 0.0
      %v3618 = vmax.f32 %v3577, 0.0
      %v3619 = vmax.f32 %v3578, 0.0
      %v3620 = vmax.f32 %v3579, 0.0
      %v3621 = vmax.f32 %v3580, 0.0
      %v3622 = vpack.c.bf16 %v3582, %v3581
      %v3623 = vpack.c.bf16 %v3584, %v3583
      %v3624 = vpack.c.bf16 %v3586, %v3585
      %v3625 = vpack.c.bf16 %v3588, %v3587
      %v3626 = vpack.c.bf16 %v3590, %v3589
      %v3627 = vpack.c.bf16 %v3592, %v3591
      %v3628 = vpack.c.bf16 %v3594, %v3593
      %v3629 = vpack.c.bf16 %v3596, %v3595
      %v3630 = vpack.c.bf16 %v3598, %v3597
      %v3631 = vpack.c.bf16 %v3600, %v3599
      %v3632 = vpack.c.bf16 %v3602, %v3601
      %v3633 = vpack.c.bf16 %v3604, %v3603
      %v3634 = vpack.c.bf16 %v3606, %v3605
      %v3635 = vpack.c.bf16 %v3608, %v3607
      %v3636 = vpack.c.bf16 %v3610, %v3609
      %v3637 = vpack.c.bf16 %v3612, %v3611
      %v3638 = vpack.c.bf16 %v3614, %v3613
      %v3639 = vpack.c.bf16 %v3616, %v3615
      %v3640 = vpack.c.bf16 %v3618, %v3617
      %v3641 = vpack.c.bf16 %v3620, %v3619
      %v3642 = vpack.c.bf16 %v3621, %v3621
      %v3643 = vld [vmem:[%s6] sm:$0xf]
      %v3644 = vld [vmem:[%s6 + $0x4] sm:$0xf]
      %v3645 = vld [vmem:[%s6 + $0x8] sm:$0xf]
      %v3646 = vld [vmem:[%s6 + $0xc] sm:$0xf]
      %v3647 = vld [vmem:[%s6 + $0x10] sm:$0xf]
      %v3648 = vld [vmem:[%s6 + $0x14] sm:$0xf]
      %v3649 = vld [vmem:[%s6 + $0x18] sm:$0xf]
      %v3650 = vld [vmem:[%s6 + $0x1c] sm:$0xf]
      %v3651 = vld [vmem:[%s6 + $0x20] sm:$0xf]
      %v3652 = vld [vmem:[%s6 + $0x24] sm:$0xf]
      %v3653 = vld [vmem:[%s6 + $0x28] sm:$0xf]
      %v3654 = vld [vmem:[%s6 + $0x2c] sm:$0xf]
      %v3655 = vld [vmem:[%s6 + $0x30] sm:$0xf]
      %v3656 = vld [vmem:[%s6 + $0x34] sm:$0xf]
      %v3657 = vld [vmem:[%s6 + $0x38] sm:$0xf]
      %v3658 = vld [vmem:[%s6 + $0x3c] sm:$0xf]
      %v3659 = vld [vmem:[%s7] sm:$0x1]
      %v3661 = vperm.slane %v3659, 0
      %v3679 = vunpack.c.l.b16 %v3643
      %v3680 = vunpack.c.l.b16 %v3644
      %v3681 = vunpack.c.l.b16 %v3645
      %v3682 = vunpack.c.l.b16 %v3646
      %v3683 = vunpack.c.l.b16 %v3647
      %v3684 = vunpack.c.l.b16 %v3648
      %v3685 = vunpack.c.l.b16 %v3649
      %v3686 = vunpack.c.l.b16 %v3650
      %v3687 = vunpack.c.l.b16 %v3651
      %v3688 = vunpack.c.l.b16 %v3652
      %v3689 = vunpack.c.l.b16 %v3653
      %v3690 = vunpack.c.l.b16 %v3654
      %v3691 = vunpack.c.l.b16 %v3655
      %v3692 = vunpack.c.l.b16 %v3656
      %v3693 = vunpack.c.l.b16 %v3657
      %v3694 = vunpack.c.l.b16 %v3658
      %v3695 = vpack.c.b16 %v3680, %v3679
      %v3696 = vpack.c.b16 %v3682, %v3681
      %v3697 = vpack.c.b16 %v3684, %v3683
      %v3698 = vpack.c.b16 %v3686, %v3685
      %v3699 = vpack.c.b16 %v3688, %v3687
      %v3700 = vpack.c.b16 %v3690, %v3689
      %v3701 = vpack.c.b16 %v3692, %v3691
      %v3702 = vpack.c.b16 %v3694, %v3693
      %3711 = vmatpush.bf16.msra.mxu0 %v3702
      %3712 = vmatpush.bf16.msra.mxu0 %v3701
      %3713 = vmatpush.bf16.msra.mxu0 %v3700
      %3714 = vmatpush.bf16.msra.mxu0 %v3699
      %3715 = vmatpush.bf16.msra.mxu0 %v3698
      %3716 = vmatpush.bf16.msra.mxu0 %v3697
      %3717 = vmatpush.bf16.msra.mxu0 %v3696
      %3718 = vmatpush.bf16.msra.mxu0 %v3695
      %3719 = vmatmul.bf16.gmra.mxu0 %v3622
      %v3720 = vpop.f32.mrf.mxu0
      %v3721 = vadd.f32 %v3661, %v3720
      %v3722 = vpop.f32.mrf.mxu0
      %v3723 = vadd.f32 %v3661, %v3722
      %3724 = vmatmul.bf16.gmra.mxu0 %v3623
      %v3725 = vpop.f32.mrf.mxu0
      %v3726 = vadd.f32 %v3661, %v3725
      %v3727 = vpop.f32.mrf.mxu0
      %v3728 = vadd.f32 %v3661, %v3727
      %3729 = vmatmul.bf16.gmra.mxu0 %v3624
      %v3730 = vpop.f32.mrf.mxu0
      %v3731 = vadd.f32 %v3661, %v3730
      %v3732 = vpop.f32.mrf.mxu0
      %v3733 = vadd.f32 %v3661, %v3732
      %3734 = vmatmul.bf16.gmra.mxu0 %v3625
      %v3735 = vpop.f32.mrf.mxu0
      %v3736 = vadd.f32 %v3661, %v3735
      %v3737 = vpop.f32.mrf.mxu0
      %v3738 = vadd.f32 %v3661, %v3737
      %3739 = vmatmul.bf16.gmra.mxu0 %v3626
      %v3740 = vpop.f32.mrf.mxu0
      %v3741 = vadd.f32 %v3661, %v3740
      %v3742 = vpop.f32.mrf.mxu0
      %v3743 = vadd.f32 %v3661, %v3742
      %3744 = vmatmul.bf16.gmra.mxu0 %v3627
      %v3745 = vpop.f32.mrf.mxu0
      %v3746 = vadd.f32 %v3661, %v3745
      %v3747 = vpop.f32.mrf.mxu0
      %v3748 = vadd.f32 %v3661, %v3747
      %3749 = vmatmul.bf16.gmra.mxu0 %v3628
      %v3750 = vpop.f32.mrf.mxu0
      %v3751 = vadd.f32 %v3661, %v3750
      %v3752 = vpop.f32.mrf.mxu0
      %v3753 = vadd.f32 %v3661, %v3752
      %3754 = vmatmul.bf16.gmra.mxu0 %v3629
      %v3755 = vpop.f32.mrf.mxu0
      %v3756 = vadd.f32 %v3661, %v3755
      %v3757 = vpop.f32.mrf.mxu0
      %v3758 = vadd.f32 %v3661, %v3757
      %3759 = vmatmul.bf16.gmra.mxu0 %v3630
      %v3760 = vpop.f32.mrf.mxu0
      %v3761 = vadd.f32 %v3661, %v3760
      %v3762 = vpop.f32.mrf.mxu0
      %v3763 = vadd.f32 %v3661, %v3762
      %3764 = vmatmul.bf16.gmra.mxu0 %v3631
      %v3765 = vpop.f32.mrf.mxu0
      %v3766 = vadd.f32 %v3661, %v3765
      %v3767 = vpop.f32.mrf.mxu0
      %v3768 = vadd.f32 %v3661, %v3767
      %3769 = vmatmul.bf16.gmra.mxu0 %v3632
      %v3770 = vpop.f32.mrf.mxu0
      %v3771 = vadd.f32 %v3661, %v3770
      %v3772 = vpop.f32.mrf.mxu0
      %v3773 = vadd.f32 %v3661, %v3772
      %3774 = vmatmul.bf16.gmra.mxu0 %v3633
      %v3775 = vpop.f32.mrf.mxu0
      %v3776 = vadd.f32 %v3661, %v3775
      %v3777 = vpop.f32.mrf.mxu0
      %v3778 = vadd.f32 %v3661, %v3777
      %3779 = vmatmul.bf16.gmra.mxu0 %v3634
      %v3780 = vpop.f32.mrf.mxu0
      %v3781 = vadd.f32 %v3661, %v3780
      %v3782 = vpop.f32.mrf.mxu0
      %v3783 = vadd.f32 %v3661, %v3782
      %3784 = vmatmul.bf16.gmra.mxu0 %v3635
      %v3785 = vpop.f32.mrf.mxu0
      %v3786 = vadd.f32 %v3661, %v3785
      %v3787 = vpop.f32.mrf.mxu0
      %v3788 = vadd.f32 %v3661, %v3787
      %3789 = vmatmul.bf16.gmra.mxu0 %v3636
      %v3790 = vpop.f32.mrf.mxu0
      %v3791 = vadd.f32 %v3661, %v3790
      %v3792 = vpop.f32.mrf.mxu0
      %v3793 = vadd.f32 %v3661, %v3792
      %3794 = vmatmul.bf16.gmra.mxu0 %v3637
      %v3795 = vpop.f32.mrf.mxu0
      %v3796 = vadd.f32 %v3661, %v3795
      %v3797 = vpop.f32.mrf.mxu0
      %v3798 = vadd.f32 %v3661, %v3797
      %3799 = vmatmul.bf16.gmra.mxu0 %v3638
      %v3800 = vpop.f32.mrf.mxu0
      %v3801 = vadd.f32 %v3661, %v3800
      %v3802 = vpop.f32.mrf.mxu0
      %v3803 = vadd.f32 %v3661, %v3802
      %3804 = vmatmul.bf16.gmra.mxu0 %v3639
      %v3805 = vpop.f32.mrf.mxu0
      %v3806 = vadd.f32 %v3661, %v3805
      %v3807 = vpop.f32.mrf.mxu0
      %v3808 = vadd.f32 %v3661, %v3807
      %3809 = vmatmul.bf16.gmra.mxu0 %v3640
      %v3810 = vpop.f32.mrf.mxu0
      %v3811 = vadd.f32 %v3661, %v3810
      %v3812 = vpop.f32.mrf.mxu0
      %v3813 = vadd.f32 %v3661, %v3812
      %3814 = vmatmul.bf16.gmra.mxu0 %v3641
      %v3815 = vpop.f32.mrf.mxu0
      %v3816 = vadd.f32 %v3661, %v3815
      %v3817 = vpop.f32.mrf.mxu0
      %v3818 = vadd.f32 %v3661, %v3817
      %3819 = vmatmul.bf16.gmra.mxu0 %v3642
      %v3820 = vpop.f32.mrf.mxu0
      %v3821 = vadd.f32 %v3661, %v3820
      %v3822 = vpop.f32.mrf.mxu0
      %3823 = vdwg.mxu0
      %v3824 = vld [vmem:[%s8] sm:$0xf]
      %v3825 = vld [vmem:[%s8 + $0x4] sm:$0xf]
      %v3826 = vld [vmem:[%s8 + $0x8] sm:$0xf]
      %v3827 = vld [vmem:[%s8 + $0xc] sm:$0xf]
      %v3828 = vld [vmem:[%s8 + $0x10] sm:$0xf]
      %v3829 = vld [vmem:[%s8 + $0x14] sm:$0xf]
      %v3830 = vld [vmem:[%s8 + $0x18] sm:$0xf]
      %v3831 = vld [vmem:[%s8 + $0x1c] sm:$0xf]
      %v3832 = vld [vmem:[%s8 + $0x20] sm:$0xf]
      %v3833 = vld [vmem:[%s8 + $0x24] sm:$0xf]
      %v3834 = vld [vmem:[%s8 + $0x28] sm:$0xf]
      %v3835 = vld [vmem:[%s8 + $0x2c] sm:$0xf]
      %v3836 = vld [vmem:[%s8 + $0x30] sm:$0xf]
      %v3837 = vld [vmem:[%s8 + $0x34] sm:$0xf]
      %v3838 = vld [vmem:[%s8 + $0x38] sm:$0xf]
      %v3839 = vld [vmem:[%s8 + $0x3c] sm:$0xf]
      %v3856 = vunpack.c.l.b16 %v3824
      %v3857 = vunpack.c.l.b16 %v3825
      %v3858 = vunpack.c.l.b16 %v3826
      %v3859 = vunpack.c.l.b16 %v3827
      %v3860 = vunpack.c.l.b16 %v3828
      %v3861 = vunpack.c.l.b16 %v3829
      %v3862 = vunpack.c.l.b16 %v3830
      %v3863 = vunpack.c.l.b16 %v3831
      %v3864 = vunpack.c.l.b16 %v3832
      %v3865 = vunpack.c.l.b16 %v3833
      %v3866 = vunpack.c.l.b16 %v3834
      %v3867 = vunpack.c.l.b16 %v3835
      %v3868 = vunpack.c.l.b16 %v3836
      %v3869 = vunpack.c.l.b16 %v3837
      %v3870 = vunpack.c.l.b16 %v3838
      %v3871 = vunpack.c.l.b16 %v3839
      %v3872 = vpack.c.b16 %v3857, %v3856
      %v3873 = vpack.c.b16 %v3859, %v3858
      %v3874 = vpack.c.b16 %v3861, %v3860
      %v3875 = vpack.c.b16 %v3863, %v3862
      %v3876 = vpack.c.b16 %v3865, %v3864
      %v3877 = vpack.c.b16 %v3867, %v3866
      %v3878 = vpack.c.b16 %v3869, %v3868
      %v3879 = vpack.c.b16 %v3871, %v3870
      %3888 = vmatpush.bf16.msra.mxu0 %v3879
      %3889 = vmatpush.bf16.msra.mxu0 %v3878
      %3890 = vmatpush.bf16.msra.mxu0 %v3877
      %3891 = vmatpush.bf16.msra.mxu0 %v3876
      %3892 = vmatpush.bf16.msra.mxu0 %v3875
      %3893 = vmatpush.bf16.msra.mxu0 %v3874
      %3894 = vmatpush.bf16.msra.mxu0 %v3873
      %3895 = vmatpush.bf16.msra.mxu0 %v3872
      %3896 = vmatmul.bf16.gmra.mxu0 %v526
      %v3897 = vpop.f32.mrf.mxu0
      %v3898 = vadd.f32 0.0, %v3897
      %v3899 = vpop.f32.mrf.mxu0
      %v3900 = vadd.f32 0.0, %v3899
      %3901 = vmatmul.bf16.gmra.mxu0 %v527
      %v3902 = vpop.f32.mrf.mxu0
      %v3903 = vadd.f32 0.0, %v3902
      %v3904 = vpop.f32.mrf.mxu0
      %v3905 = vadd.f32 0.0, %v3904
      %3906 = vmatmul.bf16.gmra.mxu0 %v528
      %v3907 = vpop.f32.mrf.mxu0
      %v3908 = vadd.f32 0.0, %v3907
      %v3909 = vpop.f32.mrf.mxu0
      %v3910 = vadd.f32 0.0, %v3909
      %3911 = vmatmul.bf16.gmra.mxu0 %v529
      %v3912 = vpop.f32.mrf.mxu0
      %v3913 = vadd.f32 0.0, %v3912
      %v3914 = vpop.f32.mrf.mxu0
      %v3915 = vadd.f32 0.0, %v3914
      %3916 = vmatmul.bf16.gmra.mxu0 %v530
      %v3917 = vpop.f32.mrf.mxu0
      %v3918 = vadd.f32 0.0, %v3917
      %v3919 = vpop.f32.mrf.mxu0
      %v3920 = vadd.f32 0.0, %v3919
      %3921 = vmatmul.bf16.gmra.mxu0 %v531
      %v3922 = vpop.f32.mrf.mxu0
      %v3923 = vadd.f32 0.0, %v3922
      %v3924 = vpop.f32.mrf.mxu0
      %v3925 = vadd.f32 0.0, %v3924
      %3926 = vmatmul.bf16.gmra.mxu0 %v532
      %v3927 = vpop.f32.mrf.mxu0
      %v3928 = vadd.f32 0.0, %v3927
      %v3929 = vpop.f32.mrf.mxu0
      %v3930 = vadd.f32 0.0, %v3929
      %3931 = vmatmul.bf16.gmra.mxu0 %v533
      %v3932 = vpop.f32.mrf.mxu0
      %v3933 = vadd.f32 0.0, %v3932
      %v3934 = vpop.f32.mrf.mxu0
      %v3935 = vadd.f32 0.0, %v3934
      %3936 = vmatmul.bf16.gmra.mxu0 %v534
      %v3937 = vpop.f32.mrf.mxu0
      %v3938 = vadd.f32 0.0, %v3937
      %v3939 = vpop.f32.mrf.mxu0
      %v3940 = vadd.f32 0.0, %v3939
      %3941 = vmatmul.bf16.gmra.mxu0 %v535
      %v3942 = vpop.f32.mrf.mxu0
      %v3943 = vadd.f32 0.0, %v3942
      %v3944 = vpop.f32.mrf.mxu0
      %v3945 = vadd.f32 0.0, %v3944
      %3946 = vmatmul.bf16.gmra.mxu0 %v536
      %v3947 = vpop.f32.mrf.mxu0
      %v3948 = vadd.f32 0.0, %v3947
      %v3949 = vpop.f32.mrf.mxu0
      %v3950 = vadd.f32 0.0, %v3949
      %3951 = vmatmul.bf16.gmra.mxu0 %v537
      %v3952 = vpop.f32.mrf.mxu0
      %v3953 = vadd.f32 0.0, %v3952
      %v3954 = vpop.f32.mrf.mxu0
      %v3955 = vadd.f32 0.0, %v3954
      %3956 = vmatmul.bf16.gmra.mxu0 %v538
      %v3957 = vpop.f32.mrf.mxu0
      %v3958 = vadd.f32 0.0, %v3957
      %v3959 = vpop.f32.mrf.mxu0
      %v3960 = vadd.f32 0.0, %v3959
      %3961 = vmatmul.bf16.gmra.mxu0 %v539
      %v3962 = vpop.f32.mrf.mxu0
      %v3963 = vadd.f32 0.0, %v3962
      %v3964 = vpop.f32.mrf.mxu0
      %v3965 = vadd.f32 0.0, %v3964
      %3966 = vmatmul.bf16.gmra.mxu0 %v540
      %v3967 = vpop.f32.mrf.mxu0
      %v3968 = vadd.f32 0.0, %v3967
      %v3969 = vpop.f32.mrf.mxu0
      %v3970 = vadd.f32 0.0, %v3969
      %3971 = vmatmul.bf16.gmra.mxu0 %v541
      %v3972 = vpop.f32.mrf.mxu0
      %v3973 = vadd.f32 0.0, %v3972
      %v3974 = vpop.f32.mrf.mxu0
      %v3975 = vadd.f32 0.0, %v3974
      %3976 = vmatmul.bf16.gmra.mxu0 %v542
      %v3977 = vpop.f32.mrf.mxu0
      %v3978 = vadd.f32 0.0, %v3977
      %v3979 = vpop.f32.mrf.mxu0
      %v3980 = vadd.f32 0.0, %v3979
      %3981 = vmatmul.bf16.gmra.mxu0 %v543
      %v3982 = vpop.f32.mrf.mxu0
      %v3983 = vadd.f32 0.0, %v3982
      %v3984 = vpop.f32.mrf.mxu0
      %v3985 = vadd.f32 0.0, %v3984
      %3986 = vmatmul.bf16.gmra.mxu0 %v544
      %v3987 = vpop.f32.mrf.mxu0
      %v3988 = vadd.f32 0.0, %v3987
      %v3989 = vpop.f32.mrf.mxu0
      %v3990 = vadd.f32 0.0, %v3989
      %3991 = vmatmul.bf16.gmra.mxu0 %v545
      %v3992 = vpop.f32.mrf.mxu0
      %v3993 = vadd.f32 0.0, %v3992
      %v3994 = vpop.f32.mrf.mxu0
      %v3995 = vadd.f32 0.0, %v3994
      %3996 = vmatmul.bf16.gmra.mxu0 %v546
      %v3997 = vpop.f32.mrf.mxu0
      %v3998 = vadd.f32 0.0, %v3997
      %v3999 = vpop.f32.mrf.mxu0
      %4000 = vdwg.mxu0
      %v4001 = vadd.f32 %v3721, %v3898
      %v4002 = vadd.f32 %v3723, %v3900
      %v4003 = vadd.f32 %v3726, %v3903
      %v4004 = vadd.f32 %v3728, %v3905
      %v4005 = vadd.f32 %v3731, %v3908
      %v4006 = vadd.f32 %v3733, %v3910
      %v4007 = vadd.f32 %v3736, %v3913
      %v4008 = vadd.f32 %v3738, %v3915
      %v4009 = vadd.f32 %v3741, %v3918
      %v4010 = vadd.f32 %v3743, %v3920
      %v4011 = vadd.f32 %v3746, %v3923
      %v4012 = vadd.f32 %v3748, %v3925
      %v4013 = vadd.f32 %v3751, %v3928
      %v4014 = vadd.f32 %v3753, %v3930
      %v4015 = vadd.f32 %v3756, %v3933
      %v4016 = vadd.f32 %v3758, %v3935
      %v4017 = vadd.f32 %v3761, %v3938
      %v4018 = vadd.f32 %v3763, %v3940
      %v4019 = vadd.f32 %v3766, %v3943
      %v4020 = vadd.f32 %v3768, %v3945
      %v4021 = vadd.f32 %v3771, %v3948
      %v4022 = vadd.f32 %v3773, %v3950
      %v4023 = vadd.f32 %v3776, %v3953
      %v4024 = vadd.f32 %v3778, %v3955
      %v4025 = vadd.f32 %v3781, %v3958
      %v4026 = vadd.f32 %v3783, %v3960
      %v4027 = vadd.f32 %v3786, %v3963
      %v4028 = vadd.f32 %v3788, %v3965
      %v4029 = vadd.f32 %v3791, %v3968
      %v4030 = vadd.f32 %v3793, %v3970
      %v4031 = vadd.f32 %v3796, %v3973
      %v4032 = vadd.f32 %v3798, %v3975
      %v4033 = vadd.f32 %v3801, %v3978
      %v4034 = vadd.f32 %v3803, %v3980
      %v4035 = vadd.f32 %v3806, %v3983
      %v4036 = vadd.f32 %v3808, %v3985
      %v4037 = vadd.f32 %v3811, %v3988
      %v4038 = vadd.f32 %v3813, %v3990
      %v4039 = vadd.f32 %v3816, %v3993
      %v4040 = vadd.f32 %v3818, %v3995
      %v4041 = vadd.f32 %v3821, %v3998
      %v4042 = vmax.f32 %v4001, 0.0
      %v4043 = vmax.f32 %v4002, 0.0
      %v4044 = vmax.f32 %v4003, 0.0
      %v4045 = vmax.f32 %v4004, 0.0
      %v4046 = vmax.f32 %v4005, 0.0
      %v4047 = vmax.f32 %v4006, 0.0
      %v4048 = vmax.f32 %v4007, 0.0
      %v4049 = vmax.f32 %v4008, 0.0
      %v4050 = vmax.f32 %v4009, 0.0
      %v4051 = vmax.f32 %v4010, 0.0
      %v4052 = vmax.f32 %v4011, 0.0
      %v4053 = vmax.f32 %v4012, 0.0
      %v4054 = vmax.f32 %v4013, 0.0
      %v4055 = vmax.f32 %v4014, 0.0
      %v4056 = vmax.f32 %v4015, 0.0
      %v4057 = vmax.f32 %v4016, 0.0
      %v4058 = vmax.f32 %v4017, 0.0
      %v4059 = vmax.f32 %v4018, 0.0
      %v4060 = vmax.f32 %v4019, 0.0
      %v4061 = vmax.f32 %v4020, 0.0
      %v4062 = vmax.f32 %v4021, 0.0
      %v4063 = vmax.f32 %v4022, 0.0
      %v4064 = vmax.f32 %v4023, 0.0
      %v4065 = vmax.f32 %v4024, 0.0
      %v4066 = vmax.f32 %v4025, 0.0
      %v4067 = vmax.f32 %v4026, 0.0
      %v4068 = vmax.f32 %v4027, 0.0
      %v4069 = vmax.f32 %v4028, 0.0
      %v4070 = vmax.f32 %v4029, 0.0
      %v4071 = vmax.f32 %v4030, 0.0
      %v4072 = vmax.f32 %v4031, 0.0
      %v4073 = vmax.f32 %v4032, 0.0
      %v4074 = vmax.f32 %v4033, 0.0
      %v4075 = vmax.f32 %v4034, 0.0
      %v4076 = vmax.f32 %v4035, 0.0
      %v4077 = vmax.f32 %v4036, 0.0
      %v4078 = vmax.f32 %v4037, 0.0
      %v4079 = vmax.f32 %v4038, 0.0
      %v4080 = vmax.f32 %v4039, 0.0
      %v4081 = vmax.f32 %v4040, 0.0
      %v4082 = vmax.f32 %v4041, 0.0
      %v4083 = vsub.f32 0.0, %v4042
      %v4084 = vsub.f32 0.0, %v4043
      %v4085 = vsub.f32 0.0, %v4044
      %v4086 = vsub.f32 0.0, %v4045
      %v4087 = vsub.f32 0.0, %v4046
      %v4088 = vsub.f32 0.0, %v4047
      %v4089 = vsub.f32 0.0, %v4048
      %v4090 = vsub.f32 0.0, %v4049
      %v4091 = vsub.f32 0.0, %v4050
      %v4092 = vsub.f32 0.0, %v4051
      %v4093 = vsub.f32 0.0, %v4052
      %v4094 = vsub.f32 0.0, %v4053
      %v4095 = vsub.f32 0.0, %v4054
      %v4096 = vsub.f32 0.0, %v4055
      %v4097 = vsub.f32 0.0, %v4056
      %v4098 = vsub.f32 0.0, %v4057
      %v4099 = vsub.f32 0.0, %v4058
      %v4100 = vsub.f32 0.0, %v4059
      %v4101 = vsub.f32 0.0, %v4060
      %v4102 = vsub.f32 0.0, %v4061
      %v4103 = vsub.f32 0.0, %v4062
      %v4104 = vsub.f32 0.0, %v4063
      %v4105 = vsub.f32 0.0, %v4064
      %v4106 = vsub.f32 0.0, %v4065
      %v4107 = vsub.f32 0.0, %v4066
      %v4108 = vsub.f32 0.0, %v4067
      %v4109 = vsub.f32 0.0, %v4068
      %v4110 = vsub.f32 0.0, %v4069
      %v4111 = vsub.f32 0.0, %v4070
      %v4112 = vsub.f32 0.0, %v4071
      %v4113 = vsub.f32 0.0, %v4072
      %v4114 = vsub.f32 0.0, %v4073
      %v4115 = vsub.f32 0.0, %v4074
      %v4116 = vsub.f32 0.0, %v4075
      %v4117 = vsub.f32 0.0, %v4076
      %v4118 = vsub.f32 0.0, %v4077
      %v4119 = vsub.f32 0.0, %v4078
      %v4120 = vsub.f32 0.0, %v4079
      %v4121 = vsub.f32 0.0, %v4080
      %v4122 = vsub.f32 0.0, %v4081
      %v4123 = vsub.f32 0.0, %v4082
      %v4124 = vmul.f32 %v4083, 1.442695
      %v4125 = vpow.pop %v4124
      %v4126 = vmul.f32 %v4084, 1.442695
      %v4127 = vpow.pop %v4126
      %v4128 = vmul.f32 %v4085, 1.442695
      %v4129 = vpow.pop %v4128
      %v4130 = vmul.f32 %v4086, 1.442695
      %v4131 = vpow.pop %v4130
      %v4132 = vmul.f32 %v4087, 1.442695
      %v4133 = vpow.pop %v4132
      %v4134 = vmul.f32 %v4088, 1.442695
      %v4135 = vpow.pop %v4134
      %v4136 = vmul.f32 %v4089, 1.442695
      %v4137 = vpow.pop %v4136
      %v4138 = vmul.f32 %v4090, 1.442695
      %v4139 = vpow.pop %v4138
      %v4140 = vmul.f32 %v4091, 1.442695
      %v4141 = vpow.pop %v4140
      %v4142 = vmul.f32 %v4092, 1.442695
      %v4143 = vpow.pop %v4142
      %v4144 = vmul.f32 %v4093, 1.442695
      %v4145 = vpow.pop %v4144
      %v4146 = vmul.f32 %v4094, 1.442695
      %v4147 = vpow.pop %v4146
      %v4148 = vmul.f32 %v4095, 1.442695
      %v4149 = vpow.pop %v4148
      %v4150 = vmul.f32 %v4096, 1.442695
      %v4151 = vpow.pop %v4150
      %v4152 = vmul.f32 %v4097, 1.442695
      %v4153 = vpow.pop %v4152
      %v4154 = vmul.f32 %v4098, 1.442695
      %v4155 = vpow.pop %v4154
      %v4156 = vmul.f32 %v4099, 1.442695
      %v4157 = vpow.pop %v4156
      %v4158 = vmul.f32 %v4100, 1.442695
      %v4159 = vpow.pop %v4158
      %v4160 = vmul.f32 %v4101, 1.442695
      %v4161 = vpow.pop %v4160
      %v4162 = vmul.f32 %v4102, 1.442695
      %v4163 = vpow.pop %v4162
      %v4164 = vmul.f32 %v4103, 1.442695
      %v4165 = vpow.pop %v4164
      %v4166 = vmul.f32 %v4104, 1.442695
      %v4167 = vpow.pop %v4166
      %v4168 = vmul.f32 %v4105, 1.442695
      %v4169 = vpow.pop %v4168
      %v4170 = vmul.f32 %v4106, 1.442695
      %v4171 = vpow.pop %v4170
      %v4172 = vmul.f32 %v4107, 1.442695
      %v4173 = vpow.pop %v4172
      %v4174 = vmul.f32 %v4108, 1.442695
      %v4175 = vpow.pop %v4174
      %v4176 = vmul.f32 %v4109, 1.442695
      %v4177 = vpow.pop %v4176
      %v4178 = vmul.f32 %v4110, 1.442695
      %v4179 = vpow.pop %v4178
      %v4180 = vmul.f32 %v4111, 1.442695
      %v4181 = vpow.pop %v4180
      %v4182 = vmul.f32 %v4112, 1.442695
      %v4183 = vpow.pop %v4182
      %v4184 = vmul.f32 %v4113, 1.442695
      %v4185 = vpow.pop %v4184
      %v4186 = vmul.f32 %v4114, 1.442695
      %v4187 = vpow.pop %v4186
      %v4188 = vmul.f32 %v4115, 1.442695
      %v4189 = vpow.pop %v4188
      %v4190 = vmul.f32 %v4116, 1.442695
      %v4191 = vpow.pop %v4190
      %v4192 = vmul.f32 %v4117, 1.442695
      %v4193 = vpow.pop %v4192
      %v4194 = vmul.f32 %v4118, 1.442695
      %v4195 = vpow.pop %v4194
      %v4196 = vmul.f32 %v4119, 1.442695
      %v4197 = vpow.pop %v4196
      %v4198 = vmul.f32 %v4120, 1.442695
      %v4199 = vpow.pop %v4198
      %v4200 = vmul.f32 %v4121, 1.442695
      %v4201 = vpow.pop %v4200
      %v4202 = vmul.f32 %v4122, 1.442695
      %v4203 = vpow.pop %v4202
      %v4204 = vmul.f32 %v4123, 1.442695
      %v4205 = vpow.pop %v4204
      %v4206 = vadd.f32 %v4125, 1.0
      %v4207 = vadd.f32 %v4127, 1.0
      %v4208 = vadd.f32 %v4129, 1.0
      %v4209 = vadd.f32 %v4131, 1.0
      %v4210 = vadd.f32 %v4133, 1.0
      %v4211 = vadd.f32 %v4135, 1.0
      %v4212 = vadd.f32 %v4137, 1.0
      %v4213 = vadd.f32 %v4139, 1.0
      %v4214 = vadd.f32 %v4141, 1.0
      %v4215 = vadd.f32 %v4143, 1.0
      %v4216 = vadd.f32 %v4145, 1.0
      %v4217 = vadd.f32 %v4147, 1.0
      %v4218 = vadd.f32 %v4149, 1.0
      %v4219 = vadd.f32 %v4151, 1.0
      %v4220 = vadd.f32 %v4153, 1.0
      %v4221 = vadd.f32 %v4155, 1.0
      %v4222 = vadd.f32 %v4157, 1.0
      %v4223 = vadd.f32 %v4159, 1.0
      %v4224 = vadd.f32 %v4161, 1.0
      %v4225 = vadd.f32 %v4163, 1.0
      %v4226 = vadd.f32 %v4165, 1.0
      %v4227 = vadd.f32 %v4167, 1.0
      %v4228 = vadd.f32 %v4169, 1.0
      %v4229 = vadd.f32 %v4171, 1.0
      %v4230 = vadd.f32 %v4173, 1.0
      %v4231 = vadd.f32 %v4175, 1.0
      %v4232 = vadd.f32 %v4177, 1.0
      %v4233 = vadd.f32 %v4179, 1.0
      %v4234 = vadd.f32 %v4181, 1.0
      %v4235 = vadd.f32 %v4183, 1.0
      %v4236 = vadd.f32 %v4185, 1.0
      %v4237 = vadd.f32 %v4187, 1.0
      %v4238 = vadd.f32 %v4189, 1.0
      %v4239 = vadd.f32 %v4191, 1.0
      %v4240 = vadd.f32 %v4193, 1.0
      %v4241 = vadd.f32 %v4195, 1.0
      %v4242 = vadd.f32 %v4197, 1.0
      %v4243 = vadd.f32 %v4199, 1.0
      %v4244 = vadd.f32 %v4201, 1.0
      %v4245 = vadd.f32 %v4203, 1.0
      %v4246 = vadd.f32 %v4205, 1.0
      %v4247 = vrcp.pop %v4206
      %v4248 = vmul.f32 %v4206, %v4247
      %v4249 = vsub.f32 1.0, %v4248
      %v4250 = vmul.f32 %v4247, %v4249
      %v4251 = vadd.f32 %v4247, %v4250
      %vm4252 = vweird.f32 %v4206
      %vm4253 = vweird.f32 %v4247
      %vm4254 = vmor %vm4252, %vm4253
      %v4255 = vsel %vm4254, %v4247, %v4251
      %v4256 = vand.u32 2147483647, %v4206
      %vm4257 = vcmp.eq.f32.partialorder %v4256, 8.507059e+37
      %v4258 = vand.u32 %v4206, 2147483648
      %v4259 = vor.u32 1.1754944e-38, %v4258
      %v4260 = vsel %vm4257, %v4259, %v4255
      %v4261 = vrcp.pop %v4207
      %v4262 = vmul.f32 %v4207, %v4261
      %v4263 = vsub.f32 1.0, %v4262
      %v4264 = vmul.f32 %v4261, %v4263
      %v4265 = vadd.f32 %v4261, %v4264
      %vm4266 = vweird.f32 %v4207
      %vm4267 = vweird.f32 %v4261
      %vm4268 = vmor %vm4266, %vm4267
      %v4269 = vsel %vm4268, %v4261, %v4265
      %v4270 = vand.u32 2147483647, %v4207
      %vm4271 = vcmp.eq.f32.partialorder %v4270, 8.507059e+37
      %v4272 = vand.u32 %v4207, 2147483648
      %v4273 = vor.u32 1.1754944e-38, %v4272
      %v4274 = vsel %vm4271, %v4273, %v4269
      %v4275 = vrcp.pop %v4208
      %v4276 = vmul.f32 %v4208, %v4275
      %v4277 = vsub.f32 1.0, %v4276
      %v4278 = vmul.f32 %v4275, %v4277
      %v4279 = vadd.f32 %v4275, %v4278
      %vm4280 = vweird.f32 %v4208
      %vm4281 = vweird.f32 %v4275
      %vm4282 = vmor %vm4280, %vm4281
      %v4283 = vsel %vm4282, %v4275, %v4279
      %v4284 = vand.u32 2147483647, %v4208
      %vm4285 = vcmp.eq.f32.partialorder %v4284, 8.507059e+37
      %v4286 = vand.u32 %v4208, 2147483648
      %v4287 = vor.u32 1.1754944e-38, %v4286
      %v4288 = vsel %vm4285, %v4287, %v4283
      %v4289 = vrcp.pop %v4209
      %v4290 = vmul.f32 %v4209, %v4289
      %v4291 = vsub.f32 1.0, %v4290
      %v4292 = vmul.f32 %v4289, %v4291
      %v4293 = vadd.f32 %v4289, %v4292
      %vm4294 = vweird.f32 %v4209
      %vm4295 = vweird.f32 %v4289
      %vm4296 = vmor %vm4294, %vm4295
      %v4297 = vsel %vm4296, %v4289, %v4293
      %v4298 = vand.u32 2147483647, %v4209
      %vm4299 = vcmp.eq.f32.partialorder %v4298, 8.507059e+37
      %v4300 = vand.u32 %v4209, 2147483648
      %v4301 = vor.u32 1.1754944e-38, %v4300
      %v4302 = vsel %vm4299, %v4301, %v4297
      %v4303 = vrcp.pop %v4210
      %v4304 = vmul.f32 %v4210, %v4303
      %v4305 = vsub.f32 1.0, %v4304
      %v4306 = vmul.f32 %v4303, %v4305
      %v4307 = vadd.f32 %v4303, %v4306
      %vm4308 = vweird.f32 %v4210
      %vm4309 = vweird.f32 %v4303
      %vm4310 = vmor %vm4308, %vm4309
      %v4311 = vsel %vm4310, %v4303, %v4307
      %v4312 = vand.u32 2147483647, %v4210
      %vm4313 = vcmp.eq.f32.partialorder %v4312, 8.507059e+37
      %v4314 = vand.u32 %v4210, 2147483648
      %v4315 = vor.u32 1.1754944e-38, %v4314
      %v4316 = vsel %vm4313, %v4315, %v4311
      %v4317 = vrcp.pop %v4211
      %v4318 = vmul.f32 %v4211, %v4317
      %v4319 = vsub.f32 1.0, %v4318
      %v4320 = vmul.f32 %v4317, %v4319
      %v4321 = vadd.f32 %v4317, %v4320
      %vm4322 = vweird.f32 %v4211
      %vm4323 = vweird.f32 %v4317
      %vm4324 = vmor %vm4322, %vm4323
      %v4325 = vsel %vm4324, %v4317, %v4321
      %v4326 = vand.u32 2147483647, %v4211
      %vm4327 = vcmp.eq.f32.partialorder %v4326, 8.507059e+37
      %v4328 = vand.u32 %v4211, 2147483648
      %v4329 = vor.u32 1.1754944e-38, %v4328
      %v4330 = vsel %vm4327, %v4329, %v4325
      %v4331 = vrcp.pop %v4212
      %v4332 = vmul.f32 %v4212, %v4331
      %v4333 = vsub.f32 1.0, %v4332
      %v4334 = vmul.f32 %v4331, %v4333
      %v4335 = vadd.f32 %v4331, %v4334
      %vm4336 = vweird.f32 %v4212
      %vm4337 = vweird.f32 %v4331
      %vm4338 = vmor %vm4336, %vm4337
      %v4339 = vsel %vm4338, %v4331, %v4335
      %v4340 = vand.u32 2147483647, %v4212
      %vm4341 = vcmp.eq.f32.partialorder %v4340, 8.507059e+37
      %v4342 = vand.u32 %v4212, 2147483648
      %v4343 = vor.u32 1.1754944e-38, %v4342
      %v4344 = vsel %vm4341, %v4343, %v4339
      %v4345 = vrcp.pop %v4213
      %v4346 = vmul.f32 %v4213, %v4345
      %v4347 = vsub.f32 1.0, %v4346
      %v4348 = vmul.f32 %v4345, %v4347
      %v4349 = vadd.f32 %v4345, %v4348
      %vm4350 = vweird.f32 %v4213
      %vm4351 = vweird.f32 %v4345
      %vm4352 = vmor %vm4350, %vm4351
      %v4353 = vsel %vm4352, %v4345, %v4349
      %v4354 = vand.u32 2147483647, %v4213
      %vm4355 = vcmp.eq.f32.partialorder %v4354, 8.507059e+37
      %v4356 = vand.u32 %v4213, 2147483648
      %v4357 = vor.u32 1.1754944e-38, %v4356
      %v4358 = vsel %vm4355, %v4357, %v4353
      %v4359 = vrcp.pop %v4214
      %v4360 = vmul.f32 %v4214, %v4359
      %v4361 = vsub.f32 1.0, %v4360
      %v4362 = vmul.f32 %v4359, %v4361
      %v4363 = vadd.f32 %v4359, %v4362
      %vm4364 = vweird.f32 %v4214
      %vm4365 = vweird.f32 %v4359
      %vm4366 = vmor %vm4364, %vm4365
      %v4367 = vsel %vm4366, %v4359, %v4363
      %v4368 = vand.u32 2147483647, %v4214
      %vm4369 = vcmp.eq.f32.partialorder %v4368, 8.507059e+37
      %v4370 = vand.u32 %v4214, 2147483648
      %v4371 = vor.u32 1.1754944e-38, %v4370
      %v4372 = vsel %vm4369, %v4371, %v4367
      %v4373 = vrcp.pop %v4215
      %v4374 = vmul.f32 %v4215, %v4373
      %v4375 = vsub.f32 1.0, %v4374
      %v4376 = vmul.f32 %v4373, %v4375
      %v4377 = vadd.f32 %v4373, %v4376
      %vm4378 = vweird.f32 %v4215
      %vm4379 = vweird.f32 %v4373
      %vm4380 = vmor %vm4378, %vm4379
      %v4381 = vsel %vm4380, %v4373, %v4377
      %v4382 = vand.u32 2147483647, %v4215
      %vm4383 = vcmp.eq.f32.partialorder %v4382, 8.507059e+37
      %v4384 = vand.u32 %v4215, 2147483648
      %v4385 = vor.u32 1.1754944e-38, %v4384
      %v4386 = vsel %vm4383, %v4385, %v4381
      %v4387 = vrcp.pop %v4216
      %v4388 = vmul.f32 %v4216, %v4387
      %v4389 = vsub.f32 1.0, %v4388
      %v4390 = vmul.f32 %v4387, %v4389
      %v4391 = vadd.f32 %v4387, %v4390
      %vm4392 = vweird.f32 %v4216
      %vm4393 = vweird.f32 %v4387
      %vm4394 = vmor %vm4392, %vm4393
      %v4395 = vsel %vm4394, %v4387, %v4391
      %v4396 = vand.u32 2147483647, %v4216
      %vm4397 = vcmp.eq.f32.partialorder %v4396, 8.507059e+37
      %v4398 = vand.u32 %v4216, 2147483648
      %v4399 = vor.u32 1.1754944e-38, %v4398
      %v4400 = vsel %vm4397, %v4399, %v4395
      %v4401 = vrcp.pop %v4217
      %v4402 = vmul.f32 %v4217, %v4401
      %v4403 = vsub.f32 1.0, %v4402
      %v4404 = vmul.f32 %v4401, %v4403
      %v4405 = vadd.f32 %v4401, %v4404
      %vm4406 = vweird.f32 %v4217
      %vm4407 = vweird.f32 %v4401
      %vm4408 = vmor %vm4406, %vm4407
      %v4409 = vsel %vm4408, %v4401, %v4405
      %v4410 = vand.u32 2147483647, %v4217
      %vm4411 = vcmp.eq.f32.partialorder %v4410, 8.507059e+37
      %v4412 = vand.u32 %v4217, 2147483648
      %v4413 = vor.u32 1.1754944e-38, %v4412
      %v4414 = vsel %vm4411, %v4413, %v4409
      %v4415 = vrcp.pop %v4218
      %v4416 = vmul.f32 %v4218, %v4415
      %v4417 = vsub.f32 1.0, %v4416
      %v4418 = vmul.f32 %v4415, %v4417
      %v4419 = vadd.f32 %v4415, %v4418
      %vm4420 = vweird.f32 %v4218
      %vm4421 = vweird.f32 %v4415
      %vm4422 = vmor %vm4420, %vm4421
      %v4423 = vsel %vm4422, %v4415, %v4419
      %v4424 = vand.u32 2147483647, %v4218
      %vm4425 = vcmp.eq.f32.partialorder %v4424, 8.507059e+37
      %v4426 = vand.u32 %v4218, 2147483648
      %v4427 = vor.u32 1.1754944e-38, %v4426
      %v4428 = vsel %vm4425, %v4427, %v4423
      %v4429 = vrcp.pop %v4219
      %v4430 = vmul.f32 %v4219, %v4429
      %v4431 = vsub.f32 1.0, %v4430
      %v4432 = vmul.f32 %v4429, %v4431
      %v4433 = vadd.f32 %v4429, %v4432
      %vm4434 = vweird.f32 %v4219
      %vm4435 = vweird.f32 %v4429
      %vm4436 = vmor %vm4434, %vm4435
      %v4437 = vsel %vm4436, %v4429, %v4433
      %v4438 = vand.u32 2147483647, %v4219
      %vm4439 = vcmp.eq.f32.partialorder %v4438, 8.507059e+37
      %v4440 = vand.u32 %v4219, 2147483648
      %v4441 = vor.u32 1.1754944e-38, %v4440
      %v4442 = vsel %vm4439, %v4441, %v4437
      %v4443 = vrcp.pop %v4220
      %v4444 = vmul.f32 %v4220, %v4443
      %v4445 = vsub.f32 1.0, %v4444
      %v4446 = vmul.f32 %v4443, %v4445
      %v4447 = vadd.f32 %v4443, %v4446
      %vm4448 = vweird.f32 %v4220
      %vm4449 = vweird.f32 %v4443
      %vm4450 = vmor %vm4448, %vm4449
      %v4451 = vsel %vm4450, %v4443, %v4447
      %v4452 = vand.u32 2147483647, %v4220
      %vm4453 = vcmp.eq.f32.partialorder %v4452, 8.507059e+37
      %v4454 = vand.u32 %v4220, 2147483648
      %v4455 = vor.u32 1.1754944e-38, %v4454
      %v4456 = vsel %vm4453, %v4455, %v4451
      %v4457 = vrcp.pop %v4221
      %v4458 = vmul.f32 %v4221, %v4457
      %v4459 = vsub.f32 1.0, %v4458
      %v4460 = vmul.f32 %v4457, %v4459
      %v4461 = vadd.f32 %v4457, %v4460
      %vm4462 = vweird.f32 %v4221
      %vm4463 = vweird.f32 %v4457
      %vm4464 = vmor %vm4462, %vm4463
      %v4465 = vsel %vm4464, %v4457, %v4461
      %v4466 = vand.u32 2147483647, %v4221
      %vm4467 = vcmp.eq.f32.partialorder %v4466, 8.507059e+37
      %v4468 = vand.u32 %v4221, 2147483648
      %v4469 = vor.u32 1.1754944e-38, %v4468
      %v4470 = vsel %vm4467, %v4469, %v4465
      %v4471 = vrcp.pop %v4222
      %v4472 = vmul.f32 %v4222, %v4471
      %v4473 = vsub.f32 1.0, %v4472
      %v4474 = vmul.f32 %v4471, %v4473
      %v4475 = vadd.f32 %v4471, %v4474
      %vm4476 = vweird.f32 %v4222
      %vm4477 = vweird.f32 %v4471
      %vm4478 = vmor %vm4476, %vm4477
      %v4479 = vsel %vm4478, %v4471, %v4475
      %v4480 = vand.u32 2147483647, %v4222
      %vm4481 = vcmp.eq.f32.partialorder %v4480, 8.507059e+37
      %v4482 = vand.u32 %v4222, 2147483648
      %v4483 = vor.u32 1.1754944e-38, %v4482
      %v4484 = vsel %vm4481, %v4483, %v4479
      %v4485 = vrcp.pop %v4223
      %v4486 = vmul.f32 %v4223, %v4485
      %v4487 = vsub.f32 1.0, %v4486
      %v4488 = vmul.f32 %v4485, %v4487
      %v4489 = vadd.f32 %v4485, %v4488
      %vm4490 = vweird.f32 %v4223
      %vm4491 = vweird.f32 %v4485
      %vm4492 = vmor %vm4490, %vm4491
      %v4493 = vsel %vm4492, %v4485, %v4489
      %v4494 = vand.u32 2147483647, %v4223
      %vm4495 = vcmp.eq.f32.partialorder %v4494, 8.507059e+37
      %v4496 = vand.u32 %v4223, 2147483648
      %v4497 = vor.u32 1.1754944e-38, %v4496
      %v4498 = vsel %vm4495, %v4497, %v4493
      %v4499 = vrcp.pop %v4224
      %v4500 = vmul.f32 %v4224, %v4499
      %v4501 = vsub.f32 1.0, %v4500
      %v4502 = vmul.f32 %v4499, %v4501
      %v4503 = vadd.f32 %v4499, %v4502
      %vm4504 = vweird.f32 %v4224
      %vm4505 = vweird.f32 %v4499
      %vm4506 = vmor %vm4504, %vm4505
      %v4507 = vsel %vm4506, %v4499, %v4503
      %v4508 = vand.u32 2147483647, %v4224
      %vm4509 = vcmp.eq.f32.partialorder %v4508, 8.507059e+37
      %v4510 = vand.u32 %v4224, 2147483648
      %v4511 = vor.u32 1.1754944e-38, %v4510
      %v4512 = vsel %vm4509, %v4511, %v4507
      %v4513 = vrcp.pop %v4225
      %v4514 = vmul.f32 %v4225, %v4513
      %v4515 = vsub.f32 1.0, %v4514
      %v4516 = vmul.f32 %v4513, %v4515
      %v4517 = vadd.f32 %v4513, %v4516
      %vm4518 = vweird.f32 %v4225
      %vm4519 = vweird.f32 %v4513
      %vm4520 = vmor %vm4518, %vm4519
      %v4521 = vsel %vm4520, %v4513, %v4517
      %v4522 = vand.u32 2147483647, %v4225
      %vm4523 = vcmp.eq.f32.partialorder %v4522, 8.507059e+37
      %v4524 = vand.u32 %v4225, 2147483648
      %v4525 = vor.u32 1.1754944e-38, %v4524
      %v4526 = vsel %vm4523, %v4525, %v4521
      %v4527 = vrcp.pop %v4226
      %v4528 = vmul.f32 %v4226, %v4527
      %v4529 = vsub.f32 1.0, %v4528
      %v4530 = vmul.f32 %v4527, %v4529
      %v4531 = vadd.f32 %v4527, %v4530
      %vm4532 = vweird.f32 %v4226
      %vm4533 = vweird.f32 %v4527
      %vm4534 = vmor %vm4532, %vm4533
      %v4535 = vsel %vm4534, %v4527, %v4531
      %v4536 = vand.u32 2147483647, %v4226
      %vm4537 = vcmp.eq.f32.partialorder %v4536, 8.507059e+37
      %v4538 = vand.u32 %v4226, 2147483648
      %v4539 = vor.u32 1.1754944e-38, %v4538
      %v4540 = vsel %vm4537, %v4539, %v4535
      %v4541 = vrcp.pop %v4227
      %v4542 = vmul.f32 %v4227, %v4541
      %v4543 = vsub.f32 1.0, %v4542
      %v4544 = vmul.f32 %v4541, %v4543
      %v4545 = vadd.f32 %v4541, %v4544
      %vm4546 = vweird.f32 %v4227
      %vm4547 = vweird.f32 %v4541
      %vm4548 = vmor %vm4546, %vm4547
      %v4549 = vsel %vm4548, %v4541, %v4545
      %v4550 = vand.u32 2147483647, %v4227
      %vm4551 = vcmp.eq.f32.partialorder %v4550, 8.507059e+37
      %v4552 = vand.u32 %v4227, 2147483648
      %v4553 = vor.u32 1.1754944e-38, %v4552
      %v4554 = vsel %vm4551, %v4553, %v4549
      %v4555 = vrcp.pop %v4228
      %v4556 = vmul.f32 %v4228, %v4555
      %v4557 = vsub.f32 1.0, %v4556
      %v4558 = vmul.f32 %v4555, %v4557
      %v4559 = vadd.f32 %v4555, %v4558
      %vm4560 = vweird.f32 %v4228
      %vm4561 = vweird.f32 %v4555
      %vm4562 = vmor %vm4560, %vm4561
      %v4563 = vsel %vm4562, %v4555, %v4559
      %v4564 = vand.u32 2147483647, %v4228
      %vm4565 = vcmp.eq.f32.partialorder %v4564, 8.507059e+37
      %v4566 = vand.u32 %v4228, 2147483648
      %v4567 = vor.u32 1.1754944e-38, %v4566
      %v4568 = vsel %vm4565, %v4567, %v4563
      %v4569 = vrcp.pop %v4229
      %v4570 = vmul.f32 %v4229, %v4569
      %v4571 = vsub.f32 1.0, %v4570
      %v4572 = vmul.f32 %v4569, %v4571
      %v4573 = vadd.f32 %v4569, %v4572
      %vm4574 = vweird.f32 %v4229
      %vm4575 = vweird.f32 %v4569
      %vm4576 = vmor %vm4574, %vm4575
      %v4577 = vsel %vm4576, %v4569, %v4573
      %v4578 = vand.u32 2147483647, %v4229
      %vm4579 = vcmp.eq.f32.partialorder %v4578, 8.507059e+37
      %v4580 = vand.u32 %v4229, 2147483648
      %v4581 = vor.u32 1.1754944e-38, %v4580
      %v4582 = vsel %vm4579, %v4581, %v4577
      %v4583 = vrcp.pop %v4230
      %v4584 = vmul.f32 %v4230, %v4583
      %v4585 = vsub.f32 1.0, %v4584
      %v4586 = vmul.f32 %v4583, %v4585
      %v4587 = vadd.f32 %v4583, %v4586
      %vm4588 = vweird.f32 %v4230
      %vm4589 = vweird.f32 %v4583
      %vm4590 = vmor %vm4588, %vm4589
      %v4591 = vsel %vm4590, %v4583, %v4587
      %v4592 = vand.u32 2147483647, %v4230
      %vm4593 = vcmp.eq.f32.partialorder %v4592, 8.507059e+37
      %v4594 = vand.u32 %v4230, 2147483648
      %v4595 = vor.u32 1.1754944e-38, %v4594
      %v4596 = vsel %vm4593, %v4595, %v4591
      %v4597 = vrcp.pop %v4231
      %v4598 = vmul.f32 %v4231, %v4597
      %v4599 = vsub.f32 1.0, %v4598
      %v4600 = vmul.f32 %v4597, %v4599
      %v4601 = vadd.f32 %v4597, %v4600
      %vm4602 = vweird.f32 %v4231
      %vm4603 = vweird.f32 %v4597
      %vm4604 = vmor %vm4602, %vm4603
      %v4605 = vsel %vm4604, %v4597, %v4601
      %v4606 = vand.u32 2147483647, %v4231
      %vm4607 = vcmp.eq.f32.partialorder %v4606, 8.507059e+37
      %v4608 = vand.u32 %v4231, 2147483648
      %v4609 = vor.u32 1.1754944e-38, %v4608
      %v4610 = vsel %vm4607, %v4609, %v4605
      %v4611 = vrcp.pop %v4232
      %v4612 = vmul.f32 %v4232, %v4611
      %v4613 = vsub.f32 1.0, %v4612
      %v4614 = vmul.f32 %v4611, %v4613
      %v4615 = vadd.f32 %v4611, %v4614
      %vm4616 = vweird.f32 %v4232
      %vm4617 = vweird.f32 %v4611
      %vm4618 = vmor %vm4616, %vm4617
      %v4619 = vsel %vm4618, %v4611, %v4615
      %v4620 = vand.u32 2147483647, %v4232
      %vm4621 = vcmp.eq.f32.partialorder %v4620, 8.507059e+37
      %v4622 = vand.u32 %v4232, 2147483648
      %v4623 = vor.u32 1.1754944e-38, %v4622
      %v4624 = vsel %vm4621, %v4623, %v4619
      %v4625 = vrcp.pop %v4233
      %v4626 = vmul.f32 %v4233, %v4625
      %v4627 = vsub.f32 1.0, %v4626
      %v4628 = vmul.f32 %v4625, %v4627
      %v4629 = vadd.f32 %v4625, %v4628
      %vm4630 = vweird.f32 %v4233
      %vm4631 = vweird.f32 %v4625
      %vm4632 = vmor %vm4630, %vm4631
      %v4633 = vsel %vm4632, %v4625, %v4629
      %v4634 = vand.u32 2147483647, %v4233
      %vm4635 = vcmp.eq.f32.partialorder %v4634, 8.507059e+37
      %v4636 = vand.u32 %v4233, 2147483648
      %v4637 = vor.u32 1.1754944e-38, %v4636
      %v4638 = vsel %vm4635, %v4637, %v4633
      %v4639 = vrcp.pop %v4234
      %v4640 = vmul.f32 %v4234, %v4639
      %v4641 = vsub.f32 1.0, %v4640
      %v4642 = vmul.f32 %v4639, %v4641
      %v4643 = vadd.f32 %v4639, %v4642
      %vm4644 = vweird.f32 %v4234
      %vm4645 = vweird.f32 %v4639
      %vm4646 = vmor %vm4644, %vm4645
      %v4647 = vsel %vm4646, %v4639, %v4643
      %v4648 = vand.u32 2147483647, %v4234
      %vm4649 = vcmp.eq.f32.partialorder %v4648, 8.507059e+37
      %v4650 = vand.u32 %v4234, 2147483648
      %v4651 = vor.u32 1.1754944e-38, %v4650
      %v4652 = vsel %vm4649, %v4651, %v4647
      %v4653 = vrcp.pop %v4235
      %v4654 = vmul.f32 %v4235, %v4653
      %v4655 = vsub.f32 1.0, %v4654
      %v4656 = vmul.f32 %v4653, %v4655
      %v4657 = vadd.f32 %v4653, %v4656
      %vm4658 = vweird.f32 %v4235
      %vm4659 = vweird.f32 %v4653
      %vm4660 = vmor %vm4658, %vm4659
      %v4661 = vsel %vm4660, %v4653, %v4657
      %v4662 = vand.u32 2147483647, %v4235
      %vm4663 = vcmp.eq.f32.partialorder %v4662, 8.507059e+37
      %v4664 = vand.u32 %v4235, 2147483648
      %v4665 = vor.u32 1.1754944e-38, %v4664
      %v4666 = vsel %vm4663, %v4665, %v4661
      %v4667 = vrcp.pop %v4236
      %v4668 = vmul.f32 %v4236, %v4667
      %v4669 = vsub.f32 1.0, %v4668
      %v4670 = vmul.f32 %v4667, %v4669
      %v4671 = vadd.f32 %v4667, %v4670
      %vm4672 = vweird.f32 %v4236
      %vm4673 = vweird.f32 %v4667
      %vm4674 = vmor %vm4672, %vm4673
      %v4675 = vsel %vm4674, %v4667, %v4671
      %v4676 = vand.u32 2147483647, %v4236
      %vm4677 = vcmp.eq.f32.partialorder %v4676, 8.507059e+37
      %v4678 = vand.u32 %v4236, 2147483648
      %v4679 = vor.u32 1.1754944e-38, %v4678
      %v4680 = vsel %vm4677, %v4679, %v4675
      %v4681 = vrcp.pop %v4237
      %v4682 = vmul.f32 %v4237, %v4681
      %v4683 = vsub.f32 1.0, %v4682
      %v4684 = vmul.f32 %v4681, %v4683
      %v4685 = vadd.f32 %v4681, %v4684
      %vm4686 = vweird.f32 %v4237
      %vm4687 = vweird.f32 %v4681
      %vm4688 = vmor %vm4686, %vm4687
      %v4689 = vsel %vm4688, %v4681, %v4685
      %v4690 = vand.u32 2147483647, %v4237
      %vm4691 = vcmp.eq.f32.partialorder %v4690, 8.507059e+37
      %v4692 = vand.u32 %v4237, 2147483648
      %v4693 = vor.u32 1.1754944e-38, %v4692
      %v4694 = vsel %vm4691, %v4693, %v4689
      %v4695 = vrcp.pop %v4238
      %v4696 = vmul.f32 %v4238, %v4695
      %v4697 = vsub.f32 1.0, %v4696
      %v4698 = vmul.f32 %v4695, %v4697
      %v4699 = vadd.f32 %v4695, %v4698
      %vm4700 = vweird.f32 %v4238
      %vm4701 = vweird.f32 %v4695
      %vm4702 = vmor %vm4700, %vm4701
      %v4703 = vsel %vm4702, %v4695, %v4699
      %v4704 = vand.u32 2147483647, %v4238
      %vm4705 = vcmp.eq.f32.partialorder %v4704, 8.507059e+37
      %v4706 = vand.u32 %v4238, 2147483648
      %v4707 = vor.u32 1.1754944e-38, %v4706
      %v4708 = vsel %vm4705, %v4707, %v4703
      %v4709 = vrcp.pop %v4239
      %v4710 = vmul.f32 %v4239, %v4709
      %v4711 = vsub.f32 1.0, %v4710
      %v4712 = vmul.f32 %v4709, %v4711
      %v4713 = vadd.f32 %v4709, %v4712
      %vm4714 = vweird.f32 %v4239
      %vm4715 = vweird.f32 %v4709
      %vm4716 = vmor %vm4714, %vm4715
      %v4717 = vsel %vm4716, %v4709, %v4713
      %v4718 = vand.u32 2147483647, %v4239
      %vm4719 = vcmp.eq.f32.partialorder %v4718, 8.507059e+37
      %v4720 = vand.u32 %v4239, 2147483648
      %v4721 = vor.u32 1.1754944e-38, %v4720
      %v4722 = vsel %vm4719, %v4721, %v4717
      %v4723 = vrcp.pop %v4240
      %v4724 = vmul.f32 %v4240, %v4723
      %v4725 = vsub.f32 1.0, %v4724
      %v4726 = vmul.f32 %v4723, %v4725
      %v4727 = vadd.f32 %v4723, %v4726
      %vm4728 = vweird.f32 %v4240
      %vm4729 = vweird.f32 %v4723
      %vm4730 = vmor %vm4728, %vm4729
      %v4731 = vsel %vm4730, %v4723, %v4727
      %v4732 = vand.u32 2147483647, %v4240
      %vm4733 = vcmp.eq.f32.partialorder %v4732, 8.507059e+37
      %v4734 = vand.u32 %v4240, 2147483648
      %v4735 = vor.u32 1.1754944e-38, %v4734
      %v4736 = vsel %vm4733, %v4735, %v4731
      %v4737 = vrcp.pop %v4241
      %v4738 = vmul.f32 %v4241, %v4737
      %v4739 = vsub.f32 1.0, %v4738
      %v4740 = vmul.f32 %v4737, %v4739
      %v4741 = vadd.f32 %v4737, %v4740
      %vm4742 = vweird.f32 %v4241
      %vm4743 = vweird.f32 %v4737
      %vm4744 = vmor %vm4742, %vm4743
      %v4745 = vsel %vm4744, %v4737, %v4741
      %v4746 = vand.u32 2147483647, %v4241
      %vm4747 = vcmp.eq.f32.partialorder %v4746, 8.507059e+37
      %v4748 = vand.u32 %v4241, 2147483648
      %v4749 = vor.u32 1.1754944e-38, %v4748
      %v4750 = vsel %vm4747, %v4749, %v4745
      %v4751 = vrcp.pop %v4242
      %v4752 = vmul.f32 %v4242, %v4751
      %v4753 = vsub.f32 1.0, %v4752
      %v4754 = vmul.f32 %v4751, %v4753
      %v4755 = vadd.f32 %v4751, %v4754
      %vm4756 = vweird.f32 %v4242
      %vm4757 = vweird.f32 %v4751
      %vm4758 = vmor %vm4756, %vm4757
      %v4759 = vsel %vm4758, %v4751, %v4755
      %v4760 = vand.u32 2147483647, %v4242
      %vm4761 = vcmp.eq.f32.partialorder %v4760, 8.507059e+37
      %v4762 = vand.u32 %v4242, 2147483648
      %v4763 = vor.u32 1.1754944e-38, %v4762
      %v4764 = vsel %vm4761, %v4763, %v4759
      %v4765 = vrcp.pop %v4243
      %v4766 = vmul.f32 %v4243, %v4765
      %v4767 = vsub.f32 1.0, %v4766
      %v4768 = vmul.f32 %v4765, %v4767
      %v4769 = vadd.f32 %v4765, %v4768
      %vm4770 = vweird.f32 %v4243
      %vm4771 = vweird.f32 %v4765
      %vm4772 = vmor %vm4770, %vm4771
      %v4773 = vsel %vm4772, %v4765, %v4769
      %v4774 = vand.u32 2147483647, %v4243
      %vm4775 = vcmp.eq.f32.partialorder %v4774, 8.507059e+37
      %v4776 = vand.u32 %v4243, 2147483648
      %v4777 = vor.u32 1.1754944e-38, %v4776
      %v4778 = vsel %vm4775, %v4777, %v4773
      %v4779 = vrcp.pop %v4244
      %v4780 = vmul.f32 %v4244, %v4779
      %v4781 = vsub.f32 1.0, %v4780
      %v4782 = vmul.f32 %v4779, %v4781
      %v4783 = vadd.f32 %v4779, %v4782
      %vm4784 = vweird.f32 %v4244
      %vm4785 = vweird.f32 %v4779
      %vm4786 = vmor %vm4784, %vm4785
      %v4787 = vsel %vm4786, %v4779, %v4783
      %v4788 = vand.u32 2147483647, %v4244
      %vm4789 = vcmp.eq.f32.partialorder %v4788, 8.507059e+37
      %v4790 = vand.u32 %v4244, 2147483648
      %v4791 = vor.u32 1.1754944e-38, %v4790
      %v4792 = vsel %vm4789, %v4791, %v4787
      %v4793 = vrcp.pop %v4245
      %v4794 = vmul.f32 %v4245, %v4793
      %v4795 = vsub.f32 1.0, %v4794
      %v4796 = vmul.f32 %v4793, %v4795
      %v4797 = vadd.f32 %v4793, %v4796
      %vm4798 = vweird.f32 %v4245
      %vm4799 = vweird.f32 %v4793
      %vm4800 = vmor %vm4798, %vm4799
      %v4801 = vsel %vm4800, %v4793, %v4797
      %v4802 = vand.u32 2147483647, %v4245
      %vm4803 = vcmp.eq.f32.partialorder %v4802, 8.507059e+37
      %v4804 = vand.u32 %v4245, 2147483648
      %v4805 = vor.u32 1.1754944e-38, %v4804
      %v4806 = vsel %vm4803, %v4805, %v4801
      %v4807 = vrcp.pop %v4246
      %v4808 = vmul.f32 %v4246, %v4807
      %v4809 = vsub.f32 1.0, %v4808
      %v4810 = vmul.f32 %v4807, %v4809
      %v4811 = vadd.f32 %v4807, %v4810
      %vm4812 = vweird.f32 %v4246
      %vm4813 = vweird.f32 %v4807
      %vm4814 = vmor %vm4812, %vm4813
      %v4815 = vsel %vm4814, %v4807, %v4811
      %v4816 = vand.u32 2147483647, %v4246
      %vm4817 = vcmp.eq.f32.partialorder %v4816, 8.507059e+37
      %v4818 = vand.u32 %v4246, 2147483648
      %v4819 = vor.u32 1.1754944e-38, %v4818
      %v4820 = vsel %vm4817, %v4819, %v4815
      %4821 = vst [vmem:[%s332] sm:$0xff] %v4260
      %4822 = vst [vmem:[%s332 + $0x8] sm:$0xff] %v4274
      %4823 = vst [vmem:[%s332 + $0x10] sm:$0xff] %v4288
      %4824 = vst [vmem:[%s332 + $0x18] sm:$0xff] %v4302
      %4825 = vst [vmem:[%s332 + $0x20] sm:$0xff] %v4316
      %4826 = vst [vmem:[%s332 + $0x28] sm:$0xff] %v4330
      %4827 = vst [vmem:[%s332 + $0x30] sm:$0xff] %v4344
      %4828 = vst [vmem:[%s332 + $0x38] sm:$0xff] %v4358
      %4829 = vst [vmem:[%s332 + $0x40] sm:$0xff] %v4372
      %4830 = vst [vmem:[%s332 + $0x48] sm:$0xff] %v4386
      %4831 = vst [vmem:[%s332 + $0x50] sm:$0xff] %v4400
      %4832 = vst [vmem:[%s332 + $0x58] sm:$0xff] %v4414
      %4833 = vst [vmem:[%s332 + $0x60] sm:$0xff] %v4428
      %4834 = vst [vmem:[%s332 + $0x68] sm:$0xff] %v4442
      %4835 = vst [vmem:[%s332 + $0x70] sm:$0xff] %v4456
      %4836 = vst [vmem:[%s332 + $0x78] sm:$0xff] %v4470
      %4837 = vst [vmem:[%s332 + $0x80] sm:$0xff] %v4484
      %4838 = vst [vmem:[%s332 + $0x88] sm:$0xff] %v4498
      %4839 = vst [vmem:[%s332 + $0x90] sm:$0xff] %v4512
      %4840 = vst [vmem:[%s332 + $0x98] sm:$0xff] %v4526
      %4841 = vst [vmem:[%s332 + $0xa0] sm:$0xff] %v4540
      %4842 = vst [vmem:[%s332 + $0xa8] sm:$0xff] %v4554
      %4843 = vst [vmem:[%s332 + $0xb0] sm:$0xff] %v4568
      %4844 = vst [vmem:[%s332 + $0xb8] sm:$0xff] %v4582
      %4845 = vst [vmem:[%s332 + $0xc0] sm:$0xff] %v4596
      %4846 = vst [vmem:[%s332 + $0xc8] sm:$0xff] %v4610
      %4847 = vst [vmem:[%s332 + $0xd0] sm:$0xff] %v4624
      %4848 = vst [vmem:[%s332 + $0xd8] sm:$0xff] %v4638
      %4849 = vst [vmem:[%s332 + $0xe0] sm:$0xff] %v4652
      %4850 = vst [vmem:[%s332 + $0xe8] sm:$0xff] %v4666
      %4851 = vst [vmem:[%s332 + $0xf0] sm:$0xff] %v4680
      %4852 = vst [vmem:[%s332 + $0xf8] sm:$0xff] %v4694
      %4853 = vst [vmem:[%s332 + $0x100] sm:$0xff] %v4708
      %4854 = vst [vmem:[%s332 + $0x108] sm:$0xff] %v4722
      %4855 = vst [vmem:[%s332 + $0x110] sm:$0xff] %v4736
      %4856 = vst [vmem:[%s332 + $0x118] sm:$0xff] %v4750
      %4857 = vst [vmem:[%s332 + $0x120] sm:$0xff] %v4764
      %4858 = vst [vmem:[%s332 + $0x128] sm:$0xff] %v4778
      %4859 = vst [vmem:[%s332 + $0x130] sm:$0xff] %v4792
      %4860 = vst [vmem:[%s332 + $0x138] sm:$0xff] %v4806
      %4861 = vst [vmem:[%s332 + $0x140] sm:$0xf] %v4820
      %p4862 = scmp.lt.s32.totalorder %s20, 1
      %s4863 = scalar_select %p4862, %s20, 1
      %s4864 = smul.addr %s4863, 41
      %s4865 = smul.addr %s4864, 8
      %s4866 = scalar_lea.vmem %s9, %s4865
      // Predicated region
      $region61: #{bottleneck_forward.1} parent=55 // pred_check
        %p4867 = pneg %p232
      $region62: #{bottleneck_forward.1} parent=55 // pred_check_branch
        %4869 = sbr.rel (%p4867) target = $region64
      $region63: #{bottleneck_forward.1} parent=55 // pred_region
        _
      $region64: #{bottleneck_forward.1} parent=55 // pred_fallthru
        _
    $region56: #{bottleneck_forward.1} parent=5 // pred_fallthru
      _
    %p4870 = scmp.le.s32.totalorder 2, %s15
    // Predicated region
    $region65: #{bottleneck_forward.1} parent=5 // pred_check
      %p4871 = pneg %p4870
    $region66: #{bottleneck_forward.1} parent=5 // pred_check_branch
      %4873 = sbr.rel (%p4871) target = $region68
    $region67: #{bottleneck_forward.1} parent=5 // pred_region
      %s4874 = ssub.s32 %s15, 2
      // Predicated region
      $region69: #{bottleneck_forward.1} parent=67 // pred_check
        %p4875 = pneg %p238
      $region70: #{bottleneck_forward.1} parent=67 // pred_check_branch
        %4877 = sbr.rel (%p4875) target = $region72
      $region71: #{bottleneck_forward.1} parent=67 // pred_region
        %p4878 = scmp.lt.s32.totalorder %s21, 1
        %s4879 = scalar_select %p4878, %s21, 1
        %s4880 = smul.addr %s4879, 41
        %s4881 = smul.addr %s4880, 8
        %s4882 = scalar_lea.vmem %s9, %s4881
      $region72: #{bottleneck_forward.1} parent=67 // pred_fallthru
        _
    $region68: #{bottleneck_forward.1} parent=5 // pred_fallthru
      _
  $region6: #{bottleneck_forward.1} parent=0 // loop_footer
    %s19 = sadd.s32 1, %s15
  $region7: #{bottleneck_forward.1} parent=0 // loop_footer_branch
    %14 = sbr.rel target = $region3
  $region8: #{bottleneck_forward.1} parent=0 // loop_exit
    _

</llo_original>
